<compile_context>
chip_gen: v6e
topology: v6e:2x2x1
jax: 0.10.0
libtpu: 0.0.40
codegen_flags: <defaults>
</compile_context>

<pallas_src>
import functools

import jax
import jax.numpy as jnp
from jax.experimental import pallas as pl
from jax.experimental.pallas import tpu as pltpu

PAD_IDX = 0
_LANE = 128
_SUBLANE = 8

_VMEM_SPEC = pl.BlockSpec(memory_space=pltpu.MemorySpace.VMEM)


def _round_up(x, m):
  return (x + m - 1) // m * m


# ------------------------------ fused kernel --------------------------------


def _fused_rnn_dp_kernel(x_ref, h0_ref, wih_ref, whh_ref, bih_ref, bhh_ref,
                         w1_ref, b1_ref, w2_ref, b2_ref, out_ref, y_scr,
                         *, T, B, Bp, Hp, L):
  """Fused multi-layer GRU over the stacked (seq1|seq2) batch + MLP head.

  x_ref  : (T*Bp, P)     layer-0 input, time-major, both sequences stacked
                         along batch, zero-padded to Bp sublanes / P lanes.
  h0_ref : (L, Bp, Hp)   initial hidden per layer (seq1 rows 0:B, seq2 B:2B).
  wih_ref: (L, P, 3*Hp)  input->hidden weights; gate g occupies lanes
                         [g*Hp, g*Hp+H) -> lane-aligned gate tiles.
  whh_ref: (L, Hp, 3*Hp) hidden->hidden weights, same gate layout.
  bih_ref, bhh_ref: (L, 1, 3*Hp)
  w1_ref : (2*Hp, Fp)    head; rows [0:Hp) act on seq1 hidden, [Hp:2Hp) on seq2.
  b1_ref : (1, Fp)       w2_ref: (Fp, Cp)     b2_ref: (1, Cp)
  out_ref: (B, Cp)       padded logits (real classes in lanes 0:C).
  y_scr  : (T*Bp, Hp)    VMEM scratch: previous layer's per-step outputs.
  """
  G = 3 * Hp
  sum_h = None

  for l in range(L):                            # layers: static unroll
    x_all = x_ref[...] if l == 0 else y_scr[...]
    wih = wih_ref[l]
    whh = whh_ref[l]

    # Hoisted input projection: one big batched matmul (bias folded in), so the
    # serial recurrence only carries the (Bp,Hp)x(Hp,3Hp) h @ W_hh matmul.
    gi_all = (jnp.dot(x_all, wih, preferred_element_type=jnp.float32)
              + bih_ref[l])
    # Hoist the recurrent-bias broadcast out of the time loop (no CSE in JAX).
    bhh_b = jnp.broadcast_to(bhh_ref[l], (Bp, G))

    h = h0_ref[l]
    for t in range(T):                          # time: static unroll (small T)
      gi = gi_all[t * Bp:(t + 1) * Bp]          # sublane-aligned row block
      gh = jnp.dot(h, whh, preferred_element_type=jnp.float32) + bhh_b
      r = jax.nn.sigmoid(gi[:, 0:Hp] + gh[:, 0:Hp])
      z = jax.nn.sigmoid(gi[:, Hp:2 * Hp] + gh[:, Hp:2 * Hp])
      n = jnp.tanh(gi[:, 2 * Hp:G] + r * gh[:, 2 * Hp:G])
      h = (1.0 - z) * n + z * h
      if l + 1 < L:
        y_scr[t * Bp:(t + 1) * Bp, :] = h       # next layer's input, in VMEM

    sum_h = h if l == 0 else sum_h + h          # torch.sum(hidden, dim=0)

  # MLP head. combined = [sum_h(seq1) | sum_h(seq2)] is realized as two
  # lane-aligned matmuls against the two 128-row halves of w1 (no lane concat).
  r1 = sum_h[0:B]
  r2 = sum_h[B:2 * B]
  hid = jnp.maximum(
      jnp.dot(r1, w1_ref[0:Hp, :], preferred_element_type=jnp.float32)
      + jnp.dot(r2, w1_ref[Hp:2 * Hp, :], preferred_element_type=jnp.float32)
      + b1_ref[...], 0.0)
  # TODO(synk): nn.Dropout(p_p) train-mode masking is skipped (eval/identity).
  out_ref[...] = (
      jnp.dot(hid, w2_ref[...], preferred_element_type=jnp.float32)
      + b2_ref[...])


# ------------------------------ param padding -------------------------------


def _pad_gru_layer(wih, whh, bih, bhh, P, Hp):
  """(in,3H)/(H,3H)/(1,3H) -> zero-padded, gate-lane-aligned tiles."""
  in_size, h3 = wih.shape
  H = h3 // 3
  wih_p = jnp.zeros((P, 3 * Hp), jnp.float32)
  whh_p = jnp.zeros((Hp, 3 * Hp), jnp.float32)
  bih_p = jnp.zeros((1, 3 * Hp), jnp.float32)
  bhh_p = jnp.zeros((1, 3 * Hp), jnp.float32)
  for g in range(3):
    wih_p = wih_p.at[:in_size, g * Hp:g * Hp + H].set(wih[:, g * H:(g + 1) * H])
    whh_p = whh_p.at[:H, g * Hp:g * Hp + H].set(whh[:, g * H:(g + 1) * H])
    bih_p = bih_p.at[:, g * Hp:g * Hp + H].set(bih[:, g * H:(g + 1) * H])
    bhh_p = bhh_p.at[:, g * Hp:g * Hp + H].set(bhh[:, g * H:(g + 1) * H])
  return wih_p, whh_p, bih_p, bhh_p


# ------------------------------- model wrapper -------------------------------


def init_params(key, *, vocab_size, emb_size, hidden_size, num_layers,
                num_classes):
  ks = iter(jax.random.split(key, 4 + 4 * num_layers + 4))
  params = {}
  emb = jax.random.normal(next(ks), (vocab_size, emb_size), jnp.float32) * 0.1
  emb = emb.at[PAD_IDX].set(0.0)                 # padding_idx=PAD_IDX
  params["embedding"] = emb

  params["gru"] = []
  for l in range(num_layers):
    in_size = emb_size if l == 0 else hidden_size
    s = 1.0 / jnp.sqrt(hidden_size)
    wih = jax.random.uniform(next(ks), (in_size, 3 * hidden_size),
                             jnp.float32, -s, s)
    whh = jax.random.uniform(next(ks), (hidden_size, 3 * hidden_size),
                             jnp.float32, -s, s)
    bih = jax.random.uniform(next(ks), (1, 3 * hidden_size), jnp.float32, -s, s)
    bhh = jax.random.uniform(next(ks), (1, 3 * hidden_size), jnp.float32, -s, s)
    params["gru"].append((wih, whh, bih, bhh))

  s1 = 1.0 / jnp.sqrt(2 * hidden_size)
  params["w1"] = jax.random.uniform(next(ks), (2 * hidden_size, 500),
                                    jnp.float32, -s1, s1)
  params["b1"] = jax.random.uniform(next(ks), (1, 500), jnp.float32, -s1, s1)
  s2 = 1.0 / jnp.sqrt(500)
  params["w2"] = jax.random.uniform(next(ks), (500, num_classes),
                                    jnp.float32, -s2, s2)
  params["b2"] = jax.random.uniform(next(ks), (1, num_classes),
                                    jnp.float32, -s2, s2)
  return params


@jax.jit
def rnn_dp_forward(params, data_s1, length1, data_s2, length2, h1, h2):
  del length1, length2  # reference forward ignores lengths for the GRU call
  emb = params["embedding"]
  _, E = emb.shape
  L = len(params["gru"])
  H = params["gru"][0][1].shape[0]
  F = params["w1"].shape[1]
  C = params["w2"].shape[1]
  B, T = data_s1.shape

  P = _round_up(max(E, H), _LANE)       # common lane width for layer inputs
  Hp = P                                # padded hidden width
  Bp = _round_up(2 * B, _SUBLANE)       # both sequences stacked, >=8 sublanes
  Fp = _round_up(F, _LANE)
  Cp = _round_up(C, _LANE)

  # Embedding lookup in XLA (gather), then stack seq1|seq2 along batch,
  # go time-major and zero-pad batch -> Bp sublanes, features -> P lanes.
  e1 = jnp.take(emb, data_s1, axis=0)                       # (B, T, E)
  e2 = jnp.take(emb, data_s2, axis=0)
  x = jnp.transpose(jnp.concatenate([e1, e2], axis=0), (1, 0, 2))  # (T,2B,E)
  x = jnp.pad(x, ((0, 0), (0, Bp - 2 * B), (0, P - E)))
  x = x.reshape(T * Bp, P)

  # Initial hidden: (L, Bp, Hp); seq1 rows 0:B, seq2 rows B:2B; zero padding
  # keeps the padded hidden lanes exactly zero through the recurrence.
  h0 = jnp.concatenate([h1, h2], axis=1)                    # (L, 2B, H)
  h0 = jnp.pad(h0, ((0, 0), (0, Bp - 2 * B), (0, Hp - H)))

  # Gate-lane-aligned, zero-padded GRU weights stacked over layers.
  wih_l, whh_l, bih_l, bhh_l = [], [], [], []
  for (wih, whh, bih, bhh) in params["gru"]:
    a, b_, c, d = _pad_gru_layer(wih, whh, bih, bhh, P, Hp)
    wih_l.append(a); whh_l.append(b_); bih_l.append(c); bhh_l.append(d)
  wih_s = jnp.stack(wih_l)              # (L, P, 3Hp)
  whh_s = jnp.stack(whh_l)              # (L, Hp, 3Hp)
  bih_s = jnp.stack(bih_l)              # (L, 1, 3Hp)
  bhh_s = jnp.stack(bhh_l)

  # Head weights, padded lane-dense.  w1 rows [0:Hp) act on seq1's hidden and
  # rows [Hp:2Hp) on seq2's, matching the split matmul inside the kernel.
  w1, b1, w2, b2 = params["w1"], params["b1"], params["w2"], params["b2"]
  w1_p = jnp.zeros((2 * Hp, Fp), jnp.float32)
  w1_p = w1_p.at[:H, :F].set(w1[:H])
  w1_p = w1_p.at[Hp:Hp + H, :F].set(w1[H:2 * H])
  b1_p = jnp.zeros((1, Fp), jnp.float32).at[:, :F].set(b1)
  w2_p = jnp.zeros((Fp, Cp), jnp.float32).at[:F, :C].set(w2)
  b2_p = jnp.zeros((1, Cp), jnp.float32).at[:, :C].set(b2)

  kernel = functools.partial(_fused_rnn_dp_kernel,
                             T=T, B=B, Bp=Bp, Hp=Hp, L=L)
  out_p = pl.pallas_call(
      kernel,
      out_shape=jax.ShapeDtypeStruct((B, Cp), jnp.float32),
      in_specs=[_VMEM_SPEC] * 10,
      out_specs=_VMEM_SPEC,
      scratch_shapes=[pltpu.VMEM((T * Bp, Hp), jnp.float32)],
  )(x, h0, wih_s, whh_s, bih_s, bhh_s, w1_p, b1_p, w2_p, b2_p)
  return out_p[:, :C]


# -------------------------------- pure-JAX ref -------------------------------


def _ref_gru_layer(x_tbe, h0, wih, whh, bih, bhh):
  H = h0.shape[1]

  def step(h, x_t):
    gi = x_t @ wih + bih
    gh = h @ whh + bhh
    r = jax.nn.sigmoid(gi[:, :H] + gh[:, :H])
    z = jax.nn.sigmoid(gi[:, H:2 * H] + gh[:, H:2 * H])
    n = jnp.tanh(gi[:, 2 * H:] + r * gh[:, 2 * H:])
    h_new = (1.0 - z) * n + z * h
    return h_new, h_new

  hT, ys = jax.lax.scan(step, h0, x_tbe)
  return ys, hT


def ref_forward(params, data_s1, data_s2, h1, h2):
  def gru(embed, h0):
    x = jnp.transpose(embed, (1, 0, 2))
    finals = []
    for l, (wih, whh, bih, bhh) in enumerate(params["gru"]):
      x, hT = _ref_gru_layer(x, h0[l], wih, whh, bih, bhh)
      finals.append(hT)
    return jnp.stack(finals, 0)

  e1 = jnp.take(params["embedding"], data_s1, axis=0)
  e2 = jnp.take(params["embedding"], data_s2, axis=0)
  r1 = jnp.sum(gru(e1, h1), axis=0)
  r2 = jnp.sum(gru(e2, h2), axis=0)
  c = jnp.concatenate([r1, r2], axis=1)
  logits = jnp.maximum(c @ params["w1"] + params["b1"], 0.0)
  return logits @ params["w2"] + params["b2"]


# ----------------------------------- main ------------------------------------

if __name__ == "__main__":
  B, T = 2, 8
  EMB, HID, LAYERS, CLASSES, VOCAB = 32, 32, 2, 4, 50

  key = jax.random.PRNGKey(0)
  kp, kd1, kd2, kh1, kh2 = jax.random.split(key, 5)

  params = init_params(kp, vocab_size=VOCAB, emb_size=EMB, hidden_size=HID,
                       num_layers=LAYERS, num_classes=CLASSES)

  data_s1 = jax.random.randint(kd1, (B, T), 0, VOCAB, jnp.int32)
  data_s2 = jax.random.randint(kd2, (B, T), 0, VOCAB, jnp.int32)
  length1 = jnp.full((B,), T, jnp.int32)
  length2 = jnp.full((B,), T, jnp.int32)
  # init_hidden: torch.randn(num_layers, batch, hidden) -> deterministic here.
  h1 = jax.random.normal(kh1, (LAYERS, B, HID), jnp.float32)
  h2 = jax.random.normal(kh2, (LAYERS, B, HID), jnp.float32)

  out = rnn_dp_forward(params, data_s1, length1, data_s2, length2, h1, h2)
  out = jax.block_until_ready(out)

  ref = ref_forward(params, data_s1, data_s2, h1, h2)
  assert out.shape == (B, CLASSES)
  assert jnp.allclose(out, ref, atol=1e-4, rtol=1e-4)
  print("KERNEL_OK")
</pallas_src>

<mosaic_0001>
module attributes {stable_mosaic.version = 11 : i64} {
  func.func @_fused_rnn_dp_kernel(%arg0: memref<64x128xf32, #tpu.memory_space<vmem>>, %arg1: memref<2x8x128xf32, #tpu.memory_space<vmem>>, %arg2: memref<2x128x384xf32, #tpu.memory_space<vmem>>, %arg3: memref<2x128x384xf32, #tpu.memory_space<vmem>>, %arg4: memref<2x1x384xf32, #tpu.memory_space<vmem>>, %arg5: memref<2x1x384xf32, #tpu.memory_space<vmem>>, %arg6: memref<256x512xf32, #tpu.memory_space<vmem>>, %arg7: memref<1x512xf32, #tpu.memory_space<vmem>>, %arg8: memref<512x128xf32, #tpu.memory_space<vmem>>, %arg9: memref<1x128xf32, #tpu.memory_space<vmem>>, %arg10: memref<2x128xf32, #tpu.memory_space<vmem>>, %arg11: memref<64x128xf32, #tpu.memory_space<vmem>>) attributes {dimension_semantics = [], scalar_prefetch = 0 : i64, scratch_operands = 1 : i64, tpu.core_type = #tpu.core_type<tc>} {
    %c0 = arith.constant 0 : index
    %c0_0 = arith.constant 0 : index
    %0 = vector.load %arg0[%c0, %c0_0] : memref<64x128xf32, #tpu.memory_space<vmem>>, vector<64x128xf32>
    %c0_1 = arith.constant 0 : index
    %c0_2 = arith.constant 0 : index
    %c0_3 = arith.constant 0 : index
    %1 = vector.load %arg2[%c0_1, %c0_2, %c0_3] : memref<2x128x384xf32, #tpu.memory_space<vmem>>, vector<1x128x384xf32>
    %2 = vector.shape_cast %1 : vector<1x128x384xf32> to vector<128x384xf32>
    %c0_4 = arith.constant 0 : index
    %c0_5 = arith.constant 0 : index
    %c0_6 = arith.constant 0 : index
    %3 = vector.load %arg3[%c0_4, %c0_5, %c0_6] : memref<2x128x384xf32, #tpu.memory_space<vmem>>, vector<1x128x384xf32>
    %4 = vector.shape_cast %3 : vector<1x128x384xf32> to vector<128x384xf32>
    %cst = arith.constant dense<0.000000e+00> : vector<64x384xf32>
    %5 = tpu.matmul %0, %2, %cst {dimension_numbers = #tpu.dot_dimension_numbers<[1], [0], [0], [1], [0, 0, 1, 1], [], []>} : vector<64x128xf32>, vector<128x384xf32>, vector<64x384xf32> -> vector<64x384xf32>
    %c0_7 = arith.constant 0 : index
    %c0_8 = arith.constant 0 : index
    %c0_9 = arith.constant 0 : index
    %6 = vector.load %arg4[%c0_7, %c0_8, %c0_9] : memref<2x1x384xf32, #tpu.memory_space<vmem>>, vector<1x1x384xf32>
    %7 = vector.shape_cast %6 : vector<1x1x384xf32> to vector<1x384xf32>
    %8 = vector.broadcast %7 : vector<1x384xf32> to vector<64x384xf32>
    %9 = arith.addf %5, %8 : vector<64x384xf32>
    %c0_10 = arith.constant 0 : index
    %c0_11 = arith.constant 0 : index
    %c0_12 = arith.constant 0 : index
    %10 = vector.load %arg5[%c0_10, %c0_11, %c0_12] : memref<2x1x384xf32, #tpu.memory_space<vmem>>, vector<1x1x384xf32>
    %11 = vector.shape_cast %10 : vector<1x1x384xf32> to vector<1x384xf32>
    %12 = vector.shape_cast %11 : vector<1x384xf32> to vector<1x384xf32>
    %13 = vector.broadcast %12 : vector<1x384xf32> to vector<8x384xf32>
    %c0_13 = arith.constant 0 : index
    %c0_14 = arith.constant 0 : index
    %c0_15 = arith.constant 0 : index
    %14 = vector.load %arg1[%c0_13, %c0_14, %c0_15] : memref<2x8x128xf32, #tpu.memory_space<vmem>>, vector<1x8x128xf32>
    %15 = vector.shape_cast %14 : vector<1x8x128xf32> to vector<8x128xf32>
    %16 = vector.extract_strided_slice %9 {offsets = [0, 0], sizes = [8, 384], strides = [1, 1]} : vector<64x384xf32> to vector<8x384xf32>
    %cst_16 = arith.constant dense<0.000000e+00> : vector<8x384xf32>
    %17 = tpu.matmul %15, %4, %cst_16 {dimension_numbers = #tpu.dot_dimension_numbers<[1], [0], [0], [1], [0, 0, 1, 1], [], []>} : vector<8x128xf32>, vector<128x384xf32>, vector<8x384xf32> -> vector<8x384xf32>
    %18 = arith.addf %17, %13 : vector<8x384xf32>
    %19 = vector.extract_strided_slice %16 {offsets = [0, 0], sizes = [8, 128], strides = [1, 1]} : vector<8x384xf32> to vector<8x128xf32>
    %20 = vector.extract_strided_slice %18 {offsets = [0, 0], sizes = [8, 128], strides = [1, 1]} : vector<8x384xf32> to vector<8x128xf32>
    %21 = arith.addf %19, %20 : vector<8x128xf32>
    %22 = arith.negf %21 : vector<8x128xf32>
    %23 = math.exp %22 : vector<8x128xf32>
    %cst_17 = arith.constant 1.000000e+00 : f32
    %24 = vector.broadcast %cst_17 : f32 to vector<8x128xf32>
    %25 = arith.addf %24, %23 : vector<8x128xf32>
    %26 = arith.divf %24, %25 : vector<8x128xf32>
    %27 = vector.extract_strided_slice %16 {offsets = [0, 128], sizes = [8, 128], strides = [1, 1]} : vector<8x384xf32> to vector<8x128xf32>
    %28 = vector.extract_strided_slice %18 {offsets = [0, 128], sizes = [8, 128], strides = [1, 1]} : vector<8x384xf32> to vector<8x128xf32>
    %29 = arith.addf %27, %28 : vector<8x128xf32>
    %30 = arith.negf %29 : vector<8x128xf32>
    %31 = math.exp %30 : vector<8x128xf32>
    %cst_18 = arith.constant 1.000000e+00 : f32
    %32 = vector.broadcast %cst_18 : f32 to vector<8x128xf32>
    %33 = arith.addf %32, %31 : vector<8x128xf32>
    %34 = arith.divf %32, %33 : vector<8x128xf32>
    %35 = vector.extract_strided_slice %16 {offsets = [0, 256], sizes = [8, 128], strides = [1, 1]} : vector<8x384xf32> to vector<8x128xf32>
    %36 = vector.extract_strided_slice %18 {offsets = [0, 256], sizes = [8, 128], strides = [1, 1]} : vector<8x384xf32> to vector<8x128xf32>
    %37 = arith.mulf %26, %36 : vector<8x128xf32>
    %38 = arith.addf %35, %37 : vector<8x128xf32>
    %39 = math.tanh %38 : vector<8x128xf32>
    %cst_19 = arith.constant 1.000000e+00 : f32
    %40 = vector.broadcast %cst_19 : f32 to vector<8x128xf32>
    %41 = arith.subf %40, %34 : vector<8x128xf32>
    %42 = arith.mulf %41, %39 : vector<8x128xf32>
    %43 = arith.mulf %34, %15 : vector<8x128xf32>
    %44 = arith.addf %42, %43 : vector<8x128xf32>
    %c0_20 = arith.constant 0 : index
    %c0_21 = arith.constant 0 : index
    %45 = vector.load %arg11[%c0_20, %c0_21] : memref<64x128xf32, #tpu.memory_space<vmem>>, vector<8x128xf32>
    tpu.vector_store %arg11[%c0_20, %c0_21], %44 {strides = array<i32>} : memref<64x128xf32, #tpu.memory_space<vmem>>, vector<8x128xf32>,
    %46 = vector.extract_strided_slice %9 {offsets = [8, 0], sizes = [8, 384], strides = [1, 1]} : vector<64x384xf32> to vector<8x384xf32>
    %cst_22 = arith.constant dense<0.000000e+00> : vector<8x384xf32>
    %47 = tpu.matmul %44, %4, %cst_22 {dimension_numbers = #tpu.dot_dimension_numbers<[1], [0], [0], [1], [0, 0, 1, 1], [], []>} : vector<8x128xf32>, vector<128x384xf32>, vector<8x384xf32> -> vector<8x384xf32>
    %48 = arith.addf %47, %13 : vector<8x384xf32>
    %49 = vector.extract_strided_slice %46 {offsets = [0, 0], sizes = [8, 128], strides = [1, 1]} : vector<8x384xf32> to vector<8x128xf32>
    %50 = vector.extract_strided_slice %48 {offsets = [0, 0], sizes = [8, 128], strides = [1, 1]} : vector<8x384xf32> to vector<8x128xf32>
    %51 = arith.addf %49, %50 : vector<8x128xf32>
    %52 = arith.negf %51 : vector<8x128xf32>
    %53 = math.exp %52 : vector<8x128xf32>
    %cst_23 = arith.constant 1.000000e+00 : f32
    %54 = vector.broadcast %cst_23 : f32 to vector<8x128xf32>
    %55 = arith.addf %54, %53 : vector<8x128xf32>
    %56 = arith.divf %54, %55 : vector<8x128xf32>
    %57 = vector.extract_strided_slice %46 {offsets = [0, 128], sizes = [8, 128], strides = [1, 1]} : vector<8x384xf32> to vector<8x128xf32>
    %58 = vector.extract_strided_slice %48 {offsets = [0, 128], sizes = [8, 128], strides = [1, 1]} : vector<8x384xf32> to vector<8x128xf32>
    %59 = arith.addf %57, %58 : vector<8x128xf32>
    %60 = arith.negf %59 : vector<8x128xf32>
    %61 = math.exp %60 : vector<8x128xf32>
    %cst_24 = arith.constant 1.000000e+00 : f32
    %62 = vector.broadcast %cst_24 : f32 to vector<8x128xf32>
    %63 = arith.addf %62, %61 : vector<8x128xf32>
    %64 = arith.divf %62, %63 : vector<8x128xf32>
    %65 = vector.extract_strided_slice %46 {offsets = [0, 256], sizes = [8, 128], strides = [1, 1]} : vector<8x384xf32> to vector<8x128xf32>
    %66 = vector.extract_strided_slice %48 {offsets = [0, 256], sizes = [8, 128], strides = [1, 1]} : vector<8x384xf32> to vector<8x128xf32>
    %67 = arith.mulf %56, %66 : vector<8x128xf32>
    %68 = arith.addf %65, %67 : vector<8x128xf32>
    %69 = math.tanh %68 : vector<8x128xf32>
    %cst_25 = arith.constant 1.000000e+00 : f32
    %70 = vector.broadcast %cst_25 : f32 to vector<8x128xf32>
    %71 = arith.subf %70, %64 : vector<8x128xf32>
    %72 = arith.mulf %71, %69 : vector<8x128xf32>
    %73 = arith.mulf %64, %44 : vector<8x128xf32>
    %74 = arith.addf %72, %73 : vector<8x128xf32>
    %c8 = arith.constant 8 : index
    %c0_26 = arith.constant 0 : index
    %75 = vector.load %arg11[%c8, %c0_26] : memref<64x128xf32, #tpu.memory_space<vmem>>, vector<8x128xf32>
    tpu.vector_store %arg11[%c8, %c0_26], %74 {strides = array<i32>} : memref<64x128xf32, #tpu.memory_space<vmem>>, vector<8x128xf32>,
    %76 = vector.extract_strided_slice %9 {offsets = [16, 0], sizes = [8, 384], strides = [1, 1]} : vector<64x384xf32> to vector<8x384xf32>
    %cst_27 = arith.constant dense<0.000000e+00> : vector<8x384xf32>
    %77 = tpu.matmul %74, %4, %cst_27 {dimension_numbers = #tpu.dot_dimension_numbers<[1], [0], [0], [1], [0, 0, 1, 1], [], []>} : vector<8x128xf32>, vector<128x384xf32>, vector<8x384xf32> -> vector<8x384xf32>
    %78 = arith.addf %77, %13 : vector<8x384xf32>
    %79 = vector.extract_strided_slice %76 {offsets = [0, 0], sizes = [8, 128], strides = [1, 1]} : vector<8x384xf32> to vector<8x128xf32>
    %80 = vector.extract_strided_slice %78 {offsets = [0, 0], sizes = [8, 128], strides = [1, 1]} : vector<8x384xf32> to vector<8x128xf32>
    %81 = arith.addf %79, %80 : vector<8x128xf32>
    %82 = arith.negf %81 : vector<8x128xf32>
    %83 = math.exp %82 : vector<8x128xf32>
    %cst_28 = arith.constant 1.000000e+00 : f32
    %84 = vector.broadcast %cst_28 : f32 to vector<8x128xf32>
    %85 = arith.addf %84, %83 : vector<8x128xf32>
    %86 = arith.divf %84, %85 : vector<8x128xf32>
    %87 = vector.extract_strided_slice %76 {offsets = [0, 128], sizes = [8, 128], strides = [1, 1]} : vector<8x384xf32> to vector<8x128xf32>
    %88 = vector.extract_strided_slice %78 {offsets = [0, 128], sizes = [8, 128], strides = [1, 1]} : vector<8x384xf32> to vector<8x128xf32>
    %89 = arith.addf %87, %88 : vector<8x128xf32>
    %90 = arith.negf %89 : vector<8x128xf32>
    %91 = math.exp %90 : vector<8x128xf32>
    %cst_29 = arith.constant 1.000000e+00 : f32
    %92 = vector.broadcast %cst_29 : f32 to vector<8x128xf32>
    %93 = arith.addf %92, %91 : vector<8x128xf32>
    %94 = arith.divf %92, %93 : vector<8x128xf32>
    %95 = vector.extract_strided_slice %76 {offsets = [0, 256], sizes = [8, 128], strides = [1, 1]} : vector<8x384xf32> to vector<8x128xf32>
    %96 = vector.extract_strided_slice %78 {offsets = [0, 256], sizes = [8, 128], strides = [1, 1]} : vector<8x384xf32> to vector<8x128xf32>
    %97 = arith.mulf %86, %96 : vector<8x128xf32>
    %98 = arith.addf %95, %97 : vector<8x128xf32>
    %99 = math.tanh %98 : vector<8x128xf32>
    %cst_30 = arith.constant 1.000000e+00 : f32
    %100 = vector.broadcast %cst_30 : f32 to vector<8x128xf32>
    %101 = arith.subf %100, %94 : vector<8x128xf32>
    %102 = arith.mulf %101, %99 : vector<8x128xf32>
    %103 = arith.mulf %94, %74 : vector<8x128xf32>
    %104 = arith.addf %102, %103 : vector<8x128xf32>
    %c16 = arith.constant 16 : index
    %c0_31 = arith.constant 0 : index
    %105 = vector.load %arg11[%c16, %c0_31] : memref<64x128xf32, #tpu.memory_space<vmem>>, vector<8x128xf32>
    tpu.vector_store %arg11[%c16, %c0_31], %104 {strides = array<i32>} : memref<64x128xf32, #tpu.memory_space<vmem>>, vector<8x128xf32>,
    %106 = vector.extract_strided_slice %9 {offsets = [24, 0], sizes = [8, 384], strides = [1, 1]} : vector<64x384xf32> to vector<8x384xf32>
    %cst_32 = arith.constant dense<0.000000e+00> : vector<8x384xf32>
    %107 = tpu.matmul %104, %4, %cst_32 {dimension_numbers = #tpu.dot_dimension_numbers<[1], [0], [0], [1], [0, 0, 1, 1], [], []>} : vector<8x128xf32>, vector<128x384xf32>, vector<8x384xf32> -> vector<8x384xf32>
    %108 = arith.addf %107, %13 : vector<8x384xf32>
    %109 = vector.extract_strided_slice %106 {offsets = [0, 0], sizes = [8, 128], strides = [1, 1]} : vector<8x384xf32> to vector<8x128xf32>
    %110 = vector.extract_strided_slice %108 {offsets = [0, 0], sizes = [8, 128], strides = [1, 1]} : vector<8x384xf32> to vector<8x128xf32>
    %111 = arith.addf %109, %110 : vector<8x128xf32>
    %112 = arith.negf %111 : vector<8x128xf32>
    %113 = math.exp %112 : vector<8x128xf32>
    %cst_33 = arith.constant 1.000000e+00 : f32
    %114 = vector.broadcast %cst_33 : f32 to vector<8x128xf32>
    %115 = arith.addf %114, %113 : vector<8x128xf32>
    %116 = arith.divf %114, %115 : vector<8x128xf32>
    %117 = vector.extract_strided_slice %106 {offsets = [0, 128], sizes = [8, 128], strides = [1, 1]} : vector<8x384xf32> to vector<8x128xf32>
    %118 = vector.extract_strided_slice %108 {offsets = [0, 128], sizes = [8, 128], strides = [1, 1]} : vector<8x384xf32> to vector<8x128xf32>
    %119 = arith.addf %117, %118 : vector<8x128xf32>
    %120 = arith.negf %119 : vector<8x128xf32>
    %121 = math.exp %120 : vector<8x128xf32>
    %cst_34 = arith.constant 1.000000e+00 : f32
    %122 = vector.broadcast %cst_34 : f32 to vector<8x128xf32>
    %123 = arith.addf %122, %121 : vector<8x128xf32>
    %124 = arith.divf %122, %123 : vector<8x128xf32>
    %125 = vector.extract_strided_slice %106 {offsets = [0, 256], sizes = [8, 128], strides = [1, 1]} : vector<8x384xf32> to vector<8x128xf32>
    %126 = vector.extract_strided_slice %108 {offsets = [0, 256], sizes = [8, 128], strides = [1, 1]} : vector<8x384xf32> to vector<8x128xf32>
    %127 = arith.mulf %116, %126 : vector<8x128xf32>
    %128 = arith.addf %125, %127 : vector<8x128xf32>
    %129 = math.tanh %128 : vector<8x128xf32>
    %cst_35 = arith.constant 1.000000e+00 : f32
    %130 = vector.broadcast %cst_35 : f32 to vector<8x128xf32>
    %131 = arith.subf %130, %124 : vector<8x128xf32>
    %132 = arith.mulf %131, %129 : vector<8x128xf32>
    %133 = arith.mulf %124, %104 : vector<8x128xf32>
    %134 = arith.addf %132, %133 : vector<8x128xf32>
    %c24 = arith.constant 24 : index
    %c0_36 = arith.constant 0 : index
    %135 = vector.load %arg11[%c24, %c0_36] : memref<64x128xf32, #tpu.memory_space<vmem>>, vector<8x128xf32>
    tpu.vector_store %arg11[%c24, %c0_36], %134 {strides = array<i32>} : memref<64x128xf32, #tpu.memory_space<vmem>>, vector<8x128xf32>,
    %136 = vector.extract_strided_slice %9 {offsets = [32, 0], sizes = [8, 384], strides = [1, 1]} : vector<64x384xf32> to vector<8x384xf32>
    %cst_37 = arith.constant dense<0.000000e+00> : vector<8x384xf32>
    %137 = tpu.matmul %134, %4, %cst_37 {dimension_numbers = #tpu.dot_dimension_numbers<[1], [0], [0], [1], [0, 0, 1, 1], [], []>} : vector<8x128xf32>, vector<128x384xf32>, vector<8x384xf32> -> vector<8x384xf32>
    %138 = arith.addf %137, %13 : vector<8x384xf32>
    %139 = vector.extract_strided_slice %136 {offsets = [0, 0], sizes = [8, 128], strides = [1, 1]} : vector<8x384xf32> to vector<8x128xf32>
    %140 = vector.extract_strided_slice %138 {offsets = [0, 0], sizes = [8, 128], strides = [1, 1]} : vector<8x384xf32> to vector<8x128xf32>
    %141 = arith.addf %139, %140 : vector<8x128xf32>
    %142 = arith.negf %141 : vector<8x128xf32>
    %143 = math.exp %142 : vector<8x128xf32>
    %cst_38 = arith.constant 1.000000e+00 : f32
    %144 = vector.broadcast %cst_38 : f32 to vector<8x128xf32>
    %145 = arith.addf %144, %143 : vector<8x128xf32>
    %146 = arith.divf %144, %145 : vector<8x128xf32>
    %147 = vector.extract_strided_slice %136 {offsets = [0, 128], sizes = [8, 128], strides = [1, 1]} : vector<8x384xf32> to vector<8x128xf32>
    %148 = vector.extract_strided_slice %138 {offsets = [0, 128], sizes = [8, 128], strides = [1, 1]} : vector<8x384xf32> to vector<8x128xf32>
    %149 = arith.addf %147, %148 : vector<8x128xf32>
    %150 = arith.negf %149 : vector<8x128xf32>
    %151 = math.exp %150 : vector<8x128xf32>
    %cst_39 = arith.constant 1.000000e+00 : f32
    %152 = vector.broadcast %cst_39 : f32 to vector<8x128xf32>
    %153 = arith.addf %152, %151 : vector<8x128xf32>
    %154 = arith.divf %152, %153 : vector<8x128xf32>
    %155 = vector.extract_strided_slice %136 {offsets = [0, 256], sizes = [8, 128], strides = [1, 1]} : vector<8x384xf32> to vector<8x128xf32>
    %156 = vector.extract_strided_slice %138 {offsets = [0, 256], sizes = [8, 128], strides = [1, 1]} : vector<8x384xf32> to vector<8x128xf32>
    %157 = arith.mulf %146, %156 : vector<8x128xf32>
    %158 = arith.addf %155, %157 : vector<8x128xf32>
    %159 = math.tanh %158 : vector<8x128xf32>
    %cst_40 = arith.constant 1.000000e+00 : f32
    %160 = vector.broadcast %cst_40 : f32 to vector<8x128xf32>
    %161 = arith.subf %160, %154 : vector<8x128xf32>
    %162 = arith.mulf %161, %159 : vector<8x128xf32>
    %163 = arith.mulf %154, %134 : vector<8x128xf32>
    %164 = arith.addf %162, %163 : vector<8x128xf32>
    %c32 = arith.constant 32 : index
    %c0_41 = arith.constant 0 : index
    %165 = vector.load %arg11[%c32, %c0_41] : memref<64x128xf32, #tpu.memory_space<vmem>>, vector<8x128xf32>
    tpu.vector_store %arg11[%c32, %c0_41], %164 {strides = array<i32>} : memref<64x128xf32, #tpu.memory_space<vmem>>, vector<8x128xf32>,
    %166 = vector.extract_strided_slice %9 {offsets = [40, 0], sizes = [8, 384], strides = [1, 1]} : vector<64x384xf32> to vector<8x384xf32>
    %cst_42 = arith.constant dense<0.000000e+00> : vector<8x384xf32>
    %167 = tpu.matmul %164, %4, %cst_42 {dimension_numbers = #tpu.dot_dimension_numbers<[1], [0], [0], [1], [0, 0, 1, 1], [], []>} : vector<8x128xf32>, vector<128x384xf32>, vector<8x384xf32> -> vector<8x384xf32>
    %168 = arith.addf %167, %13 : vector<8x384xf32>
    %169 = vector.extract_strided_slice %166 {offsets = [0, 0], sizes = [8, 128], strides = [1, 1]} : vector<8x384xf32> to vector<8x128xf32>
    %170 = vector.extract_strided_slice %168 {offsets = [0, 0], sizes = [8, 128], strides = [1, 1]} : vector<8x384xf32> to vector<8x128xf32>
    %171 = arith.addf %169, %170 : vector<8x128xf32>
    %172 = arith.negf %171 : vector<8x128xf32>
    %173 = math.exp %172 : vector<8x128xf32>
    %cst_43 = arith.constant 1.000000e+00 : f32
    %174 = vector.broadcast %cst_43 : f32 to vector<8x128xf32>
    %175 = arith.addf %174, %173 : vector<8x128xf32>
    %176 = arith.divf %174, %175 : vector<8x128xf32>
    %177 = vector.extract_strided_slice %166 {offsets = [0, 128], sizes = [8, 128], strides = [1, 1]} : vector<8x384xf32> to vector<8x128xf32>
    %178 = vector.extract_strided_slice %168 {offsets = [0, 128], sizes = [8, 128], strides = [1, 1]} : vector<8x384xf32> to vector<8x128xf32>
    %179 = arith.addf %177, %178 : vector<8x128xf32>
    %180 = arith.negf %179 : vector<8x128xf32>
    %181 = math.exp %180 : vector<8x128xf32>
    %cst_44 = arith.constant 1.000000e+00 : f32
    %182 = vector.broadcast %cst_44 : f32 to vector<8x128xf32>
    %183 = arith.addf %182, %181 : vector<8x128xf32>
    %184 = arith.divf %182, %183 : vector<8x128xf32>
    %185 = vector.extract_strided_slice %166 {offsets = [0, 256], sizes = [8, 128], strides = [1, 1]} : vector<8x384xf32> to vector<8x128xf32>
    %186 = vector.extract_strided_slice %168 {offsets = [0, 256], sizes = [8, 128], strides = [1, 1]} : vector<8x384xf32> to vector<8x128xf32>
    %187 = arith.mulf %176, %186 : vector<8x128xf32>
    %188 = arith.addf %185, %187 : vector<8x128xf32>
    %189 = math.tanh %188 : vector<8x128xf32>
    %cst_45 = arith.constant 1.000000e+00 : f32
    %190 = vector.broadcast %cst_45 : f32 to vector<8x128xf32>
    %191 = arith.subf %190, %184 : vector<8x128xf32>
    %192 = arith.mulf %191, %189 : vector<8x128xf32>
    %193 = arith.mulf %184, %164 : vector<8x128xf32>
    %194 = arith.addf %192, %193 : vector<8x128xf32>
    %c40 = arith.constant 40 : index
    %c0_46 = arith.constant 0 : index
    %195 = vector.load %arg11[%c40, %c0_46] : memref<64x128xf32, #tpu.memory_space<vmem>>, vector<8x128xf32>
    tpu.vector_store %arg11[%c40, %c0_46], %194 {strides = array<i32>} : memref<64x128xf32, #tpu.memory_space<vmem>>, vector<8x128xf32>,
    %196 = vector.extract_strided_slice %9 {offsets = [48, 0], sizes = [8, 384], strides = [1, 1]} : vector<64x384xf32> to vector<8x384xf32>
    %cst_47 = arith.constant dense<0.000000e+00> : vector<8x384xf32>
    %197 = tpu.matmul %194, %4, %cst_47 {dimension_numbers = #tpu.dot_dimension_numbers<[1], [0], [0], [1], [0, 0, 1, 1], [], []>} : vector<8x128xf32>, vector<128x384xf32>, vector<8x384xf32> -> vector<8x384xf32>
    %198 = arith.addf %197, %13 : vector<8x384xf32>
    %199 = vector.extract_strided_slice %196 {offsets = [0, 0], sizes = [8, 128], strides = [1, 1]} : vector<8x384xf32> to vector<8x128xf32>
    %200 = vector.extract_strided_slice %198 {offsets = [0, 0], sizes = [8, 128], strides = [1, 1]} : vector<8x384xf32> to vector<8x128xf32>
    %201 = arith.addf %199, %200 : vector<8x128xf32>
    %202 = arith.negf %201 : vector<8x128xf32>
    %203 = math.exp %202 : vector<8x128xf32>
    %cst_48 = arith.constant 1.000000e+00 : f32
    %204 = vector.broadcast %cst_48 : f32 to vector<8x128xf32>
    %205 = arith.addf %204, %203 : vector<8x128xf32>
    %206 = arith.divf %204, %205 : vector<8x128xf32>
    %207 = vector.extract_strided_slice %196 {offsets = [0, 128], sizes = [8, 128], strides = [1, 1]} : vector<8x384xf32> to vector<8x128xf32>
    %208 = vector.extract_strided_slice %198 {offsets = [0, 128], sizes = [8, 128], strides = [1, 1]} : vector<8x384xf32> to vector<8x128xf32>
    %209 = arith.addf %207, %208 : vector<8x128xf32>
    %210 = arith.negf %209 : vector<8x128xf32>
    %211 = math.exp %210 : vector<8x128xf32>
    %cst_49 = arith.constant 1.000000e+00 : f32
    %212 = vector.broadcast %cst_49 : f32 to vector<8x128xf32>
    %213 = arith.addf %212, %211 : vector<8x128xf32>
    %214 = arith.divf %212, %213 : vector<8x128xf32>
    %215 = vector.extract_strided_slice %196 {offsets = [0, 256], sizes = [8, 128], strides = [1, 1]} : vector<8x384xf32> to vector<8x128xf32>
    %216 = vector.extract_strided_slice %198 {offsets = [0, 256], sizes = [8, 128], strides = [1, 1]} : vector<8x384xf32> to vector<8x128xf32>
    %217 = arith.mulf %206, %216 : vector<8x128xf32>
    %218 = arith.addf %215, %217 : vector<8x128xf32>
    %219 = math.tanh %218 : vector<8x128xf32>
    %cst_50 = arith.constant 1.000000e+00 : f32
    %220 = vector.broadcast %cst_50 : f32 to vector<8x128xf32>
    %221 = arith.subf %220, %214 : vector<8x128xf32>
    %222 = arith.mulf %221, %219 : vector<8x128xf32>
    %223 = arith.mulf %214, %194 : vector<8x128xf32>
    %224 = arith.addf %222, %223 : vector<8x128xf32>
    %c48 = arith.constant 48 : index
    %c0_51 = arith.constant 0 : index
    %225 = vector.load %arg11[%c48, %c0_51] : memref<64x128xf32, #tpu.memory_space<vmem>>, vector<8x128xf32>
    tpu.vector_store %arg11[%c48, %c0_51], %224 {strides = array<i32>} : memref<64x128xf32, #tpu.memory_space<vmem>>, vector<8x128xf32>,
    %226 = vector.extract_strided_slice %9 {offsets = [56, 0], sizes = [8, 384], strides = [1, 1]} : vector<64x384xf32> to vector<8x384xf32>
    %cst_52 = arith.constant dense<0.000000e+00> : vector<8x384xf32>
    %227 = tpu.matmul %224, %4, %cst_52 {dimension_numbers = #tpu.dot_dimension_numbers<[1], [0], [0], [1], [0, 0, 1, 1], [], []>} : vector<8x128xf32>, vector<128x384xf32>, vector<8x384xf32> -> vector<8x384xf32>
    %228 = arith.addf %227, %13 : vector<8x384xf32>
    %229 = vector.extract_strided_slice %226 {offsets = [0, 0], sizes = [8, 128], strides = [1, 1]} : vector<8x384xf32> to vector<8x128xf32>
    %230 = vector.extract_strided_slice %228 {offsets = [0, 0], sizes = [8, 128], strides = [1, 1]} : vector<8x384xf32> to vector<8x128xf32>
    %231 = arith.addf %229, %230 : vector<8x128xf32>
    %232 = arith.negf %231 : vector<8x128xf32>
    %233 = math.exp %232 : vector<8x128xf32>
    %cst_53 = arith.constant 1.000000e+00 : f32
    %234 = vector.broadcast %cst_53 : f32 to vector<8x128xf32>
    %235 = arith.addf %234, %233 : vector<8x128xf32>
    %236 = arith.divf %234, %235 : vector<8x128xf32>
    %237 = vector.extract_strided_slice %226 {offsets = [0, 128], sizes = [8, 128], strides = [1, 1]} : vector<8x384xf32> to vector<8x128xf32>
    %238 = vector.extract_strided_slice %228 {offsets = [0, 128], sizes = [8, 128], strides = [1, 1]} : vector<8x384xf32> to vector<8x128xf32>
    %239 = arith.addf %237, %238 : vector<8x128xf32>
    %240 = arith.negf %239 : vector<8x128xf32>
    %241 = math.exp %240 : vector<8x128xf32>
    %cst_54 = arith.constant 1.000000e+00 : f32
    %242 = vector.broadcast %cst_54 : f32 to vector<8x128xf32>
    %243 = arith.addf %242, %241 : vector<8x128xf32>
    %244 = arith.divf %242, %243 : vector<8x128xf32>
    %245 = vector.extract_strided_slice %226 {offsets = [0, 256], sizes = [8, 128], strides = [1, 1]} : vector<8x384xf32> to vector<8x128xf32>
    %246 = vector.extract_strided_slice %228 {offsets = [0, 256], sizes = [8, 128], strides = [1, 1]} : vector<8x384xf32> to vector<8x128xf32>
    %247 = arith.mulf %236, %246 : vector<8x128xf32>
    %248 = arith.addf %245, %247 : vector<8x128xf32>
    %249 = math.tanh %248 : vector<8x128xf32>
    %cst_55 = arith.constant 1.000000e+00 : f32
    %250 = vector.broadcast %cst_55 : f32 to vector<8x128xf32>
    %251 = arith.subf %250, %244 : vector<8x128xf32>
    %252 = arith.mulf %251, %249 : vector<8x128xf32>
    %253 = arith.mulf %244, %224 : vector<8x128xf32>
    %254 = arith.addf %252, %253 : vector<8x128xf32>
    %c56 = arith.constant 56 : index
    %c0_56 = arith.constant 0 : index
    %255 = vector.load %arg11[%c56, %c0_56] : memref<64x128xf32, #tpu.memory_space<vmem>>, vector<8x128xf32>
    tpu.vector_store %arg11[%c56, %c0_56], %254 {strides = array<i32>} : memref<64x128xf32, #tpu.memory_space<vmem>>, vector<8x128xf32>,
    %c0_57 = arith.constant 0 : index
    %c0_58 = arith.constant 0 : index
    %256 = vector.load %arg11[%c0_57, %c0_58] : memref<64x128xf32, #tpu.memory_space<vmem>>, vector<64x128xf32>
    %c1 = arith.constant 1 : index
    %c0_59 = arith.constant 0 : index
    %c0_60 = arith.constant 0 : index
    %257 = vector.load %arg2[%c1, %c0_59, %c0_60] : memref<2x128x384xf32, #tpu.memory_space<vmem>>, vector<1x128x384xf32>
    %258 = vector.shape_cast %257 : vector<1x128x384xf32> to vector<128x384xf32>
    %c1_61 = arith.constant 1 : index
    %c0_62 = arith.constant 0 : index
    %c0_63 = arith.constant 0 : index
    %259 = vector.load %arg3[%c1_61, %c0_62, %c0_63] : memref<2x128x384xf32, #tpu.memory_space<vmem>>, vector<1x128x384xf32>
    %260 = vector.shape_cast %259 : vector<1x128x384xf32> to vector<128x384xf32>
    %cst_64 = arith.constant dense<0.000000e+00> : vector<64x384xf32>
    %261 = tpu.matmul %256, %258, %cst_64 {dimension_numbers = #tpu.dot_dimension_numbers<[1], [0], [0], [1], [0, 0, 1, 1], [], []>} : vector<64x128xf32>, vector<128x384xf32>, vector<64x384xf32> -> vector<64x384xf32>
    %c1_65 = arith.constant 1 : index
    %c0_66 = arith.constant 0 : index
    %c0_67 = arith.constant 0 : index
    %262 = vector.load %arg4[%c1_65, %c0_66, %c0_67] : memref<2x1x384xf32, #tpu.memory_space<vmem>>, vector<1x1x384xf32>
    %263 = vector.shape_cast %262 : vector<1x1x384xf32> to vector<1x384xf32>
    %264 = vector.broadcast %263 : vector<1x384xf32> to vector<64x384xf32>
    %265 = arith.addf %261, %264 : vector<64x384xf32>
    %c1_68 = arith.constant 1 : index
    %c0_69 = arith.constant 0 : index
    %c0_70 = arith.constant 0 : index
    %266 = vector.load %arg5[%c1_68, %c0_69, %c0_70] : memref<2x1x384xf32, #tpu.memory_space<vmem>>, vector<1x1x384xf32>
    %267 = vector.shape_cast %266 : vector<1x1x384xf32> to vector<1x384xf32>
    %268 = vector.shape_cast %267 : vector<1x384xf32> to vector<1x384xf32>
    %269 = vector.broadcast %268 : vector<1x384xf32> to vector<8x384xf32>
    %c1_71 = arith.constant 1 : index
    %c0_72 = arith.constant 0 : index
    %c0_73 = arith.constant 0 : index
    %270 = vector.load %arg1[%c1_71, %c0_72, %c0_73] : memref<2x8x128xf32, #tpu.memory_space<vmem>>, vector<1x8x128xf32>
    %271 = vector.shape_cast %270 : vector<1x8x128xf32> to vector<8x128xf32>
    %272 = vector.extract_strided_slice %265 {offsets = [0, 0], sizes = [8, 384], strides = [1, 1]} : vector<64x384xf32> to vector<8x384xf32>
    %cst_74 = arith.constant dense<0.000000e+00> : vector<8x384xf32>
    %273 = tpu.matmul %271, %260, %cst_74 {dimension_numbers = #tpu.dot_dimension_numbers<[1], [0], [0], [1], [0, 0, 1, 1], [], []>} : vector<8x128xf32>, vector<128x384xf32>, vector<8x384xf32> -> vector<8x384xf32>
    %274 = arith.addf %273, %269 : vector<8x384xf32>
    %275 = vector.extract_strided_slice %272 {offsets = [0, 0], sizes = [8, 128], strides = [1, 1]} : vector<8x384xf32> to vector<8x128xf32>
    %276 = vector.extract_strided_slice %274 {offsets = [0, 0], sizes = [8, 128], strides = [1, 1]} : vector<8x384xf32> to vector<8x128xf32>
    %277 = arith.addf %275, %276 : vector<8x128xf32>
    %278 = arith.negf %277 : vector<8x128xf32>
    %279 = math.exp %278 : vector<8x128xf32>
    %cst_75 = arith.constant 1.000000e+00 : f32
    %280 = vector.broadcast %cst_75 : f32 to vector<8x128xf32>
    %281 = arith.addf %280, %279 : vector<8x128xf32>
    %282 = arith.divf %280, %281 : vector<8x128xf32>
    %283 = vector.extract_strided_slice %272 {offsets = [0, 128], sizes = [8, 128], strides = [1, 1]} : vector<8x384xf32> to vector<8x128xf32>
    %284 = vector.extract_strided_slice %274 {offsets = [0, 128], sizes = [8, 128], strides = [1, 1]} : vector<8x384xf32> to vector<8x128xf32>
    %285 = arith.addf %283, %284 : vector<8x128xf32>
    %286 = arith.negf %285 : vector<8x128xf32>
    %287 = math.exp %286 : vector<8x128xf32>
    %cst_76 = arith.constant 1.000000e+00 : f32
    %288 = vector.broadcast %cst_76 : f32 to vector<8x128xf32>
    %289 = arith.addf %288, %287 : vector<8x128xf32>
    %290 = arith.divf %288, %289 : vector<8x128xf32>
    %291 = vector.extract_strided_slice %272 {offsets = [0, 256], sizes = [8, 128], strides = [1, 1]} : vector<8x384xf32> to vector<8x128xf32>
    %292 = vector.extract_strided_slice %274 {offsets = [0, 256], sizes = [8, 128], strides = [1, 1]} : vector<8x384xf32> to vector<8x128xf32>
    %293 = arith.mulf %282, %292 : vector<8x128xf32>
    %294 = arith.addf %291, %293 : vector<8x128xf32>
    %295 = math.tanh %294 : vector<8x128xf32>
    %cst_77 = arith.constant 1.000000e+00 : f32
    %296 = vector.broadcast %cst_77 : f32 to vector<8x128xf32>
    %297 = arith.subf %296, %290 : vector<8x128xf32>
    %298 = arith.mulf %297, %295 : vector<8x128xf32>
    %299 = arith.mulf %290, %271 : vector<8x128xf32>
    %300 = arith.addf %298, %299 : vector<8x128xf32>
    %301 = vector.extract_strided_slice %265 {offsets = [8, 0], sizes = [8, 384], strides = [1, 1]} : vector<64x384xf32> to vector<8x384xf32>
    %cst_78 = arith.constant dense<0.000000e+00> : vector<8x384xf32>
    %302 = tpu.matmul %300, %260, %cst_78 {dimension_numbers = #tpu.dot_dimension_numbers<[1], [0], [0], [1], [0, 0, 1, 1], [], []>} : vector<8x128xf32>, vector<128x384xf32>, vector<8x384xf32> -> vector<8x384xf32>
    %303 = arith.addf %302, %269 : vector<8x384xf32>
    %304 = vector.extract_strided_slice %301 {offsets = [0, 0], sizes = [8, 128], strides = [1, 1]} : vector<8x384xf32> to vector<8x128xf32>
    %305 = vector.extract_strided_slice %303 {offsets = [0, 0], sizes = [8, 128], strides = [1, 1]} : vector<8x384xf32> to vector<8x128xf32>
    %306 = arith.addf %304, %305 : vector<8x128xf32>
    %307 = arith.negf %306 : vector<8x128xf32>
    %308 = math.exp %307 : vector<8x128xf32>
    %cst_79 = arith.constant 1.000000e+00 : f32
    %309 = vector.broadcast %cst_79 : f32 to vector<8x128xf32>
    %310 = arith.addf %309, %308 : vector<8x128xf32>
    %311 = arith.divf %309, %310 : vector<8x128xf32>
    %312 = vector.extract_strided_slice %301 {offsets = [0, 128], sizes = [8, 128], strides = [1, 1]} : vector<8x384xf32> to vector<8x128xf32>
    %313 = vector.extract_strided_slice %303 {offsets = [0, 128], sizes = [8, 128], strides = [1, 1]} : vector<8x384xf32> to vector<8x128xf32>
    %314 = arith.addf %312, %313 : vector<8x128xf32>
    %315 = arith.negf %314 : vector<8x128xf32>
    %316 = math.exp %315 : vector<8x128xf32>
    %cst_80 = arith.constant 1.000000e+00 : f32
    %317 = vector.broadcast %cst_80 : f32 to vector<8x128xf32>
    %318 = arith.addf %317, %316 : vector<8x128xf32>
    %319 = arith.divf %317, %318 : vector<8x128xf32>
    %320 = vector.extract_strided_slice %301 {offsets = [0, 256], sizes = [8, 128], strides = [1, 1]} : vector<8x384xf32> to vector<8x128xf32>
    %321 = vector.extract_strided_slice %303 {offsets = [0, 256], sizes = [8, 128], strides = [1, 1]} : vector<8x384xf32> to vector<8x128xf32>
    %322 = arith.mulf %311, %321 : vector<8x128xf32>
    %323 = arith.addf %320, %322 : vector<8x128xf32>
    %324 = math.tanh %323 : vector<8x128xf32>
    %cst_81 = arith.constant 1.000000e+00 : f32
    %325 = vector.broadcast %cst_81 : f32 to vector<8x128xf32>
    %326 = arith.subf %325, %319 : vector<8x128xf32>
    %327 = arith.mulf %326, %324 : vector<8x128xf32>
    %328 = arith.mulf %319, %300 : vector<8x128xf32>
    %329 = arith.addf %327, %328 : vector<8x128xf32>
    %330 = vector.extract_strided_slice %265 {offsets = [16, 0], sizes = [8, 384], strides = [1, 1]} : vector<64x384xf32> to vector<8x384xf32>
    %cst_82 = arith.constant dense<0.000000e+00> : vector<8x384xf32>
    %331 = tpu.matmul %329, %260, %cst_82 {dimension_numbers = #tpu.dot_dimension_numbers<[1], [0], [0], [1], [0, 0, 1, 1], [], []>} : vector<8x128xf32>, vector<128x384xf32>, vector<8x384xf32> -> vector<8x384xf32>
    %332 = arith.addf %331, %269 : vector<8x384xf32>
    %333 = vector.extract_strided_slice %330 {offsets = [0, 0], sizes = [8, 128], strides = [1, 1]} : vector<8x384xf32> to vector<8x128xf32>
    %334 = vector.extract_strided_slice %332 {offsets = [0, 0], sizes = [8, 128], strides = [1, 1]} : vector<8x384xf32> to vector<8x128xf32>
    %335 = arith.addf %333, %334 : vector<8x128xf32>
    %336 = arith.negf %335 : vector<8x128xf32>
    %337 = math.exp %336 : vector<8x128xf32>
    %cst_83 = arith.constant 1.000000e+00 : f32
    %338 = vector.broadcast %cst_83 : f32 to vector<8x128xf32>
    %339 = arith.addf %338, %337 : vector<8x128xf32>
    %340 = arith.divf %338, %339 : vector<8x128xf32>
    %341 = vector.extract_strided_slice %330 {offsets = [0, 128], sizes = [8, 128], strides = [1, 1]} : vector<8x384xf32> to vector<8x128xf32>
    %342 = vector.extract_strided_slice %332 {offsets = [0, 128], sizes = [8, 128], strides = [1, 1]} : vector<8x384xf32> to vector<8x128xf32>
    %343 = arith.addf %341, %342 : vector<8x128xf32>
    %344 = arith.negf %343 : vector<8x128xf32>
    %345 = math.exp %344 : vector<8x128xf32>
    %cst_84 = arith.constant 1.000000e+00 : f32
    %346 = vector.broadcast %cst_84 : f32 to vector<8x128xf32>
    %347 = arith.addf %346, %345 : vector<8x128xf32>
    %348 = arith.divf %346, %347 : vector<8x128xf32>
    %349 = vector.extract_strided_slice %330 {offsets = [0, 256], sizes = [8, 128], strides = [1, 1]} : vector<8x384xf32> to vector<8x128xf32>
    %350 = vector.extract_strided_slice %332 {offsets = [0, 256], sizes = [8, 128], strides = [1, 1]} : vector<8x384xf32> to vector<8x128xf32>
    %351 = arith.mulf %340, %350 : vector<8x128xf32>
    %352 = arith.addf %349, %351 : vector<8x128xf32>
    %353 = math.tanh %352 : vector<8x128xf32>
    %cst_85 = arith.constant 1.000000e+00 : f32
    %354 = vector.broadcast %cst_85 : f32 to vector<8x128xf32>
    %355 = arith.subf %354, %348 : vector<8x128xf32>
    %356 = arith.mulf %355, %353 : vector<8x128xf32>
    %357 = arith.mulf %348, %329 : vector<8x128xf32>
    %358 = arith.addf %356, %357 : vector<8x128xf32>
    %359 = vector.extract_strided_slice %265 {offsets = [24, 0], sizes = [8, 384], strides = [1, 1]} : vector<64x384xf32> to vector<8x384xf32>
    %cst_86 = arith.constant dense<0.000000e+00> : vector<8x384xf32>
    %360 = tpu.matmul %358, %260, %cst_86 {dimension_numbers = #tpu.dot_dimension_numbers<[1], [0], [0], [1], [0, 0, 1, 1], [], []>} : vector<8x128xf32>, vector<128x384xf32>, vector<8x384xf32> -> vector<8x384xf32>
    %361 = arith.addf %360, %269 : vector<8x384xf32>
    %362 = vector.extract_strided_slice %359 {offsets = [0, 0], sizes = [8, 128], strides = [1, 1]} : vector<8x384xf32> to vector<8x128xf32>
    %363 = vector.extract_strided_slice %361 {offsets = [0, 0], sizes = [8, 128], strides = [1, 1]} : vector<8x384xf32> to vector<8x128xf32>
    %364 = arith.addf %362, %363 : vector<8x128xf32>
    %365 = arith.negf %364 : vector<8x128xf32>
    %366 = math.exp %365 : vector<8x128xf32>
    %cst_87 = arith.constant 1.000000e+00 : f32
    %367 = vector.broadcast %cst_87 : f32 to vector<8x128xf32>
    %368 = arith.addf %367, %366 : vector<8x128xf32>
    %369 = arith.divf %367, %368 : vector<8x128xf32>
    %370 = vector.extract_strided_slice %359 {offsets = [0, 128], sizes = [8, 128], strides = [1, 1]} : vector<8x384xf32> to vector<8x128xf32>
    %371 = vector.extract_strided_slice %361 {offsets = [0, 128], sizes = [8, 128], strides = [1, 1]} : vector<8x384xf32> to vector<8x128xf32>
    %372 = arith.addf %370, %371 : vector<8x128xf32>
    %373 = arith.negf %372 : vector<8x128xf32>
    %374 = math.exp %373 : vector<8x128xf32>
    %cst_88 = arith.constant 1.000000e+00 : f32
    %375 = vector.broadcast %cst_88 : f32 to vector<8x128xf32>
    %376 = arith.addf %375, %374 : vector<8x128xf32>
    %377 = arith.divf %375, %376 : vector<8x128xf32>
    %378 = vector.extract_strided_slice %359 {offsets = [0, 256], sizes = [8, 128], strides = [1, 1]} : vector<8x384xf32> to vector<8x128xf32>
    %379 = vector.extract_strided_slice %361 {offsets = [0, 256], sizes = [8, 128], strides = [1, 1]} : vector<8x384xf32> to vector<8x128xf32>
    %380 = arith.mulf %369, %379 : vector<8x128xf32>
    %381 = arith.addf %378, %380 : vector<8x128xf32>
    %382 = math.tanh %381 : vector<8x128xf32>
    %cst_89 = arith.constant 1.000000e+00 : f32
    %383 = vector.broadcast %cst_89 : f32 to vector<8x128xf32>
    %384 = arith.subf %383, %377 : vector<8x128xf32>
    %385 = arith.mulf %384, %382 : vector<8x128xf32>
    %386 = arith.mulf %377, %358 : vector<8x128xf32>
    %387 = arith.addf %385, %386 : vector<8x128xf32>
    %388 = vector.extract_strided_slice %265 {offsets = [32, 0], sizes = [8, 384], strides = [1, 1]} : vector<64x384xf32> to vector<8x384xf32>
    %cst_90 = arith.constant dense<0.000000e+00> : vector<8x384xf32>
    %389 = tpu.matmul %387, %260, %cst_90 {dimension_numbers = #tpu.dot_dimension_numbers<[1], [0], [0], [1], [0, 0, 1, 1], [], []>} : vector<8x128xf32>, vector<128x384xf32>, vector<8x384xf32> -> vector<8x384xf32>
    %390 = arith.addf %389, %269 : vector<8x384xf32>
    %391 = vector.extract_strided_slice %388 {offsets = [0, 0], sizes = [8, 128], strides = [1, 1]} : vector<8x384xf32> to vector<8x128xf32>
    %392 = vector.extract_strided_slice %390 {offsets = [0, 0], sizes = [8, 128], strides = [1, 1]} : vector<8x384xf32> to vector<8x128xf32>
    %393 = arith.addf %391, %392 : vector<8x128xf32>
    %394 = arith.negf %393 : vector<8x128xf32>
    %395 = math.exp %394 : vector<8x128xf32>
    %cst_91 = arith.constant 1.000000e+00 : f32
    %396 = vector.broadcast %cst_91 : f32 to vector<8x128xf32>
    %397 = arith.addf %396, %395 : vector<8x128xf32>
    %398 = arith.divf %396, %397 : vector<8x128xf32>
    %399 = vector.extract_strided_slice %388 {offsets = [0, 128], sizes = [8, 128], strides = [1, 1]} : vector<8x384xf32> to vector<8x128xf32>
    %400 = vector.extract_strided_slice %390 {offsets = [0, 128], sizes = [8, 128], strides = [1, 1]} : vector<8x384xf32> to vector<8x128xf32>
    %401 = arith.addf %399, %400 : vector<8x128xf32>
    %402 = arith.negf %401 : vector<8x128xf32>
    %403 = math.exp %402 : vector<8x128xf32>
    %cst_92 = arith.constant 1.000000e+00 : f32
    %404 = vector.broadcast %cst_92 : f32 to vector<8x128xf32>
    %405 = arith.addf %404, %403 : vector<8x128xf32>
    %406 = arith.divf %404, %405 : vector<8x128xf32>
    %407 = vector.extract_strided_slice %388 {offsets = [0, 256], sizes = [8, 128], strides = [1, 1]} : vector<8x384xf32> to vector<8x128xf32>
    %408 = vector.extract_strided_slice %390 {offsets = [0, 256], sizes = [8, 128], strides = [1, 1]} : vector<8x384xf32> to vector<8x128xf32>
    %409 = arith.mulf %398, %408 : vector<8x128xf32>
    %410 = arith.addf %407, %409 : vector<8x128xf32>
    %411 = math.tanh %410 : vector<8x128xf32>
    %cst_93 = arith.constant 1.000000e+00 : f32
    %412 = vector.broadcast %cst_93 : f32 to vector<8x128xf32>
    %413 = arith.subf %412, %406 : vector<8x128xf32>
    %414 = arith.mulf %413, %411 : vector<8x128xf32>
    %415 = arith.mulf %406, %387 : vector<8x128xf32>
    %416 = arith.addf %414, %415 : vector<8x128xf32>
    %417 = vector.extract_strided_slice %265 {offsets = [40, 0], sizes = [8, 384], strides = [1, 1]} : vector<64x384xf32> to vector<8x384xf32>
    %cst_94 = arith.constant dense<0.000000e+00> : vector<8x384xf32>
    %418 = tpu.matmul %416, %260, %cst_94 {dimension_numbers = #tpu.dot_dimension_numbers<[1], [0], [0], [1], [0, 0, 1, 1], [], []>} : vector<8x128xf32>, vector<128x384xf32>, vector<8x384xf32> -> vector<8x384xf32>
    %419 = arith.addf %418, %269 : vector<8x384xf32>
    %420 = vector.extract_strided_slice %417 {offsets = [0, 0], sizes = [8, 128], strides = [1, 1]} : vector<8x384xf32> to vector<8x128xf32>
    %421 = vector.extract_strided_slice %419 {offsets = [0, 0], sizes = [8, 128], strides = [1, 1]} : vector<8x384xf32> to vector<8x128xf32>
    %422 = arith.addf %420, %421 : vector<8x128xf32>
    %423 = arith.negf %422 : vector<8x128xf32>
    %424 = math.exp %423 : vector<8x128xf32>
    %cst_95 = arith.constant 1.000000e+00 : f32
    %425 = vector.broadcast %cst_95 : f32 to vector<8x128xf32>
    %426 = arith.addf %425, %424 : vector<8x128xf32>
    %427 = arith.divf %425, %426 : vector<8x128xf32>
    %428 = vector.extract_strided_slice %417 {offsets = [0, 128], sizes = [8, 128], strides = [1, 1]} : vector<8x384xf32> to vector<8x128xf32>
    %429 = vector.extract_strided_slice %419 {offsets = [0, 128], sizes = [8, 128], strides = [1, 1]} : vector<8x384xf32> to vector<8x128xf32>
    %430 = arith.addf %428, %429 : vector<8x128xf32>
    %431 = arith.negf %430 : vector<8x128xf32>
    %432 = math.exp %431 : vector<8x128xf32>
    %cst_96 = arith.constant 1.000000e+00 : f32
    %433 = vector.broadcast %cst_96 : f32 to vector<8x128xf32>
    %434 = arith.addf %433, %432 : vector<8x128xf32>
    %435 = arith.divf %433, %434 : vector<8x128xf32>
    %436 = vector.extract_strided_slice %417 {offsets = [0, 256], sizes = [8, 128], strides = [1, 1]} : vector<8x384xf32> to vector<8x128xf32>
    %437 = vector.extract_strided_slice %419 {offsets = [0, 256], sizes = [8, 128], strides = [1, 1]} : vector<8x384xf32> to vector<8x128xf32>
    %438 = arith.mulf %427, %437 : vector<8x128xf32>
    %439 = arith.addf %436, %438 : vector<8x128xf32>
    %440 = math.tanh %439 : vector<8x128xf32>
    %cst_97 = arith.constant 1.000000e+00 : f32
    %441 = vector.broadcast %cst_97 : f32 to vector<8x128xf32>
    %442 = arith.subf %441, %435 : vector<8x128xf32>
    %443 = arith.mulf %442, %440 : vector<8x128xf32>
    %444 = arith.mulf %435, %416 : vector<8x128xf32>
    %445 = arith.addf %443, %444 : vector<8x128xf32>
    %446 = vector.extract_strided_slice %265 {offsets = [48, 0], sizes = [8, 384], strides = [1, 1]} : vector<64x384xf32> to vector<8x384xf32>
    %cst_98 = arith.constant dense<0.000000e+00> : vector<8x384xf32>
    %447 = tpu.matmul %445, %260, %cst_98 {dimension_numbers = #tpu.dot_dimension_numbers<[1], [0], [0], [1], [0, 0, 1, 1], [], []>} : vector<8x128xf32>, vector<128x384xf32>, vector<8x384xf32> -> vector<8x384xf32>
    %448 = arith.addf %447, %269 : vector<8x384xf32>
    %449 = vector.extract_strided_slice %446 {offsets = [0, 0], sizes = [8, 128], strides = [1, 1]} : vector<8x384xf32> to vector<8x128xf32>
    %450 = vector.extract_strided_slice %448 {offsets = [0, 0], sizes = [8, 128], strides = [1, 1]} : vector<8x384xf32> to vector<8x128xf32>
    %451 = arith.addf %449, %450 : vector<8x128xf32>
    %452 = arith.negf %451 : vector<8x128xf32>
    %453 = math.exp %452 : vector<8x128xf32>
    %cst_99 = arith.constant 1.000000e+00 : f32
    %454 = vector.broadcast %cst_99 : f32 to vector<8x128xf32>
    %455 = arith.addf %454, %453 : vector<8x128xf32>
    %456 = arith.divf %454, %455 : vector<8x128xf32>
    %457 = vector.extract_strided_slice %446 {offsets = [0, 128], sizes = [8, 128], strides = [1, 1]} : vector<8x384xf32> to vector<8x128xf32>
    %458 = vector.extract_strided_slice %448 {offsets = [0, 128], sizes = [8, 128], strides = [1, 1]} : vector<8x384xf32> to vector<8x128xf32>
    %459 = arith.addf %457, %458 : vector<8x128xf32>
    %460 = arith.negf %459 : vector<8x128xf32>
    %461 = math.exp %460 : vector<8x128xf32>
    %cst_100 = arith.constant 1.000000e+00 : f32
    %462 = vector.broadcast %cst_100 : f32 to vector<8x128xf32>
    %463 = arith.addf %462, %461 : vector<8x128xf32>
    %464 = arith.divf %462, %463 : vector<8x128xf32>
    %465 = vector.extract_strided_slice %446 {offsets = [0, 256], sizes = [8, 128], strides = [1, 1]} : vector<8x384xf32> to vector<8x128xf32>
    %466 = vector.extract_strided_slice %448 {offsets = [0, 256], sizes = [8, 128], strides = [1, 1]} : vector<8x384xf32> to vector<8x128xf32>
    %467 = arith.mulf %456, %466 : vector<8x128xf32>
    %468 = arith.addf %465, %467 : vector<8x128xf32>
    %469 = math.tanh %468 : vector<8x128xf32>
    %cst_101 = arith.constant 1.000000e+00 : f32
    %470 = vector.broadcast %cst_101 : f32 to vector<8x128xf32>
    %471 = arith.subf %470, %464 : vector<8x128xf32>
    %472 = arith.mulf %471, %469 : vector<8x128xf32>
    %473 = arith.mulf %464, %445 : vector<8x128xf32>
    %474 = arith.addf %472, %473 : vector<8x128xf32>
    %475 = vector.extract_strided_slice %265 {offsets = [56, 0], sizes = [8, 384], strides = [1, 1]} : vector<64x384xf32> to vector<8x384xf32>
    %cst_102 = arith.constant dense<0.000000e+00> : vector<8x384xf32>
    %476 = tpu.matmul %474, %260, %cst_102 {dimension_numbers = #tpu.dot_dimension_numbers<[1], [0], [0], [1], [0, 0, 1, 1], [], []>} : vector<8x128xf32>, vector<128x384xf32>, vector<8x384xf32> -> vector<8x384xf32>
    %477 = arith.addf %476, %269 : vector<8x384xf32>
    %478 = vector.extract_strided_slice %475 {offsets = [0, 0], sizes = [8, 128], strides = [1, 1]} : vector<8x384xf32> to vector<8x128xf32>
    %479 = vector.extract_strided_slice %477 {offsets = [0, 0], sizes = [8, 128], strides = [1, 1]} : vector<8x384xf32> to vector<8x128xf32>
    %480 = arith.addf %478, %479 : vector<8x128xf32>
    %481 = arith.negf %480 : vector<8x128xf32>
    %482 = math.exp %481 : vector<8x128xf32>
    %cst_103 = arith.constant 1.000000e+00 : f32
    %483 = vector.broadcast %cst_103 : f32 to vector<8x128xf32>
    %484 = arith.addf %483, %482 : vector<8x128xf32>
    %485 = arith.divf %483, %484 : vector<8x128xf32>
    %486 = vector.extract_strided_slice %475 {offsets = [0, 128], sizes = [8, 128], strides = [1, 1]} : vector<8x384xf32> to vector<8x128xf32>
    %487 = vector.extract_strided_slice %477 {offsets = [0, 128], sizes = [8, 128], strides = [1, 1]} : vector<8x384xf32> to vector<8x128xf32>
    %488 = arith.addf %486, %487 : vector<8x128xf32>
    %489 = arith.negf %488 : vector<8x128xf32>
    %490 = math.exp %489 : vector<8x128xf32>
    %cst_104 = arith.constant 1.000000e+00 : f32
    %491 = vector.broadcast %cst_104 : f32 to vector<8x128xf32>
    %492 = arith.addf %491, %490 : vector<8x128xf32>
    %493 = arith.divf %491, %492 : vector<8x128xf32>
    %494 = vector.extract_strided_slice %475 {offsets = [0, 256], sizes = [8, 128], strides = [1, 1]} : vector<8x384xf32> to vector<8x128xf32>
    %495 = vector.extract_strided_slice %477 {offsets = [0, 256], sizes = [8, 128], strides = [1, 1]} : vector<8x384xf32> to vector<8x128xf32>
    %496 = arith.mulf %485, %495 : vector<8x128xf32>
    %497 = arith.addf %494, %496 : vector<8x128xf32>
    %498 = math.tanh %497 : vector<8x128xf32>
    %cst_105 = arith.constant 1.000000e+00 : f32
    %499 = vector.broadcast %cst_105 : f32 to vector<8x128xf32>
    %500 = arith.subf %499, %493 : vector<8x128xf32>
    %501 = arith.mulf %500, %498 : vector<8x128xf32>
    %502 = arith.mulf %493, %474 : vector<8x128xf32>
    %503 = arith.addf %501, %502 : vector<8x128xf32>
    %504 = arith.addf %254, %503 : vector<8x128xf32>
    %505 = vector.extract_strided_slice %504 {offsets = [0, 0], sizes = [2, 128], strides = [1, 1]} : vector<8x128xf32> to vector<2x128xf32>
    %506 = vector.extract_strided_slice %504 {offsets = [2, 0], sizes = [2, 128], strides = [1, 1]} : vector<8x128xf32> to vector<2x128xf32>
    %c0_106 = arith.constant 0 : index
    %c0_107 = arith.constant 0 : index
    %507 = vector.load %arg6[%c0_106, %c0_107] : memref<256x512xf32, #tpu.memory_space<vmem>>, vector<128x512xf32>
    %cst_108 = arith.constant dense<0.000000e+00> : vector<2x512xf32>
    %508 = tpu.matmul %505, %507, %cst_108 {dimension_numbers = #tpu.dot_dimension_numbers<[1], [0], [0], [1], [0, 0, 1, 1], [], []>} : vector<2x128xf32>, vector<128x512xf32>, vector<2x512xf32> -> vector<2x512xf32>
    %c128 = arith.constant 128 : index
    %c0_109 = arith.constant 0 : index
    %509 = vector.load %arg6[%c128, %c0_109] : memref<256x512xf32, #tpu.memory_space<vmem>>, vector<128x512xf32>
    %cst_110 = arith.constant dense<0.000000e+00> : vector<2x512xf32>
    %510 = tpu.matmul %506, %509, %cst_110 {dimension_numbers = #tpu.dot_dimension_numbers<[1], [0], [0], [1], [0, 0, 1, 1], [], []>} : vector<2x128xf32>, vector<128x512xf32>, vector<2x512xf32> -> vector<2x512xf32>
    %511 = arith.addf %508, %510 : vector<2x512xf32>
    %c0_111 = arith.constant 0 : index
    %c0_112 = arith.constant 0 : index
    %512 = vector.load %arg7[%c0_111, %c0_112] : memref<1x512xf32, #tpu.memory_space<vmem>>, vector<1x512xf32>
    %513 = vector.broadcast %512 : vector<1x512xf32> to vector<2x512xf32>
    %514 = arith.addf %511, %513 : vector<2x512xf32>
    %cst_113 = arith.constant 0.000000e+00 : f32
    %515 = vector.broadcast %cst_113 : f32 to vector<2x512xf32>
    %516 = arith.maximumf %514, %515 : vector<2x512xf32>
    %c0_114 = arith.constant 0 : index
    %c0_115 = arith.constant 0 : index
    %517 = vector.load %arg8[%c0_114, %c0_115] : memref<512x128xf32, #tpu.memory_space<vmem>>, vector<512x128xf32>
    %cst_116 = arith.constant dense<0.000000e+00> : vector<2x128xf32>
    %518 = tpu.matmul %516, %517, %cst_116 {dimension_numbers = #tpu.dot_dimension_numbers<[1], [0], [0], [1], [0, 0, 1, 1], [], []>} : vector<2x512xf32>, vector<512x128xf32>, vector<2x128xf32> -> vector<2x128xf32>
    %c0_117 = arith.constant 0 : index
    %c0_118 = arith.constant 0 : index
    %519 = vector.load %arg9[%c0_117, %c0_118] : memref<1x128xf32, #tpu.memory_space<vmem>>, vector<1x128xf32>
    %520 = vector.broadcast %519 : vector<1x128xf32> to vector<2x128xf32>
    %521 = arith.addf %518, %520 : vector<2x128xf32>
    %c0_119 = arith.constant 0 : index
    %c0_120 = arith.constant 0 : index
    %522 = vector.load %arg10[%c0_119, %c0_120] : memref<2x128xf32, #tpu.memory_space<vmem>>, vector<2x128xf32>
    tpu.vector_store %arg10[%c0_119, %c0_120], %521 {strides = array<i32>} : memref<2x128xf32, #tpu.memory_space<vmem>>, vector<2x128xf32>,
    return
  }
}

</mosaic_0001>

<llo_original>
// kernel: rnn_dp_forward.1
$region0: #{rnn_dp_forward.1}
  #allocation0 [shape = 'u32[]', space=smem, size = 0x4, offset = 0x4, fixed_abs, tag = 'smem constant byte address 0x4 - core index']
  #allocation1 [shape = 'u32[144,128]{1,0:T(1,128)}', space=vmem, size = 0x12000, scoped, tag = 'internal scratch']
  #allocation2 [shape = 'f32[64,128]{1,0:T(8,128)}', space=vmem, size = 0x8000, scoped, tag = 'scratch operand']
  %s0 = inlined_call_operand.vmem [shape: f32[64,128], index: 0, kind: input, shape index: {}]
  %s1 = inlined_call_operand.vmem [shape: f32[2,8,128], index: 1, kind: input, shape index: {}]
  %s2 = inlined_call_operand.vmem [shape: f32[2,128,384], index: 2, kind: input, shape index: {}]
  %s3 = inlined_call_operand.vmem [shape: f32[2,128,384], index: 3, kind: input, shape index: {}]
  %s4 = inlined_call_operand.vmem [shape: f32[2,1,384], index: 4, kind: input, shape index: {}]
  %s5 = inlined_call_operand.vmem [shape: f32[2,1,384], index: 5, kind: input, shape index: {}]
  %s6 = inlined_call_operand.vmem [shape: f32[256,512], index: 6, kind: input, shape index: {}]
  %s7 = inlined_call_operand.vmem [shape: f32[1,512], index: 7, kind: input, shape index: {}]
  %s8 = inlined_call_operand.vmem [shape: f32[512,128], index: 8, kind: input, shape index: {}]
  %s9 = inlined_call_operand.vmem [shape: f32[1,128], index: 9, kind: input, shape index: {}]
  %s10 = inlined_call_operand.hbm [shape: f32[2,128], index: 10, kind: output, shape index: {}]
  %s11 = sld [smem:[#allocation0]]
  $region50: #{rnn_dp_forward.1} parent=0
    _
  %s13 = ssub.s32 1, %s11
  %s14 = scalar_select 0, %s13, %s11
  $region1: #{rnn_dp_forward.1} parent=0
    #allocation3 [shape = 'u8[1024]{0}', space=vmem, size = 0x400, scoped, tag = 'output window, operand 0, single buffered']
    #allocation4 [shape = 's32[1]{0}', space=sflag, size = 0x4, scoped, tag = 'scoped memory for rnn_dp_forward.1']
    %15 = vsyncpa [#allocation4], 0
    // Predicated region
    $region2: #{rnn_dp_forward.1} parent=1 // pred_check
      _
    $region3: #{rnn_dp_forward.1} parent=1 // pred_check_branch
      %17 = sbr.rel (0) target = $region5
    $region4: #{rnn_dp_forward.1} parent=1 // pred_region
      _
    $region5: #{rnn_dp_forward.1} parent=1 // pred_fallthru
      _
    // Predicated region
    $region6: #{rnn_dp_forward.1} parent=1 // pred_check
      _
    $region7: #{rnn_dp_forward.1} parent=1 // pred_check_branch
      %19 = sbr.rel (0) target = $region9
    $region8: #{rnn_dp_forward.1} parent=1 // pred_region
      _
    $region9: #{rnn_dp_forward.1} parent=1 // pred_fallthru
      _
    // Predicated region
    $region10: #{rnn_dp_forward.1} parent=1 // pred_check
      _
    $region11: #{rnn_dp_forward.1} parent=1 // pred_check_branch
      %21 = sbr.rel (0) target = $region13
    $region12: #{rnn_dp_forward.1} parent=1 // pred_region
      _
    $region13: #{rnn_dp_forward.1} parent=1 // pred_fallthru
      _
    // Predicated region
    $region14: #{rnn_dp_forward.1} parent=1 // pred_check
      _
    $region15: #{rnn_dp_forward.1} parent=1 // pred_check_branch
      %23 = sbr.rel (0) target = $region17
    $region16: #{rnn_dp_forward.1} parent=1 // pred_region
      _
    $region17: #{rnn_dp_forward.1} parent=1 // pred_fallthru
      _
    // Predicated region
    $region18: #{rnn_dp_forward.1} parent=1 // pred_check
      _
    $region19: #{rnn_dp_forward.1} parent=1 // pred_check_branch
      %25 = sbr.rel (0) target = $region21
    $region20: #{rnn_dp_forward.1} parent=1 // pred_region
      _
    $region21: #{rnn_dp_forward.1} parent=1 // pred_fallthru
      _
    // Predicated region
    $region22: #{rnn_dp_forward.1} parent=1 // pred_check
      _
    $region23: #{rnn_dp_forward.1} parent=1 // pred_check_branch
      %27 = sbr.rel (0) target = $region25
    $region24: #{rnn_dp_forward.1} parent=1 // pred_region
      _
    $region25: #{rnn_dp_forward.1} parent=1 // pred_fallthru
      _
    // Predicated region
    $region26: #{rnn_dp_forward.1} parent=1 // pred_check
      _
    $region27: #{rnn_dp_forward.1} parent=1 // pred_check_branch
      %29 = sbr.rel (0) target = $region29
    $region28: #{rnn_dp_forward.1} parent=1 // pred_region
      _
    $region29: #{rnn_dp_forward.1} parent=1 // pred_fallthru
      _
    // Predicated region
    $region30: #{rnn_dp_forward.1} parent=1 // pred_check
      _
    $region31: #{rnn_dp_forward.1} parent=1 // pred_check_branch
      %31 = sbr.rel (0) target = $region33
    $region32: #{rnn_dp_forward.1} parent=1 // pred_region
      _
    $region33: #{rnn_dp_forward.1} parent=1 // pred_fallthru
      _
    // Predicated region
    $region34: #{rnn_dp_forward.1} parent=1 // pred_check
      _
    $region35: #{rnn_dp_forward.1} parent=1 // pred_check_branch
      %33 = sbr.rel (0) target = $region37
    $region36: #{rnn_dp_forward.1} parent=1 // pred_region
      _
    $region37: #{rnn_dp_forward.1} parent=1 // pred_fallthru
      _
    // Predicated region
    $region38: #{rnn_dp_forward.1} parent=1 // pred_check
      _
    $region39: #{rnn_dp_forward.1} parent=1 // pred_check_branch
      %35 = sbr.rel (0) target = $region41
    $region40: #{rnn_dp_forward.1} parent=1 // pred_region
      _
    $region41: #{rnn_dp_forward.1} parent=1 // pred_fallthru
      _
    %v36 = vld [vmem:[%s0] sm:$0xff]
    %v37 = vld [vmem:[%s0 + $0x8] sm:$0xff]
    %v38 = vld [vmem:[%s0 + $0x10] sm:$0xff]
    %v39 = vld [vmem:[%s0 + $0x18] sm:$0xff]
    %v40 = vld [vmem:[%s0 + $0x20] sm:$0xff]
    %v41 = vld [vmem:[%s0 + $0x28] sm:$0xff]
    %v42 = vld [vmem:[%s0 + $0x30] sm:$0xff]
    %v43 = vld [vmem:[%s0 + $0x38] sm:$0xff]
    %v44 = vld [vmem:[%s2] sm:$0xff]
    %v45 = vld [vmem:[%s2 + $0x8] sm:$0xff]
    %v46 = vld [vmem:[%s2 + $0x10] sm:$0xff]
    %v47 = vld [vmem:[%s2 + $0x18] sm:$0xff]
    %v48 = vld [vmem:[%s2 + $0x20] sm:$0xff]
    %v49 = vld [vmem:[%s2 + $0x28] sm:$0xff]
    %v50 = vld [vmem:[%s2 + $0x30] sm:$0xff]
    %v51 = vld [vmem:[%s2 + $0x38] sm:$0xff]
    %v52 = vld [vmem:[%s2 + $0x40] sm:$0xff]
    %v53 = vld [vmem:[%s2 + $0x48] sm:$0xff]
    %v54 = vld [vmem:[%s2 + $0x50] sm:$0xff]
    %v55 = vld [vmem:[%s2 + $0x58] sm:$0xff]
    %v56 = vld [vmem:[%s2 + $0x60] sm:$0xff]
    %v57 = vld [vmem:[%s2 + $0x68] sm:$0xff]
    %v58 = vld [vmem:[%s2 + $0x70] sm:$0xff]
    %v59 = vld [vmem:[%s2 + $0x78] sm:$0xff]
    %v60 = vld [vmem:[%s2 + $0x80] sm:$0xff]
    %v61 = vld [vmem:[%s2 + $0x88] sm:$0xff]
    %v62 = vld [vmem:[%s2 + $0x90] sm:$0xff]
    %v63 = vld [vmem:[%s2 + $0x98] sm:$0xff]
    %v64 = vld [vmem:[%s2 + $0xa0] sm:$0xff]
    %v65 = vld [vmem:[%s2 + $0xa8] sm:$0xff]
    %v66 = vld [vmem:[%s2 + $0xb0] sm:$0xff]
    %v67 = vld [vmem:[%s2 + $0xb8] sm:$0xff]
    %v68 = vld [vmem:[%s2 + $0xc0] sm:$0xff]
    %v69 = vld [vmem:[%s2 + $0xc8] sm:$0xff]
    %v70 = vld [vmem:[%s2 + $0xd0] sm:$0xff]
    %v71 = vld [vmem:[%s2 + $0xd8] sm:$0xff]
    %v72 = vld [vmem:[%s2 + $0xe0] sm:$0xff]
    %v73 = vld [vmem:[%s2 + $0xe8] sm:$0xff]
    %v74 = vld [vmem:[%s2 + $0xf0] sm:$0xff]
    %v75 = vld [vmem:[%s2 + $0xf8] sm:$0xff]
    %v76 = vld [vmem:[%s2 + $0x100] sm:$0xff]
    %v77 = vld [vmem:[%s2 + $0x108] sm:$0xff]
    %v78 = vld [vmem:[%s2 + $0x110] sm:$0xff]
    %v79 = vld [vmem:[%s2 + $0x118] sm:$0xff]
    %v80 = vld [vmem:[%s2 + $0x120] sm:$0xff]
    %v81 = vld [vmem:[%s2 + $0x128] sm:$0xff]
    %v82 = vld [vmem:[%s2 + $0x130] sm:$0xff]
    %v83 = vld [vmem:[%s2 + $0x138] sm:$0xff]
    %v84 = vld [vmem:[%s2 + $0x140] sm:$0xff]
    %v85 = vld [vmem:[%s2 + $0x148] sm:$0xff]
    %v86 = vld [vmem:[%s2 + $0x150] sm:$0xff]
    %v87 = vld [vmem:[%s2 + $0x158] sm:$0xff]
    %v88 = vld [vmem:[%s2 + $0x160] sm:$0xff]
    %v89 = vld [vmem:[%s2 + $0x168] sm:$0xff]
    %v90 = vld [vmem:[%s2 + $0x170] sm:$0xff]
    %v91 = vld [vmem:[%s2 + $0x178] sm:$0xff]
    %v92 = vld [vmem:[%s3] sm:$0xff]
    %v93 = vld [vmem:[%s3 + $0x8] sm:$0xff]
    %v94 = vld [vmem:[%s3 + $0x10] sm:$0xff]
    %v95 = vld [vmem:[%s3 + $0x18] sm:$0xff]
    %v96 = vld [vmem:[%s3 + $0x20] sm:$0xff]
    %v97 = vld [vmem:[%s3 + $0x28] sm:$0xff]
    %v98 = vld [vmem:[%s3 + $0x30] sm:$0xff]
    %v99 = vld [vmem:[%s3 + $0x38] sm:$0xff]
    %v100 = vld [vmem:[%s3 + $0x40] sm:$0xff]
    %v101 = vld [vmem:[%s3 + $0x48] sm:$0xff]
    %v102 = vld [vmem:[%s3 + $0x50] sm:$0xff]
    %v103 = vld [vmem:[%s3 + $0x58] sm:$0xff]
    %v104 = vld [vmem:[%s3 + $0x60] sm:$0xff]
    %v105 = vld [vmem:[%s3 + $0x68] sm:$0xff]
    %v106 = vld [vmem:[%s3 + $0x70] sm:$0xff]
    %v107 = vld [vmem:[%s3 + $0x78] sm:$0xff]
    %v108 = vld [vmem:[%s3 + $0x80] sm:$0xff]
    %v109 = vld [vmem:[%s3 + $0x88] sm:$0xff]
    %v110 = vld [vmem:[%s3 + $0x90] sm:$0xff]
    %v111 = vld [vmem:[%s3 + $0x98] sm:$0xff]
    %v112 = vld [vmem:[%s3 + $0xa0] sm:$0xff]
    %v113 = vld [vmem:[%s3 + $0xa8] sm:$0xff]
    %v114 = vld [vmem:[%s3 + $0xb0] sm:$0xff]
    %v115 = vld [vmem:[%s3 + $0xb8] sm:$0xff]
    %v116 = vld [vmem:[%s3 + $0xc0] sm:$0xff]
    %v117 = vld [vmem:[%s3 + $0xc8] sm:$0xff]
    %v118 = vld [vmem:[%s3 + $0xd0] sm:$0xff]
    %v119 = vld [vmem:[%s3 + $0xd8] sm:$0xff]
    %v120 = vld [vmem:[%s3 + $0xe0] sm:$0xff]
    %v121 = vld [vmem:[%s3 + $0xe8] sm:$0xff]
    %v122 = vld [vmem:[%s3 + $0xf0] sm:$0xff]
    %v123 = vld [vmem:[%s3 + $0xf8] sm:$0xff]
    %v124 = vld [vmem:[%s3 + $0x100] sm:$0xff]
    %v125 = vld [vmem:[%s3 + $0x108] sm:$0xff]
    %v126 = vld [vmem:[%s3 + $0x110] sm:$0xff]
    %v127 = vld [vmem:[%s3 + $0x118] sm:$0xff]
    %v128 = vld [vmem:[%s3 + $0x120] sm:$0xff]
    %v129 = vld [vmem:[%s3 + $0x128] sm:$0xff]
    %v130 = vld [vmem:[%s3 + $0x130] sm:$0xff]
    %v131 = vld [vmem:[%s3 + $0x138] sm:$0xff]
    %v132 = vld [vmem:[%s3 + $0x140] sm:$0xff]
    %v133 = vld [vmem:[%s3 + $0x148] sm:$0xff]
    %v134 = vld [vmem:[%s3 + $0x150] sm:$0xff]
    %v135 = vld [vmem:[%s3 + $0x158] sm:$0xff]
    %v136 = vld [vmem:[%s3 + $0x160] sm:$0xff]
    %v137 = vld [vmem:[%s3 + $0x168] sm:$0xff]
    %v138 = vld [vmem:[%s3 + $0x170] sm:$0xff]
    %v139 = vld [vmem:[%s3 + $0x178] sm:$0xff]
    %v140 = vld [vmem:[%s4] sm:$0x7]
    %v142 = vlaneseq
    %v143 = vshrl.u32 %v142, 7
    %v144 = vsub.s32 0, %v143
    %v145 = vrot.slane %v140, %v144
    %v146 = vlaneseq
    %v147 = vshrl.u32 %v146, 7
    %v148 = vsub.s32 1, %v147
    %v149 = vrot.slane %v140, %v148
    %v150 = vlaneseq
    %v151 = vshrl.u32 %v150, 7
    %v152 = vsub.s32 2, %v151
    %v153 = vrot.slane %v140, %v152
    %157 = vmatprep.subr.mxu0 %v90
    %158 = vmatpush1.msra.mxu0 %v89
    %159 = vmatprep.subr.mxu0 %v87
    %160 = vmatpush1.msra.mxu0 %v86
    %161 = vmatprep.subr.mxu0 %v84
    %162 = vmatpush1.msra.mxu0 %v83
    %163 = vmatprep.subr.mxu0 %v81
    %164 = vmatpush1.msra.mxu0 %v80
    %165 = vmatprep.subr.mxu0 %v78
    %166 = vmatpush1.msra.mxu0 %v77
    %167 = vmatprep.subr.mxu0 %v75
    %168 = vmatpush1.msra.mxu0 %v74
    %169 = vmatprep.subr.mxu0 %v72
    %170 = vmatpush1.msra.mxu0 %v71
    %171 = vmatprep.subr.mxu0 %v69
    %172 = vmatpush1.msra.mxu0 %v68
    %173 = vmatprep.subr.mxu0 %v66
    %174 = vmatpush1.msra.mxu0 %v65
    %175 = vmatprep.subr.mxu0 %v63
    %176 = vmatpush1.msra.mxu0 %v62
    %177 = vmatprep.subr.mxu0 %v60
    %178 = vmatpush1.msra.mxu0 %v59
    %179 = vmatprep.subr.mxu0 %v57
    %180 = vmatpush1.msra.mxu0 %v56
    %181 = vmatprep.subr.mxu0 %v54
    %182 = vmatpush1.msra.mxu0 %v53
    %183 = vmatprep.subr.mxu0 %v51
    %184 = vmatpush1.msra.mxu0 %v50
    %185 = vmatprep.subr.mxu0 %v48
    %186 = vmatpush1.msra.mxu0 %v47
    %187 = vmatprep.subr.mxu0 %v45
    %188 = vmatpush1.msra.mxu0 %v44
    %189 = vmatprep.subr.mxu0 0.0
    %190 = vmatpush2.msra.mxu0 0.0
    %191 = vmatprep.subr.mxu0 0.0
    %192 = vmatpush2.msra.mxu0 0.0
    %193 = vmatprep.subr.mxu0 0.0
    %194 = vmatpush2.msra.mxu0 0.0
    %195 = vmatprep.subr.mxu0 0.0
    %196 = vmatpush2.msra.mxu0 0.0
    %197 = vmatprep.subr.mxu0 0.0
    %198 = vmatpush2.msra.mxu0 0.0
    %199 = vmatprep.subr.mxu0 0.0
    %200 = vmatpush2.msra.mxu0 0.0
    %201 = vmatprep.subr.mxu0 0.0
    %202 = vmatpush2.msra.mxu0 0.0
    %203 = vmatprep.subr.mxu0 0.0
    %204 = vmatpush2.msra.mxu0 0.0
    %205 = vmatprep.subr.mxu0 0.0
    %206 = vmatpush2.msra.mxu0 0.0
    %207 = vmatprep.subr.mxu0 0.0
    %208 = vmatpush2.msra.mxu0 0.0
    %209 = vmatprep.subr.mxu0 0.0
    %210 = vmatpush2.msra.mxu0 0.0
    %211 = vmatprep.subr.mxu0 0.0
    %212 = vmatpush2.msra.mxu0 0.0
    %213 = vmatprep.subr.mxu0 0.0
    %214 = vmatpush2.msra.mxu0 0.0
    %215 = vmatprep.subr.mxu0 0.0
    %216 = vmatpush2.msra.mxu0 0.0
    %217 = vmatprep.subr.mxu0 0.0
    %218 = vmatpush2.msra.mxu0 0.0
    %219 = vmatprep.subr.mxu0 0.0
    %220 = vmatpush2.msra.mxu0 0.0
    %221 = vmatprep.mubr.f32.mxu0 0.0
    %222 = vmatmul.mubr.f32.gmra.mxu0 %v36
    %v223 = vpop.f32.mrf.mxu0
    %v224 = vadd.f32 %v145, %v223
    %v225 = vpop.f32.mrf.mxu0
    %v226 = vadd.f32 %v149, %v225
    %227 = vmatprep.mubr.f32.mxu0 0.0
    %228 = vmatmul.mubr.f32.gmra.mxu0 %v37
    %v229 = vpop.f32.mrf.mxu0
    %v230 = vadd.f32 %v145, %v229
    %v231 = vpop.f32.mrf.mxu0
    %v232 = vadd.f32 %v149, %v231
    %233 = vmatprep.mubr.f32.mxu0 0.0
    %234 = vmatmul.mubr.f32.gmra.mxu0 %v38
    %v235 = vpop.f32.mrf.mxu0
    %v236 = vadd.f32 %v145, %v235
    %v237 = vpop.f32.mrf.mxu0
    %v238 = vadd.f32 %v149, %v237
    %239 = vmatprep.mubr.f32.mxu0 0.0
    %240 = vmatmul.mubr.f32.gmra.mxu0 %v39
    %v241 = vpop.f32.mrf.mxu0
    %v242 = vadd.f32 %v145, %v241
    %v243 = vpop.f32.mrf.mxu0
    %v244 = vadd.f32 %v149, %v243
    %245 = vmatprep.mubr.f32.mxu0 0.0
    %246 = vmatmul.mubr.f32.gmra.mxu0 %v40
    %v247 = vpop.f32.mrf.mxu0
    %v248 = vadd.f32 %v145, %v247
    %v249 = vpop.f32.mrf.mxu0
    %v250 = vadd.f32 %v149, %v249
    %251 = vmatprep.mubr.f32.mxu0 0.0
    %252 = vmatmul.mubr.f32.gmra.mxu0 %v41
    %v253 = vpop.f32.mrf.mxu0
    %v254 = vadd.f32 %v145, %v253
    %v255 = vpop.f32.mrf.mxu0
    %v256 = vadd.f32 %v149, %v255
    %257 = vmatprep.mubr.f32.mxu0 0.0
    %258 = vmatmul.mubr.f32.gmra.mxu0 %v42
    %v259 = vpop.f32.mrf.mxu0
    %v260 = vadd.f32 %v145, %v259
    %v261 = vpop.f32.mrf.mxu0
    %v262 = vadd.f32 %v149, %v261
    %263 = vmatprep.mubr.f32.mxu0 0.0
    %264 = vmatmul.mubr.f32.gmra.mxu0 %v43
    %v265 = vpop.f32.mrf.mxu0
    %v266 = vadd.f32 %v145, %v265
    %v267 = vpop.f32.mrf.mxu0
    %v268 = vadd.f32 %v149, %v267
    %269 = vdwg.mxu0
    %270 = vmatprep.subr.mxu0 0.0
    %271 = vmatpush1.msra.mxu0 %v91
    %272 = vmatprep.subr.mxu0 0.0
    %273 = vmatpush1.msra.mxu0 %v88
    %274 = vmatprep.subr.mxu0 0.0
    %275 = vmatpush1.msra.mxu0 %v85
    %276 = vmatprep.subr.mxu0 0.0
    %277 = vmatpush1.msra.mxu0 %v82
    %278 = vmatprep.subr.mxu0 0.0
    %279 = vmatpush1.msra.mxu0 %v79
    %280 = vmatprep.subr.mxu0 0.0
    %281 = vmatpush1.msra.mxu0 %v76
    %282 = vmatprep.subr.mxu0 0.0
    %283 = vmatpush1.msra.mxu0 %v73
    %284 = vmatprep.subr.mxu0 0.0
    %285 = vmatpush1.msra.mxu0 %v70
    %286 = vmatprep.subr.mxu0 0.0
    %287 = vmatpush1.msra.mxu0 %v67
    %288 = vmatprep.subr.mxu0 0.0
    %289 = vmatpush1.msra.mxu0 %v64
    %290 = vmatprep.subr.mxu0 0.0
    %291 = vmatpush1.msra.mxu0 %v61
    %292 = vmatprep.subr.mxu0 0.0
    %293 = vmatpush1.msra.mxu0 %v58
    %294 = vmatprep.subr.mxu0 0.0
    %295 = vmatpush1.msra.mxu0 %v55
    %296 = vmatprep.subr.mxu0 0.0
    %297 = vmatpush1.msra.mxu0 %v52
    %298 = vmatprep.subr.mxu0 0.0
    %299 = vmatpush1.msra.mxu0 %v49
    %300 = vmatprep.subr.mxu0 0.0
    %301 = vmatpush1.msra.mxu0 %v46
    %302 = vmatprep.subr.mxu0 0.0
    %303 = vmatpush2.msra.mxu0 0.0
    %304 = vmatprep.subr.mxu0 0.0
    %305 = vmatpush2.msra.mxu0 0.0
    %306 = vmatprep.subr.mxu0 0.0
    %307 = vmatpush2.msra.mxu0 0.0
    %308 = vmatprep.subr.mxu0 0.0
    %309 = vmatpush2.msra.mxu0 0.0
    %310 = vmatprep.subr.mxu0 0.0
    %311 = vmatpush2.msra.mxu0 0.0
    %312 = vmatprep.subr.mxu0 0.0
    %313 = vmatpush2.msra.mxu0 0.0
    %314 = vmatprep.subr.mxu0 0.0
    %315 = vmatpush2.msra.mxu0 0.0
    %316 = vmatprep.subr.mxu0 0.0
    %317 = vmatpush2.msra.mxu0 0.0
    %318 = vmatprep.subr.mxu0 0.0
    %319 = vmatpush2.msra.mxu0 0.0
    %320 = vmatprep.subr.mxu0 0.0
    %321 = vmatpush2.msra.mxu0 0.0
    %322 = vmatprep.subr.mxu0 0.0
    %323 = vmatpush2.msra.mxu0 0.0
    %324 = vmatprep.subr.mxu0 0.0
    %325 = vmatpush2.msra.mxu0 0.0
    %326 = vmatprep.subr.mxu0 0.0
    %327 = vmatpush2.msra.mxu0 0.0
    %328 = vmatprep.subr.mxu0 0.0
    %329 = vmatpush2.msra.mxu0 0.0
    %330 = vmatprep.subr.mxu0 0.0
    %331 = vmatpush2.msra.mxu0 0.0
    %332 = vmatprep.subr.mxu0 0.0
    %333 = vmatpush2.msra.mxu0 0.0
    %334 = vmatprep.mubr.f32.mxu0 0.0
    %335 = vmatmul.mubr.f32.gmra.mxu0 %v36
    %v336 = vpop.f32.mrf.mxu0
    %v337 = vadd.f32 %v153, %v336
    %v338 = vpop.f32.mrf.mxu0
    %339 = vmatprep.mubr.f32.mxu0 0.0
    %340 = vmatmul.mubr.f32.gmra.mxu0 %v37
    %v341 = vpop.f32.mrf.mxu0
    %v342 = vadd.f32 %v153, %v341
    %v343 = vpop.f32.mrf.mxu0
    %344 = vmatprep.mubr.f32.mxu0 0.0
    %345 = vmatmul.mubr.f32.gmra.mxu0 %v38
    %v346 = vpop.f32.mrf.mxu0
    %v347 = vadd.f32 %v153, %v346
    %v348 = vpop.f32.mrf.mxu0
    %349 = vmatprep.mubr.f32.mxu0 0.0
    %350 = vmatmul.mubr.f32.gmra.mxu0 %v39
    %v351 = vpop.f32.mrf.mxu0
    %v352 = vadd.f32 %v153, %v351
    %v353 = vpop.f32.mrf.mxu0
    %354 = vmatprep.mubr.f32.mxu0 0.0
    %355 = vmatmul.mubr.f32.gmra.mxu0 %v40
    %v356 = vpop.f32.mrf.mxu0
    %v357 = vadd.f32 %v153, %v356
    %v358 = vpop.f32.mrf.mxu0
    %359 = vmatprep.mubr.f32.mxu0 0.0
    %360 = vmatmul.mubr.f32.gmra.mxu0 %v41
    %v361 = vpop.f32.mrf.mxu0
    %v362 = vadd.f32 %v153, %v361
    %v363 = vpop.f32.mrf.mxu0
    %364 = vmatprep.mubr.f32.mxu0 0.0
    %365 = vmatmul.mubr.f32.gmra.mxu0 %v42
    %v366 = vpop.f32.mrf.mxu0
    %v367 = vadd.f32 %v153, %v366
    %v368 = vpop.f32.mrf.mxu0
    %369 = vmatprep.mubr.f32.mxu0 0.0
    %370 = vmatmul.mubr.f32.gmra.mxu0 %v43
    %v371 = vpop.f32.mrf.mxu0
    %v372 = vadd.f32 %v153, %v371
    %v373 = vpop.f32.mrf.mxu0
    %374 = vdwg.mxu0
    %v375 = vld [vmem:[%s5] sm:$0x7]
    %v377 = vlaneseq
    %v378 = vshrl.u32 %v377, 7
    %v379 = vsub.s32 0, %v378
    %v380 = vrot.slane %v375, %v379
    %v381 = vlaneseq
    %v382 = vshrl.u32 %v381, 7
    %v383 = vsub.s32 1, %v382
    %v384 = vrot.slane %v375, %v383
    %v385 = vlaneseq
    %v386 = vshrl.u32 %v385, 7
    %v387 = vsub.s32 2, %v386
    %v388 = vrot.slane %v375, %v387
    %v392 = vld [vmem:[%s1] sm:$0xff]
    %393 = vmatprep.subr.mxu0 %v138
    %394 = vmatpush1.msra.mxu0 %v137
    %395 = vmatprep.subr.mxu0 %v135
    %396 = vmatpush1.msra.mxu0 %v134
    %397 = vmatprep.subr.mxu0 %v132
    %398 = vmatpush1.msra.mxu0 %v131
    %399 = vmatprep.subr.mxu0 %v129
    %400 = vmatpush1.msra.mxu0 %v128
    %401 = vmatprep.subr.mxu0 %v126
    %402 = vmatpush1.msra.mxu0 %v125
    %403 = vmatprep.subr.mxu0 %v123
    %404 = vmatpush1.msra.mxu0 %v122
    %405 = vmatprep.subr.mxu0 %v120
    %406 = vmatpush1.msra.mxu0 %v119
    %407 = vmatprep.subr.mxu0 %v117
    %408 = vmatpush1.msra.mxu0 %v116
    %409 = vmatprep.subr.mxu0 %v114
    %410 = vmatpush1.msra.mxu0 %v113
    %411 = vmatprep.subr.mxu0 %v111
    %412 = vmatpush1.msra.mxu0 %v110
    %413 = vmatprep.subr.mxu0 %v108
    %414 = vmatpush1.msra.mxu0 %v107
    %415 = vmatprep.subr.mxu0 %v105
    %416 = vmatpush1.msra.mxu0 %v104
    %417 = vmatprep.subr.mxu0 %v102
    %418 = vmatpush1.msra.mxu0 %v101
    %419 = vmatprep.subr.mxu0 %v99
    %420 = vmatpush1.msra.mxu0 %v98
    %421 = vmatprep.subr.mxu0 %v96
    %422 = vmatpush1.msra.mxu0 %v95
    %423 = vmatprep.subr.mxu0 %v93
    %424 = vmatpush1.msra.mxu0 %v92
    %425 = vmatprep.subr.mxu0 0.0
    %426 = vmatpush2.msra.mxu0 0.0
    %427 = vmatprep.subr.mxu0 0.0
    %428 = vmatpush2.msra.mxu0 0.0
    %429 = vmatprep.subr.mxu0 0.0
    %430 = vmatpush2.msra.mxu0 0.0
    %431 = vmatprep.subr.mxu0 0.0
    %432 = vmatpush2.msra.mxu0 0.0
    %433 = vmatprep.subr.mxu0 0.0
    %434 = vmatpush2.msra.mxu0 0.0
    %435 = vmatprep.subr.mxu0 0.0
    %436 = vmatpush2.msra.mxu0 0.0
    %437 = vmatprep.subr.mxu0 0.0
    %438 = vmatpush2.msra.mxu0 0.0
    %439 = vmatprep.subr.mxu0 0.0
    %440 = vmatpush2.msra.mxu0 0.0
    %441 = vmatprep.subr.mxu0 0.0
    %442 = vmatpush2.msra.mxu0 0.0
    %443 = vmatprep.subr.mxu0 0.0
    %444 = vmatpush2.msra.mxu0 0.0
    %445 = vmatprep.subr.mxu0 0.0
    %446 = vmatpush2.msra.mxu0 0.0
    %447 = vmatprep.subr.mxu0 0.0
    %448 = vmatpush2.msra.mxu0 0.0
    %449 = vmatprep.subr.mxu0 0.0
    %450 = vmatpush2.msra.mxu0 0.0
    %451 = vmatprep.subr.mxu0 0.0
    %452 = vmatpush2.msra.mxu0 0.0
    %453 = vmatprep.subr.mxu0 0.0
    %454 = vmatpush2.msra.mxu0 0.0
    %455 = vmatprep.subr.mxu0 0.0
    %456 = vmatpush2.msra.mxu0 0.0
    %457 = vmatprep.mubr.f32.mxu0 0.0
    %458 = vmatmul.mubr.f32.gmra.mxu0 %v392
    %v459 = vpop.f32.mrf.mxu0
    %v460 = vadd.f32 %v380, %v459
    %v461 = vpop.f32.mrf.mxu0
    %v462 = vadd.f32 %v384, %v461
    %463 = vdwg.mxu0
    %464 = vmatprep.subr.mxu0 0.0
    %465 = vmatpush1.msra.mxu0 %v139
    %466 = vmatprep.subr.mxu0 0.0
    %467 = vmatpush1.msra.mxu0 %v136
    %468 = vmatprep.subr.mxu0 0.0
    %469 = vmatpush1.msra.mxu0 %v133
    %470 = vmatprep.subr.mxu0 0.0
    %471 = vmatpush1.msra.mxu0 %v130
    %472 = vmatprep.subr.mxu0 0.0
    %473 = vmatpush1.msra.mxu0 %v127
    %474 = vmatprep.subr.mxu0 0.0
    %475 = vmatpush1.msra.mxu0 %v124
    %476 = vmatprep.subr.mxu0 0.0
    %477 = vmatpush1.msra.mxu0 %v121
    %478 = vmatprep.subr.mxu0 0.0
    %479 = vmatpush1.msra.mxu0 %v118
    %480 = vmatprep.subr.mxu0 0.0
    %481 = vmatpush1.msra.mxu0 %v115
    %482 = vmatprep.subr.mxu0 0.0
    %483 = vmatpush1.msra.mxu0 %v112
    %484 = vmatprep.subr.mxu0 0.0
    %485 = vmatpush1.msra.mxu0 %v109
    %486 = vmatprep.subr.mxu0 0.0
    %487 = vmatpush1.msra.mxu0 %v106
    %488 = vmatprep.subr.mxu0 0.0
    %489 = vmatpush1.msra.mxu0 %v103
    %490 = vmatprep.subr.mxu0 0.0
    %491 = vmatpush1.msra.mxu0 %v100
    %492 = vmatprep.subr.mxu0 0.0
    %493 = vmatpush1.msra.mxu0 %v97
    %494 = vmatprep.subr.mxu0 0.0
    %495 = vmatpush1.msra.mxu0 %v94
    %496 = vmatprep.subr.mxu0 0.0
    %497 = vmatpush2.msra.mxu0 0.0
    %498 = vmatprep.subr.mxu0 0.0
    %499 = vmatpush2.msra.mxu0 0.0
    %500 = vmatprep.subr.mxu0 0.0
    %501 = vmatpush2.msra.mxu0 0.0
    %502 = vmatprep.subr.mxu0 0.0
    %503 = vmatpush2.msra.mxu0 0.0
    %504 = vmatprep.subr.mxu0 0.0
    %505 = vmatpush2.msra.mxu0 0.0
    %506 = vmatprep.subr.mxu0 0.0
    %507 = vmatpush2.msra.mxu0 0.0
    %508 = vmatprep.subr.mxu0 0.0
    %509 = vmatpush2.msra.mxu0 0.0
    %510 = vmatprep.subr.mxu0 0.0
    %511 = vmatpush2.msra.mxu0 0.0
    %512 = vmatprep.subr.mxu0 0.0
    %513 = vmatpush2.msra.mxu0 0.0
    %514 = vmatprep.subr.mxu0 0.0
    %515 = vmatpush2.msra.mxu0 0.0
    %516 = vmatprep.subr.mxu0 0.0
    %517 = vmatpush2.msra.mxu0 0.0
    %518 = vmatprep.subr.mxu0 0.0
    %519 = vmatpush2.msra.mxu0 0.0
    %520 = vmatprep.subr.mxu0 0.0
    %521 = vmatpush2.msra.mxu0 0.0
    %522 = vmatprep.subr.mxu0 0.0
    %523 = vmatpush2.msra.mxu0 0.0
    %524 = vmatprep.subr.mxu0 0.0
    %525 = vmatpush2.msra.mxu0 0.0
    %526 = vmatprep.subr.mxu0 0.0
    %527 = vmatpush2.msra.mxu0 0.0
    %528 = vmatprep.mubr.f32.mxu0 0.0
    %529 = vmatmul.mubr.f32.gmra.mxu0 %v392
    %v530 = vpop.f32.mrf.mxu0
    %v531 = vadd.f32 %v388, %v530
    %v532 = vpop.f32.mrf.mxu0
    %533 = vdwg.mxu0
    %v534 = vadd.f32 %v224, %v460
    %v535 = vxor.u32 %v534, 2147483648
    %v536 = vmul.f32 %v535, 1.442695
    %v537 = vpow.pop %v536
    %v538 = vadd.f32 %v537, 1.0
    %v539 = vrcp.pop %v538
    %v540 = vmul.f32 1.0, %v539
    %v541 = vadd.f32 %v226, %v462
    %v542 = vxor.u32 %v541, 2147483648
    %v543 = vmul.f32 %v542, 1.442695
    %v544 = vpow.pop %v543
    %v545 = vadd.f32 %v544, 1.0
    %v546 = vrcp.pop %v545
    %v547 = vmul.f32 1.0, %v546
    %v548 = vmul.f32 %v540, %v531
    %v549 = vadd.f32 %v337, %v548
    %v550 = vtanh.pop %v549
    %v551 = vsub.f32 1.0, %v547
    %v552 = vmul.f32 %v551, %v550
    %v553 = vmul.f32 %v547, %v392
    %v554 = vadd.f32 %v552, %v553
    %555 = vst [vmem:[#allocation2] sm:$0xff] %v554
    %556 = vmatprep.subr.mxu0 %v138
    %557 = vmatpush1.msra.mxu0 %v137
    %558 = vmatprep.subr.mxu0 %v135
    %559 = vmatpush1.msra.mxu0 %v134
    %560 = vmatprep.subr.mxu0 %v132
    %561 = vmatpush1.msra.mxu0 %v131
    %562 = vmatprep.subr.mxu0 %v129
    %563 = vmatpush1.msra.mxu0 %v128
    %564 = vmatprep.subr.mxu0 %v126
    %565 = vmatpush1.msra.mxu0 %v125
    %566 = vmatprep.subr.mxu0 %v123
    %567 = vmatpush1.msra.mxu0 %v122
    %568 = vmatprep.subr.mxu0 %v120
    %569 = vmatpush1.msra.mxu0 %v119
    %570 = vmatprep.subr.mxu0 %v117
    %571 = vmatpush1.msra.mxu0 %v116
    %572 = vmatprep.subr.mxu0 %v114
    %573 = vmatpush1.msra.mxu0 %v113
    %574 = vmatprep.subr.mxu0 %v111
    %575 = vmatpush1.msra.mxu0 %v110
    %576 = vmatprep.subr.mxu0 %v108
    %577 = vmatpush1.msra.mxu0 %v107
    %578 = vmatprep.subr.mxu0 %v105
    %579 = vmatpush1.msra.mxu0 %v104
    %580 = vmatprep.subr.mxu0 %v102
    %581 = vmatpush1.msra.mxu0 %v101
    %582 = vmatprep.subr.mxu0 %v99
    %583 = vmatpush1.msra.mxu0 %v98
    %584 = vmatprep.subr.mxu0 %v96
    %585 = vmatpush1.msra.mxu0 %v95
    %586 = vmatprep.subr.mxu0 %v93
    %587 = vmatpush1.msra.mxu0 %v92
    %588 = vmatprep.subr.mxu0 0.0
    %589 = vmatpush2.msra.mxu0 0.0
    %590 = vmatprep.subr.mxu0 0.0
    %591 = vmatpush2.msra.mxu0 0.0
    %592 = vmatprep.subr.mxu0 0.0
    %593 = vmatpush2.msra.mxu0 0.0
    %594 = vmatprep.subr.mxu0 0.0
    %595 = vmatpush2.msra.mxu0 0.0
    %596 = vmatprep.subr.mxu0 0.0
    %597 = vmatpush2.msra.mxu0 0.0
    %598 = vmatprep.subr.mxu0 0.0
    %599 = vmatpush2.msra.mxu0 0.0
    %600 = vmatprep.subr.mxu0 0.0
    %601 = vmatpush2.msra.mxu0 0.0
    %602 = vmatprep.subr.mxu0 0.0
    %603 = vmatpush2.msra.mxu0 0.0
    %604 = vmatprep.subr.mxu0 0.0
    %605 = vmatpush2.msra.mxu0 0.0
    %606 = vmatprep.subr.mxu0 0.0
    %607 = vmatpush2.msra.mxu0 0.0
    %608 = vmatprep.subr.mxu0 0.0
    %609 = vmatpush2.msra.mxu0 0.0
    %610 = vmatprep.subr.mxu0 0.0
    %611 = vmatpush2.msra.mxu0 0.0
    %612 = vmatprep.subr.mxu0 0.0
    %613 = vmatpush2.msra.mxu0 0.0
    %614 = vmatprep.subr.mxu0 0.0
    %615 = vmatpush2.msra.mxu0 0.0
    %616 = vmatprep.subr.mxu0 0.0
    %617 = vmatpush2.msra.mxu0 0.0
    %618 = vmatprep.subr.mxu0 0.0
    %619 = vmatpush2.msra.mxu0 0.0
    %620 = vmatprep.mubr.f32.mxu0 0.0
    %621 = vmatmul.mubr.f32.gmra.mxu0 %v554
    %v622 = vpop.f32.mrf.mxu0
    %v623 = vadd.f32 %v380, %v622
    %v624 = vpop.f32.mrf.mxu0
    %v625 = vadd.f32 %v384, %v624
    %626 = vdwg.mxu0
    %627 = vmatprep.subr.mxu0 0.0
    %628 = vmatpush1.msra.mxu0 %v139
    %629 = vmatprep.subr.mxu0 0.0
    %630 = vmatpush1.msra.mxu0 %v136
    %631 = vmatprep.subr.mxu0 0.0
    %632 = vmatpush1.msra.mxu0 %v133
    %633 = vmatprep.subr.mxu0 0.0
    %634 = vmatpush1.msra.mxu0 %v130
    %635 = vmatprep.subr.mxu0 0.0
    %636 = vmatpush1.msra.mxu0 %v127
    %637 = vmatprep.subr.mxu0 0.0
    %638 = vmatpush1.msra.mxu0 %v124
    %639 = vmatprep.subr.mxu0 0.0
    %640 = vmatpush1.msra.mxu0 %v121
    %641 = vmatprep.subr.mxu0 0.0
    %642 = vmatpush1.msra.mxu0 %v118
    %643 = vmatprep.subr.mxu0 0.0
    %644 = vmatpush1.msra.mxu0 %v115
    %645 = vmatprep.subr.mxu0 0.0
    %646 = vmatpush1.msra.mxu0 %v112
    %647 = vmatprep.subr.mxu0 0.0
    %648 = vmatpush1.msra.mxu0 %v109
    %649 = vmatprep.subr.mxu0 0.0
    %650 = vmatpush1.msra.mxu0 %v106
    %651 = vmatprep.subr.mxu0 0.0
    %652 = vmatpush1.msra.mxu0 %v103
    %653 = vmatprep.subr.mxu0 0.0
    %654 = vmatpush1.msra.mxu0 %v100
    %655 = vmatprep.subr.mxu0 0.0
    %656 = vmatpush1.msra.mxu0 %v97
    %657 = vmatprep.subr.mxu0 0.0
    %658 = vmatpush1.msra.mxu0 %v94
    %659 = vmatprep.subr.mxu0 0.0
    %660 = vmatpush2.msra.mxu0 0.0
    %661 = vmatprep.subr.mxu0 0.0
    %662 = vmatpush2.msra.mxu0 0.0
    %663 = vmatprep.subr.mxu0 0.0
    %664 = vmatpush2.msra.mxu0 0.0
    %665 = vmatprep.subr.mxu0 0.0
    %666 = vmatpush2.msra.mxu0 0.0
    %667 = vmatprep.subr.mxu0 0.0
    %668 = vmatpush2.msra.mxu0 0.0
    %669 = vmatprep.subr.mxu0 0.0
    %670 = vmatpush2.msra.mxu0 0.0
    %671 = vmatprep.subr.mxu0 0.0
    %672 = vmatpush2.msra.mxu0 0.0
    %673 = vmatprep.subr.mxu0 0.0
    %674 = vmatpush2.msra.mxu0 0.0
    %675 = vmatprep.subr.mxu0 0.0
    %676 = vmatpush2.msra.mxu0 0.0
    %677 = vmatprep.subr.mxu0 0.0
    %678 = vmatpush2.msra.mxu0 0.0
    %679 = vmatprep.subr.mxu0 0.0
    %680 = vmatpush2.msra.mxu0 0.0
    %681 = vmatprep.subr.mxu0 0.0
    %682 = vmatpush2.msra.mxu0 0.0
    %683 = vmatprep.subr.mxu0 0.0
    %684 = vmatpush2.msra.mxu0 0.0
    %685 = vmatprep.subr.mxu0 0.0
    %686 = vmatpush2.msra.mxu0 0.0
    %687 = vmatprep.subr.mxu0 0.0
    %688 = vmatpush2.msra.mxu0 0.0
    %689 = vmatprep.subr.mxu0 0.0
    %690 = vmatpush2.msra.mxu0 0.0
    %691 = vmatprep.mubr.f32.mxu0 0.0
    %692 = vmatmul.mubr.f32.gmra.mxu0 %v554
    %v693 = vpop.f32.mrf.mxu0
    %v694 = vadd.f32 %v388, %v693
    %v695 = vpop.f32.mrf.mxu0
    %696 = vdwg.mxu0
    %v697 = vadd.f32 %v230, %v623
    %v698 = vxor.u32 %v697, 2147483648
    %v699 = vmul.f32 %v698, 1.442695
    %v700 = vpow.pop %v699
    %v701 = vadd.f32 %v700, 1.0
    %v702 = vrcp.pop %v701
    %v703 = vmul.f32 1.0, %v702
    %v704 = vadd.f32 %v232, %v625
    %v705 = vxor.u32 %v704, 2147483648
    %v706 = vmul.f32 %v705, 1.442695
    %v707 = vpow.pop %v706
    %v708 = vadd.f32 %v707, 1.0
    %v709 = vrcp.pop %v708
    %v710 = vmul.f32 1.0, %v709
    %v711 = vmul.f32 %v703, %v694
    %v712 = vadd.f32 %v342, %v711
    %v713 = vtanh.pop %v712
    %v714 = vsub.f32 1.0, %v710
    %v715 = vmul.f32 %v714, %v713
    %v716 = vmul.f32 %v710, %v554
    %v717 = vadd.f32 %v715, %v716
    %718 = vst [vmem:[#allocation2 + $0x8] sm:$0xff] %v717
    %719 = vmatprep.subr.mxu0 %v138
    %720 = vmatpush1.msra.mxu0 %v137
    %721 = vmatprep.subr.mxu0 %v135
    %722 = vmatpush1.msra.mxu0 %v134
    %723 = vmatprep.subr.mxu0 %v132
    %724 = vmatpush1.msra.mxu0 %v131
    %725 = vmatprep.subr.mxu0 %v129
    %726 = vmatpush1.msra.mxu0 %v128
    %727 = vmatprep.subr.mxu0 %v126
    %728 = vmatpush1.msra.mxu0 %v125
    %729 = vmatprep.subr.mxu0 %v123
    %730 = vmatpush1.msra.mxu0 %v122
    %731 = vmatprep.subr.mxu0 %v120
    %732 = vmatpush1.msra.mxu0 %v119
    %733 = vmatprep.subr.mxu0 %v117
    %734 = vmatpush1.msra.mxu0 %v116
    %735 = vmatprep.subr.mxu0 %v114
    %736 = vmatpush1.msra.mxu0 %v113
    %737 = vmatprep.subr.mxu0 %v111
    %738 = vmatpush1.msra.mxu0 %v110
    %739 = vmatprep.subr.mxu0 %v108
    %740 = vmatpush1.msra.mxu0 %v107
    %741 = vmatprep.subr.mxu0 %v105
    %742 = vmatpush1.msra.mxu0 %v104
    %743 = vmatprep.subr.mxu0 %v102
    %744 = vmatpush1.msra.mxu0 %v101
    %745 = vmatprep.subr.mxu0 %v99
    %746 = vmatpush1.msra.mxu0 %v98
    %747 = vmatprep.subr.mxu0 %v96
    %748 = vmatpush1.msra.mxu0 %v95
    %749 = vmatprep.subr.mxu0 %v93
    %750 = vmatpush1.msra.mxu0 %v92
    %751 = vmatprep.subr.mxu0 0.0
    %752 = vmatpush2.msra.mxu0 0.0
    %753 = vmatprep.subr.mxu0 0.0
    %754 = vmatpush2.msra.mxu0 0.0
    %755 = vmatprep.subr.mxu0 0.0
    %756 = vmatpush2.msra.mxu0 0.0
    %757 = vmatprep.subr.mxu0 0.0
    %758 = vmatpush2.msra.mxu0 0.0
    %759 = vmatprep.subr.mxu0 0.0
    %760 = vmatpush2.msra.mxu0 0.0
    %761 = vmatprep.subr.mxu0 0.0
    %762 = vmatpush2.msra.mxu0 0.0
    %763 = vmatprep.subr.mxu0 0.0
    %764 = vmatpush2.msra.mxu0 0.0
    %765 = vmatprep.subr.mxu0 0.0
    %766 = vmatpush2.msra.mxu0 0.0
    %767 = vmatprep.subr.mxu0 0.0
    %768 = vmatpush2.msra.mxu0 0.0
    %769 = vmatprep.subr.mxu0 0.0
    %770 = vmatpush2.msra.mxu0 0.0
    %771 = vmatprep.subr.mxu0 0.0
    %772 = vmatpush2.msra.mxu0 0.0
    %773 = vmatprep.subr.mxu0 0.0
    %774 = vmatpush2.msra.mxu0 0.0
    %775 = vmatprep.subr.mxu0 0.0
    %776 = vmatpush2.msra.mxu0 0.0
    %777 = vmatprep.subr.mxu0 0.0
    %778 = vmatpush2.msra.mxu0 0.0
    %779 = vmatprep.subr.mxu0 0.0
    %780 = vmatpush2.msra.mxu0 0.0
    %781 = vmatprep.subr.mxu0 0.0
    %782 = vmatpush2.msra.mxu0 0.0
    %783 = vmatprep.mubr.f32.mxu0 0.0
    %784 = vmatmul.mubr.f32.gmra.mxu0 %v717
    %v785 = vpop.f32.mrf.mxu0
    %v786 = vadd.f32 %v380, %v785
    %v787 = vpop.f32.mrf.mxu0
    %v788 = vadd.f32 %v384, %v787
    %789 = vdwg.mxu0
    %790 = vmatprep.subr.mxu0 0.0
    %791 = vmatpush1.msra.mxu0 %v139
    %792 = vmatprep.subr.mxu0 0.0
    %793 = vmatpush1.msra.mxu0 %v136
    %794 = vmatprep.subr.mxu0 0.0
    %795 = vmatpush1.msra.mxu0 %v133
    %796 = vmatprep.subr.mxu0 0.0
    %797 = vmatpush1.msra.mxu0 %v130
    %798 = vmatprep.subr.mxu0 0.0
    %799 = vmatpush1.msra.mxu0 %v127
    %800 = vmatprep.subr.mxu0 0.0
    %801 = vmatpush1.msra.mxu0 %v124
    %802 = vmatprep.subr.mxu0 0.0
    %803 = vmatpush1.msra.mxu0 %v121
    %804 = vmatprep.subr.mxu0 0.0
    %805 = vmatpush1.msra.mxu0 %v118
    %806 = vmatprep.subr.mxu0 0.0
    %807 = vmatpush1.msra.mxu0 %v115
    %808 = vmatprep.subr.mxu0 0.0
    %809 = vmatpush1.msra.mxu0 %v112
    %810 = vmatprep.subr.mxu0 0.0
    %811 = vmatpush1.msra.mxu0 %v109
    %812 = vmatprep.subr.mxu0 0.0
    %813 = vmatpush1.msra.mxu0 %v106
    %814 = vmatprep.subr.mxu0 0.0
    %815 = vmatpush1.msra.mxu0 %v103
    %816 = vmatprep.subr.mxu0 0.0
    %817 = vmatpush1.msra.mxu0 %v100
    %818 = vmatprep.subr.mxu0 0.0
    %819 = vmatpush1.msra.mxu0 %v97
    %820 = vmatprep.subr.mxu0 0.0
    %821 = vmatpush1.msra.mxu0 %v94
    %822 = vmatprep.subr.mxu0 0.0
    %823 = vmatpush2.msra.mxu0 0.0
    %824 = vmatprep.subr.mxu0 0.0
    %825 = vmatpush2.msra.mxu0 0.0
    %826 = vmatprep.subr.mxu0 0.0
    %827 = vmatpush2.msra.mxu0 0.0
    %828 = vmatprep.subr.mxu0 0.0
    %829 = vmatpush2.msra.mxu0 0.0
    %830 = vmatprep.subr.mxu0 0.0
    %831 = vmatpush2.msra.mxu0 0.0
    %832 = vmatprep.subr.mxu0 0.0
    %833 = vmatpush2.msra.mxu0 0.0
    %834 = vmatprep.subr.mxu0 0.0
    %835 = vmatpush2.msra.mxu0 0.0
    %836 = vmatprep.subr.mxu0 0.0
    %837 = vmatpush2.msra.mxu0 0.0
    %838 = vmatprep.subr.mxu0 0.0
    %839 = vmatpush2.msra.mxu0 0.0
    %840 = vmatprep.subr.mxu0 0.0
    %841 = vmatpush2.msra.mxu0 0.0
    %842 = vmatprep.subr.mxu0 0.0
    %843 = vmatpush2.msra.mxu0 0.0
    %844 = vmatprep.subr.mxu0 0.0
    %845 = vmatpush2.msra.mxu0 0.0
    %846 = vmatprep.subr.mxu0 0.0
    %847 = vmatpush2.msra.mxu0 0.0
    %848 = vmatprep.subr.mxu0 0.0
    %849 = vmatpush2.msra.mxu0 0.0
    %850 = vmatprep.subr.mxu0 0.0
    %851 = vmatpush2.msra.mxu0 0.0
    %852 = vmatprep.subr.mxu0 0.0
    %853 = vmatpush2.msra.mxu0 0.0
    %854 = vmatprep.mubr.f32.mxu0 0.0
    %855 = vmatmul.mubr.f32.gmra.mxu0 %v717
    %v856 = vpop.f32.mrf.mxu0
    %v857 = vadd.f32 %v388, %v856
    %v858 = vpop.f32.mrf.mxu0
    %859 = vdwg.mxu0
    %v860 = vadd.f32 %v236, %v786
    %v861 = vxor.u32 %v860, 2147483648
    %v862 = vmul.f32 %v861, 1.442695
    %v863 = vpow.pop %v862
    %v864 = vadd.f32 %v863, 1.0
    %v865 = vrcp.pop %v864
    %v866 = vmul.f32 1.0, %v865
    %v867 = vadd.f32 %v238, %v788
    %v868 = vxor.u32 %v867, 2147483648
    %v869 = vmul.f32 %v868, 1.442695
    %v870 = vpow.pop %v869
    %v871 = vadd.f32 %v870, 1.0
    %v872 = vrcp.pop %v871
    %v873 = vmul.f32 1.0, %v872
    %v874 = vmul.f32 %v866, %v857
    %v875 = vadd.f32 %v347, %v874
    %v876 = vtanh.pop %v875
    %v877 = vsub.f32 1.0, %v873
    %v878 = vmul.f32 %v877, %v876
    %v879 = vmul.f32 %v873, %v717
    %v880 = vadd.f32 %v878, %v879
    %881 = vst [vmem:[#allocation2 + $0x10] sm:$0xff] %v880
    %882 = vmatprep.subr.mxu0 %v138
    %883 = vmatpush1.msra.mxu0 %v137
    %884 = vmatprep.subr.mxu0 %v135
    %885 = vmatpush1.msra.mxu0 %v134
    %886 = vmatprep.subr.mxu0 %v132
    %887 = vmatpush1.msra.mxu0 %v131
    %888 = vmatprep.subr.mxu0 %v129
    %889 = vmatpush1.msra.mxu0 %v128
    %890 = vmatprep.subr.mxu0 %v126
    %891 = vmatpush1.msra.mxu0 %v125
    %892 = vmatprep.subr.mxu0 %v123
    %893 = vmatpush1.msra.mxu0 %v122
    %894 = vmatprep.subr.mxu0 %v120
    %895 = vmatpush1.msra.mxu0 %v119
    %896 = vmatprep.subr.mxu0 %v117
    %897 = vmatpush1.msra.mxu0 %v116
    %898 = vmatprep.subr.mxu0 %v114
    %899 = vmatpush1.msra.mxu0 %v113
    %900 = vmatprep.subr.mxu0 %v111
    %901 = vmatpush1.msra.mxu0 %v110
    %902 = vmatprep.subr.mxu0 %v108
    %903 = vmatpush1.msra.mxu0 %v107
    %904 = vmatprep.subr.mxu0 %v105
    %905 = vmatpush1.msra.mxu0 %v104
    %906 = vmatprep.subr.mxu0 %v102
    %907 = vmatpush1.msra.mxu0 %v101
    %908 = vmatprep.subr.mxu0 %v99
    %909 = vmatpush1.msra.mxu0 %v98
    %910 = vmatprep.subr.mxu0 %v96
    %911 = vmatpush1.msra.mxu0 %v95
    %912 = vmatprep.subr.mxu0 %v93
    %913 = vmatpush1.msra.mxu0 %v92
    %914 = vmatprep.subr.mxu0 0.0
    %915 = vmatpush2.msra.mxu0 0.0
    %916 = vmatprep.subr.mxu0 0.0
    %917 = vmatpush2.msra.mxu0 0.0
    %918 = vmatprep.subr.mxu0 0.0
    %919 = vmatpush2.msra.mxu0 0.0
    %920 = vmatprep.subr.mxu0 0.0
    %921 = vmatpush2.msra.mxu0 0.0
    %922 = vmatprep.subr.mxu0 0.0
    %923 = vmatpush2.msra.mxu0 0.0
    %924 = vmatprep.subr.mxu0 0.0
    %925 = vmatpush2.msra.mxu0 0.0
    %926 = vmatprep.subr.mxu0 0.0
    %927 = vmatpush2.msra.mxu0 0.0
    %928 = vmatprep.subr.mxu0 0.0
    %929 = vmatpush2.msra.mxu0 0.0
    %930 = vmatprep.subr.mxu0 0.0
    %931 = vmatpush2.msra.mxu0 0.0
    %932 = vmatprep.subr.mxu0 0.0
    %933 = vmatpush2.msra.mxu0 0.0
    %934 = vmatprep.subr.mxu0 0.0
    %935 = vmatpush2.msra.mxu0 0.0
    %936 = vmatprep.subr.mxu0 0.0
    %937 = vmatpush2.msra.mxu0 0.0
    %938 = vmatprep.subr.mxu0 0.0
    %939 = vmatpush2.msra.mxu0 0.0
    %940 = vmatprep.subr.mxu0 0.0
    %941 = vmatpush2.msra.mxu0 0.0
    %942 = vmatprep.subr.mxu0 0.0
    %943 = vmatpush2.msra.mxu0 0.0
    %944 = vmatprep.subr.mxu0 0.0
    %945 = vmatpush2.msra.mxu0 0.0
    %946 = vmatprep.mubr.f32.mxu0 0.0
    %947 = vmatmul.mubr.f32.gmra.mxu0 %v880
    %v948 = vpop.f32.mrf.mxu0
    %v949 = vadd.f32 %v380, %v948
    %v950 = vpop.f32.mrf.mxu0
    %v951 = vadd.f32 %v384, %v950
    %952 = vdwg.mxu0
    %953 = vmatprep.subr.mxu0 0.0
    %954 = vmatpush1.msra.mxu0 %v139
    %955 = vmatprep.subr.mxu0 0.0
    %956 = vmatpush1.msra.mxu0 %v136
    %957 = vmatprep.subr.mxu0 0.0
    %958 = vmatpush1.msra.mxu0 %v133
    %959 = vmatprep.subr.mxu0 0.0
    %960 = vmatpush1.msra.mxu0 %v130
    %961 = vmatprep.subr.mxu0 0.0
    %962 = vmatpush1.msra.mxu0 %v127
    %963 = vmatprep.subr.mxu0 0.0
    %964 = vmatpush1.msra.mxu0 %v124
    %965 = vmatprep.subr.mxu0 0.0
    %966 = vmatpush1.msra.mxu0 %v121
    %967 = vmatprep.subr.mxu0 0.0
    %968 = vmatpush1.msra.mxu0 %v118
    %969 = vmatprep.subr.mxu0 0.0
    %970 = vmatpush1.msra.mxu0 %v115
    %971 = vmatprep.subr.mxu0 0.0
    %972 = vmatpush1.msra.mxu0 %v112
    %973 = vmatprep.subr.mxu0 0.0
    %974 = vmatpush1.msra.mxu0 %v109
    %975 = vmatprep.subr.mxu0 0.0
    %976 = vmatpush1.msra.mxu0 %v106
    %977 = vmatprep.subr.mxu0 0.0
    %978 = vmatpush1.msra.mxu0 %v103
    %979 = vmatprep.subr.mxu0 0.0
    %980 = vmatpush1.msra.mxu0 %v100
    %981 = vmatprep.subr.mxu0 0.0
    %982 = vmatpush1.msra.mxu0 %v97
    %983 = vmatprep.subr.mxu0 0.0
    %984 = vmatpush1.msra.mxu0 %v94
    %985 = vmatprep.subr.mxu0 0.0
    %986 = vmatpush2.msra.mxu0 0.0
    %987 = vmatprep.subr.mxu0 0.0
    %988 = vmatpush2.msra.mxu0 0.0
    %989 = vmatprep.subr.mxu0 0.0
    %990 = vmatpush2.msra.mxu0 0.0
    %991 = vmatprep.subr.mxu0 0.0
    %992 = vmatpush2.msra.mxu0 0.0
    %993 = vmatprep.subr.mxu0 0.0
    %994 = vmatpush2.msra.mxu0 0.0
    %995 = vmatprep.subr.mxu0 0.0
    %996 = vmatpush2.msra.mxu0 0.0
    %997 = vmatprep.subr.mxu0 0.0
    %998 = vmatpush2.msra.mxu0 0.0
    %999 = vmatprep.subr.mxu0 0.0
    %1000 = vmatpush2.msra.mxu0 0.0
    %1001 = vmatprep.subr.mxu0 0.0
    %1002 = vmatpush2.msra.mxu0 0.0
    %1003 = vmatprep.subr.mxu0 0.0
    %1004 = vmatpush2.msra.mxu0 0.0
    %1005 = vmatprep.subr.mxu0 0.0
    %1006 = vmatpush2.msra.mxu0 0.0
    %1007 = vmatprep.subr.mxu0 0.0
    %1008 = vmatpush2.msra.mxu0 0.0
    %1009 = vmatprep.subr.mxu0 0.0
    %1010 = vmatpush2.msra.mxu0 0.0
    %1011 = vmatprep.subr.mxu0 0.0
    %1012 = vmatpush2.msra.mxu0 0.0
    %1013 = vmatprep.subr.mxu0 0.0
    %1014 = vmatpush2.msra.mxu0 0.0
    %1015 = vmatprep.subr.mxu0 0.0
    %1016 = vmatpush2.msra.mxu0 0.0
    %1017 = vmatprep.mubr.f32.mxu0 0.0
    %1018 = vmatmul.mubr.f32.gmra.mxu0 %v880
    %v1019 = vpop.f32.mrf.mxu0
    %v1020 = vadd.f32 %v388, %v1019
    %v1021 = vpop.f32.mrf.mxu0
    %1022 = vdwg.mxu0
    %v1023 = vadd.f32 %v242, %v949
    %v1024 = vxor.u32 %v1023, 2147483648
    %v1025 = vmul.f32 %v1024, 1.442695
    %v1026 = vpow.pop %v1025
    %v1027 = vadd.f32 %v1026, 1.0
    %v1028 = vrcp.pop %v1027
    %v1029 = vmul.f32 1.0, %v1028
    %v1030 = vadd.f32 %v244, %v951
    %v1031 = vxor.u32 %v1030, 2147483648
    %v1032 = vmul.f32 %v1031, 1.442695
    %v1033 = vpow.pop %v1032
    %v1034 = vadd.f32 %v1033, 1.0
    %v1035 = vrcp.pop %v1034
    %v1036 = vmul.f32 1.0, %v1035
    %v1037 = vmul.f32 %v1029, %v1020
    %v1038 = vadd.f32 %v352, %v1037
    %v1039 = vtanh.pop %v1038
    %v1040 = vsub.f32 1.0, %v1036
    %v1041 = vmul.f32 %v1040, %v1039
    %v1042 = vmul.f32 %v1036, %v880
    %v1043 = vadd.f32 %v1041, %v1042
    %1044 = vst [vmem:[#allocation2 + $0x18] sm:$0xff] %v1043
    %1045 = vmatprep.subr.mxu0 %v138
    %1046 = vmatpush1.msra.mxu0 %v137
    %1047 = vmatprep.subr.mxu0 %v135
    %1048 = vmatpush1.msra.mxu0 %v134
    %1049 = vmatprep.subr.mxu0 %v132
    %1050 = vmatpush1.msra.mxu0 %v131
    %1051 = vmatprep.subr.mxu0 %v129
    %1052 = vmatpush1.msra.mxu0 %v128
    %1053 = vmatprep.subr.mxu0 %v126
    %1054 = vmatpush1.msra.mxu0 %v125
    %1055 = vmatprep.subr.mxu0 %v123
    %1056 = vmatpush1.msra.mxu0 %v122
    %1057 = vmatprep.subr.mxu0 %v120
    %1058 = vmatpush1.msra.mxu0 %v119
    %1059 = vmatprep.subr.mxu0 %v117
    %1060 = vmatpush1.msra.mxu0 %v116
    %1061 = vmatprep.subr.mxu0 %v114
    %1062 = vmatpush1.msra.mxu0 %v113
    %1063 = vmatprep.subr.mxu0 %v111
    %1064 = vmatpush1.msra.mxu0 %v110
    %1065 = vmatprep.subr.mxu0 %v108
    %1066 = vmatpush1.msra.mxu0 %v107
    %1067 = vmatprep.subr.mxu0 %v105
    %1068 = vmatpush1.msra.mxu0 %v104
    %1069 = vmatprep.subr.mxu0 %v102
    %1070 = vmatpush1.msra.mxu0 %v101
    %1071 = vmatprep.subr.mxu0 %v99
    %1072 = vmatpush1.msra.mxu0 %v98
    %1073 = vmatprep.subr.mxu0 %v96
    %1074 = vmatpush1.msra.mxu0 %v95
    %1075 = vmatprep.subr.mxu0 %v93
    %1076 = vmatpush1.msra.mxu0 %v92
    %1077 = vmatprep.subr.mxu0 0.0
    %1078 = vmatpush2.msra.mxu0 0.0
    %1079 = vmatprep.subr.mxu0 0.0
    %1080 = vmatpush2.msra.mxu0 0.0
    %1081 = vmatprep.subr.mxu0 0.0
    %1082 = vmatpush2.msra.mxu0 0.0
    %1083 = vmatprep.subr.mxu0 0.0
    %1084 = vmatpush2.msra.mxu0 0.0
    %1085 = vmatprep.subr.mxu0 0.0
    %1086 = vmatpush2.msra.mxu0 0.0
    %1087 = vmatprep.subr.mxu0 0.0
    %1088 = vmatpush2.msra.mxu0 0.0
    %1089 = vmatprep.subr.mxu0 0.0
    %1090 = vmatpush2.msra.mxu0 0.0
    %1091 = vmatprep.subr.mxu0 0.0
    %1092 = vmatpush2.msra.mxu0 0.0
    %1093 = vmatprep.subr.mxu0 0.0
    %1094 = vmatpush2.msra.mxu0 0.0
    %1095 = vmatprep.subr.mxu0 0.0
    %1096 = vmatpush2.msra.mxu0 0.0
    %1097 = vmatprep.subr.mxu0 0.0
    %1098 = vmatpush2.msra.mxu0 0.0
    %1099 = vmatprep.subr.mxu0 0.0
    %1100 = vmatpush2.msra.mxu0 0.0
    %1101 = vmatprep.subr.mxu0 0.0
    %1102 = vmatpush2.msra.mxu0 0.0
    %1103 = vmatprep.subr.mxu0 0.0
    %1104 = vmatpush2.msra.mxu0 0.0
    %1105 = vmatprep.subr.mxu0 0.0
    %1106 = vmatpush2.msra.mxu0 0.0
    %1107 = vmatprep.subr.mxu0 0.0
    %1108 = vmatpush2.msra.mxu0 0.0
    %1109 = vmatprep.mubr.f32.mxu0 0.0
    %1110 = vmatmul.mubr.f32.gmra.mxu0 %v1043
    %v1111 = vpop.f32.mrf.mxu0
    %v1112 = vadd.f32 %v380, %v1111
    %v1113 = vpop.f32.mrf.mxu0
    %v1114 = vadd.f32 %v384, %v1113
    %1115 = vdwg.mxu0
    %1116 = vmatprep.subr.mxu0 0.0
    %1117 = vmatpush1.msra.mxu0 %v139
    %1118 = vmatprep.subr.mxu0 0.0
    %1119 = vmatpush1.msra.mxu0 %v136
    %1120 = vmatprep.subr.mxu0 0.0
    %1121 = vmatpush1.msra.mxu0 %v133
    %1122 = vmatprep.subr.mxu0 0.0
    %1123 = vmatpush1.msra.mxu0 %v130
    %1124 = vmatprep.subr.mxu0 0.0
    %1125 = vmatpush1.msra.mxu0 %v127
    %1126 = vmatprep.subr.mxu0 0.0
    %1127 = vmatpush1.msra.mxu0 %v124
    %1128 = vmatprep.subr.mxu0 0.0
    %1129 = vmatpush1.msra.mxu0 %v121
    %1130 = vmatprep.subr.mxu0 0.0
    %1131 = vmatpush1.msra.mxu0 %v118
    %1132 = vmatprep.subr.mxu0 0.0
    %1133 = vmatpush1.msra.mxu0 %v115
    %1134 = vmatprep.subr.mxu0 0.0
    %1135 = vmatpush1.msra.mxu0 %v112
    %1136 = vmatprep.subr.mxu0 0.0
    %1137 = vmatpush1.msra.mxu0 %v109
    %1138 = vmatprep.subr.mxu0 0.0
    %1139 = vmatpush1.msra.mxu0 %v106
    %1140 = vmatprep.subr.mxu0 0.0
    %1141 = vmatpush1.msra.mxu0 %v103
    %1142 = vmatprep.subr.mxu0 0.0
    %1143 = vmatpush1.msra.mxu0 %v100
    %1144 = vmatprep.subr.mxu0 0.0
    %1145 = vmatpush1.msra.mxu0 %v97
    %1146 = vmatprep.subr.mxu0 0.0
    %1147 = vmatpush1.msra.mxu0 %v94
    %1148 = vmatprep.subr.mxu0 0.0
    %1149 = vmatpush2.msra.mxu0 0.0
    %1150 = vmatprep.subr.mxu0 0.0
    %1151 = vmatpush2.msra.mxu0 0.0
    %1152 = vmatprep.subr.mxu0 0.0
    %1153 = vmatpush2.msra.mxu0 0.0
    %1154 = vmatprep.subr.mxu0 0.0
    %1155 = vmatpush2.msra.mxu0 0.0
    %1156 = vmatprep.subr.mxu0 0.0
    %1157 = vmatpush2.msra.mxu0 0.0
    %1158 = vmatprep.subr.mxu0 0.0
    %1159 = vmatpush2.msra.mxu0 0.0
    %1160 = vmatprep.subr.mxu0 0.0
    %1161 = vmatpush2.msra.mxu0 0.0
    %1162 = vmatprep.subr.mxu0 0.0
    %1163 = vmatpush2.msra.mxu0 0.0
    %1164 = vmatprep.subr.mxu0 0.0
    %1165 = vmatpush2.msra.mxu0 0.0
    %1166 = vmatprep.subr.mxu0 0.0
    %1167 = vmatpush2.msra.mxu0 0.0
    %1168 = vmatprep.subr.mxu0 0.0
    %1169 = vmatpush2.msra.mxu0 0.0
    %1170 = vmatprep.subr.mxu0 0.0
    %1171 = vmatpush2.msra.mxu0 0.0
    %1172 = vmatprep.subr.mxu0 0.0
    %1173 = vmatpush2.msra.mxu0 0.0
    %1174 = vmatprep.subr.mxu0 0.0
    %1175 = vmatpush2.msra.mxu0 0.0
    %1176 = vmatprep.subr.mxu0 0.0
    %1177 = vmatpush2.msra.mxu0 0.0
    %1178 = vmatprep.subr.mxu0 0.0
    %1179 = vmatpush2.msra.mxu0 0.0
    %1180 = vmatprep.mubr.f32.mxu0 0.0
    %1181 = vmatmul.mubr.f32.gmra.mxu0 %v1043
    %v1182 = vpop.f32.mrf.mxu0
    %v1183 = vadd.f32 %v388, %v1182
    %v1184 = vpop.f32.mrf.mxu0
    %1185 = vdwg.mxu0
    %v1186 = vadd.f32 %v248, %v1112
    %v1187 = vxor.u32 %v1186, 2147483648
    %v1188 = vmul.f32 %v1187, 1.442695
    %v1189 = vpow.pop %v1188
    %v1190 = vadd.f32 %v1189, 1.0
    %v1191 = vrcp.pop %v1190
    %v1192 = vmul.f32 1.0, %v1191
    %v1193 = vadd.f32 %v250, %v1114
    %v1194 = vxor.u32 %v1193, 2147483648
    %v1195 = vmul.f32 %v1194, 1.442695
    %v1196 = vpow.pop %v1195
    %v1197 = vadd.f32 %v1196, 1.0
    %v1198 = vrcp.pop %v1197
    %v1199 = vmul.f32 1.0, %v1198
    %v1200 = vmul.f32 %v1192, %v1183
    %v1201 = vadd.f32 %v357, %v1200
    %v1202 = vtanh.pop %v1201
    %v1203 = vsub.f32 1.0, %v1199
    %v1204 = vmul.f32 %v1203, %v1202
    %v1205 = vmul.f32 %v1199, %v1043
    %v1206 = vadd.f32 %v1204, %v1205
    %1207 = vst [vmem:[#allocation2 + $0x20] sm:$0xff] %v1206
    %1208 = vmatprep.subr.mxu0 %v138
    %1209 = vmatpush1.msra.mxu0 %v137
    %1210 = vmatprep.subr.mxu0 %v135
    %1211 = vmatpush1.msra.mxu0 %v134
    %1212 = vmatprep.subr.mxu0 %v132
    %1213 = vmatpush1.msra.mxu0 %v131
    %1214 = vmatprep.subr.mxu0 %v129
    %1215 = vmatpush1.msra.mxu0 %v128
    %1216 = vmatprep.subr.mxu0 %v126
    %1217 = vmatpush1.msra.mxu0 %v125
    %1218 = vmatprep.subr.mxu0 %v123
    %1219 = vmatpush1.msra.mxu0 %v122
    %1220 = vmatprep.subr.mxu0 %v120
    %1221 = vmatpush1.msra.mxu0 %v119
    %1222 = vmatprep.subr.mxu0 %v117
    %1223 = vmatpush1.msra.mxu0 %v116
    %1224 = vmatprep.subr.mxu0 %v114
    %1225 = vmatpush1.msra.mxu0 %v113
    %1226 = vmatprep.subr.mxu0 %v111
    %1227 = vmatpush1.msra.mxu0 %v110
    %1228 = vmatprep.subr.mxu0 %v108
    %1229 = vmatpush1.msra.mxu0 %v107
    %1230 = vmatprep.subr.mxu0 %v105
    %1231 = vmatpush1.msra.mxu0 %v104
    %1232 = vmatprep.subr.mxu0 %v102
    %1233 = vmatpush1.msra.mxu0 %v101
    %1234 = vmatprep.subr.mxu0 %v99
    %1235 = vmatpush1.msra.mxu0 %v98
    %1236 = vmatprep.subr.mxu0 %v96
    %1237 = vmatpush1.msra.mxu0 %v95
    %1238 = vmatprep.subr.mxu0 %v93
    %1239 = vmatpush1.msra.mxu0 %v92
    %1240 = vmatprep.subr.mxu0 0.0
    %1241 = vmatpush2.msra.mxu0 0.0
    %1242 = vmatprep.subr.mxu0 0.0
    %1243 = vmatpush2.msra.mxu0 0.0
    %1244 = vmatprep.subr.mxu0 0.0
    %1245 = vmatpush2.msra.mxu0 0.0
    %1246 = vmatprep.subr.mxu0 0.0
    %1247 = vmatpush2.msra.mxu0 0.0
    %1248 = vmatprep.subr.mxu0 0.0
    %1249 = vmatpush2.msra.mxu0 0.0
    %1250 = vmatprep.subr.mxu0 0.0
    %1251 = vmatpush2.msra.mxu0 0.0
    %1252 = vmatprep.subr.mxu0 0.0
    %1253 = vmatpush2.msra.mxu0 0.0
    %1254 = vmatprep.subr.mxu0 0.0
    %1255 = vmatpush2.msra.mxu0 0.0
    %1256 = vmatprep.subr.mxu0 0.0
    %1257 = vmatpush2.msra.mxu0 0.0
    %1258 = vmatprep.subr.mxu0 0.0
    %1259 = vmatpush2.msra.mxu0 0.0
    %1260 = vmatprep.subr.mxu0 0.0
    %1261 = vmatpush2.msra.mxu0 0.0
    %1262 = vmatprep.subr.mxu0 0.0
    %1263 = vmatpush2.msra.mxu0 0.0
    %1264 = vmatprep.subr.mxu0 0.0
    %1265 = vmatpush2.msra.mxu0 0.0
    %1266 = vmatprep.subr.mxu0 0.0
    %1267 = vmatpush2.msra.mxu0 0.0
    %1268 = vmatprep.subr.mxu0 0.0
    %1269 = vmatpush2.msra.mxu0 0.0
    %1270 = vmatprep.subr.mxu0 0.0
    %1271 = vmatpush2.msra.mxu0 0.0
    %1272 = vmatprep.mubr.f32.mxu0 0.0
    %1273 = vmatmul.mubr.f32.gmra.mxu0 %v1206
    %v1274 = vpop.f32.mrf.mxu0
    %v1275 = vadd.f32 %v380, %v1274
    %v1276 = vpop.f32.mrf.mxu0
    %v1277 = vadd.f32 %v384, %v1276
    %1278 = vdwg.mxu0
    %1279 = vmatprep.subr.mxu0 0.0
    %1280 = vmatpush1.msra.mxu0 %v139
    %1281 = vmatprep.subr.mxu0 0.0
    %1282 = vmatpush1.msra.mxu0 %v136
    %1283 = vmatprep.subr.mxu0 0.0
    %1284 = vmatpush1.msra.mxu0 %v133
    %1285 = vmatprep.subr.mxu0 0.0
    %1286 = vmatpush1.msra.mxu0 %v130
    %1287 = vmatprep.subr.mxu0 0.0
    %1288 = vmatpush1.msra.mxu0 %v127
    %1289 = vmatprep.subr.mxu0 0.0
    %1290 = vmatpush1.msra.mxu0 %v124
    %1291 = vmatprep.subr.mxu0 0.0
    %1292 = vmatpush1.msra.mxu0 %v121
    %1293 = vmatprep.subr.mxu0 0.0
    %1294 = vmatpush1.msra.mxu0 %v118
    %1295 = vmatprep.subr.mxu0 0.0
    %1296 = vmatpush1.msra.mxu0 %v115
    %1297 = vmatprep.subr.mxu0 0.0
    %1298 = vmatpush1.msra.mxu0 %v112
    %1299 = vmatprep.subr.mxu0 0.0
    %1300 = vmatpush1.msra.mxu0 %v109
    %1301 = vmatprep.subr.mxu0 0.0
    %1302 = vmatpush1.msra.mxu0 %v106
    %1303 = vmatprep.subr.mxu0 0.0
    %1304 = vmatpush1.msra.mxu0 %v103
    %1305 = vmatprep.subr.mxu0 0.0
    %1306 = vmatpush1.msra.mxu0 %v100
    %1307 = vmatprep.subr.mxu0 0.0
    %1308 = vmatpush1.msra.mxu0 %v97
    %1309 = vmatprep.subr.mxu0 0.0
    %1310 = vmatpush1.msra.mxu0 %v94
    %1311 = vmatprep.subr.mxu0 0.0
    %1312 = vmatpush2.msra.mxu0 0.0
    %1313 = vmatprep.subr.mxu0 0.0
    %1314 = vmatpush2.msra.mxu0 0.0
    %1315 = vmatprep.subr.mxu0 0.0
    %1316 = vmatpush2.msra.mxu0 0.0
    %1317 = vmatprep.subr.mxu0 0.0
    %1318 = vmatpush2.msra.mxu0 0.0
    %1319 = vmatprep.subr.mxu0 0.0
    %1320 = vmatpush2.msra.mxu0 0.0
    %1321 = vmatprep.subr.mxu0 0.0
    %1322 = vmatpush2.msra.mxu0 0.0
    %1323 = vmatprep.subr.mxu0 0.0
    %1324 = vmatpush2.msra.mxu0 0.0
    %1325 = vmatprep.subr.mxu0 0.0
    %1326 = vmatpush2.msra.mxu0 0.0
    %1327 = vmatprep.subr.mxu0 0.0
    %1328 = vmatpush2.msra.mxu0 0.0
    %1329 = vmatprep.subr.mxu0 0.0
    %1330 = vmatpush2.msra.mxu0 0.0
    %1331 = vmatprep.subr.mxu0 0.0
    %1332 = vmatpush2.msra.mxu0 0.0
    %1333 = vmatprep.subr.mxu0 0.0
    %1334 = vmatpush2.msra.mxu0 0.0
    %1335 = vmatprep.subr.mxu0 0.0
    %1336 = vmatpush2.msra.mxu0 0.0
    %1337 = vmatprep.subr.mxu0 0.0
    %1338 = vmatpush2.msra.mxu0 0.0
    %1339 = vmatprep.subr.mxu0 0.0
    %1340 = vmatpush2.msra.mxu0 0.0
    %1341 = vmatprep.subr.mxu0 0.0
    %1342 = vmatpush2.msra.mxu0 0.0
    %1343 = vmatprep.mubr.f32.mxu0 0.0
    %1344 = vmatmul.mubr.f32.gmra.mxu0 %v1206
    %v1345 = vpop.f32.mrf.mxu0
    %v1346 = vadd.f32 %v388, %v1345
    %v1347 = vpop.f32.mrf.mxu0
    %1348 = vdwg.mxu0
    %v1349 = vadd.f32 %v254, %v1275
    %v1350 = vxor.u32 %v1349, 2147483648
    %v1351 = vmul.f32 %v1350, 1.442695
    %v1352 = vpow.pop %v1351
    %v1353 = vadd.f32 %v1352, 1.0
    %v1354 = vrcp.pop %v1353
    %v1355 = vmul.f32 1.0, %v1354
    %v1356 = vadd.f32 %v256, %v1277
    %v1357 = vxor.u32 %v1356, 2147483648
    %v1358 = vmul.f32 %v1357, 1.442695
    %v1359 = vpow.pop %v1358
    %v1360 = vadd.f32 %v1359, 1.0
    %v1361 = vrcp.pop %v1360
    %v1362 = vmul.f32 1.0, %v1361
    %v1363 = vmul.f32 %v1355, %v1346
    %v1364 = vadd.f32 %v362, %v1363
    %v1365 = vtanh.pop %v1364
    %v1366 = vsub.f32 1.0, %v1362
    %v1367 = vmul.f32 %v1366, %v1365
    %v1368 = vmul.f32 %v1362, %v1206
    %v1369 = vadd.f32 %v1367, %v1368
    %1370 = vst [vmem:[#allocation2 + $0x28] sm:$0xff] %v1369
    %1371 = vmatprep.subr.mxu0 %v138
    %1372 = vmatpush1.msra.mxu0 %v137
    %1373 = vmatprep.subr.mxu0 %v135
    %1374 = vmatpush1.msra.mxu0 %v134
    %1375 = vmatprep.subr.mxu0 %v132
    %1376 = vmatpush1.msra.mxu0 %v131
    %1377 = vmatprep.subr.mxu0 %v129
    %1378 = vmatpush1.msra.mxu0 %v128
    %1379 = vmatprep.subr.mxu0 %v126
    %1380 = vmatpush1.msra.mxu0 %v125
    %1381 = vmatprep.subr.mxu0 %v123
    %1382 = vmatpush1.msra.mxu0 %v122
    %1383 = vmatprep.subr.mxu0 %v120
    %1384 = vmatpush1.msra.mxu0 %v119
    %1385 = vmatprep.subr.mxu0 %v117
    %1386 = vmatpush1.msra.mxu0 %v116
    %1387 = vmatprep.subr.mxu0 %v114
    %1388 = vmatpush1.msra.mxu0 %v113
    %1389 = vmatprep.subr.mxu0 %v111
    %1390 = vmatpush1.msra.mxu0 %v110
    %1391 = vmatprep.subr.mxu0 %v108
    %1392 = vmatpush1.msra.mxu0 %v107
    %1393 = vmatprep.subr.mxu0 %v105
    %1394 = vmatpush1.msra.mxu0 %v104
    %1395 = vmatprep.subr.mxu0 %v102
    %1396 = vmatpush1.msra.mxu0 %v101
    %1397 = vmatprep.subr.mxu0 %v99
    %1398 = vmatpush1.msra.mxu0 %v98
    %1399 = vmatprep.subr.mxu0 %v96
    %1400 = vmatpush1.msra.mxu0 %v95
    %1401 = vmatprep.subr.mxu0 %v93
    %1402 = vmatpush1.msra.mxu0 %v92
    %1403 = vmatprep.subr.mxu0 0.0
    %1404 = vmatpush2.msra.mxu0 0.0
    %1405 = vmatprep.subr.mxu0 0.0
    %1406 = vmatpush2.msra.mxu0 0.0
    %1407 = vmatprep.subr.mxu0 0.0
    %1408 = vmatpush2.msra.mxu0 0.0
    %1409 = vmatprep.subr.mxu0 0.0
    %1410 = vmatpush2.msra.mxu0 0.0
    %1411 = vmatprep.subr.mxu0 0.0
    %1412 = vmatpush2.msra.mxu0 0.0
    %1413 = vmatprep.subr.mxu0 0.0
    %1414 = vmatpush2.msra.mxu0 0.0
    %1415 = vmatprep.subr.mxu0 0.0
    %1416 = vmatpush2.msra.mxu0 0.0
    %1417 = vmatprep.subr.mxu0 0.0
    %1418 = vmatpush2.msra.mxu0 0.0
    %1419 = vmatprep.subr.mxu0 0.0
    %1420 = vmatpush2.msra.mxu0 0.0
    %1421 = vmatprep.subr.mxu0 0.0
    %1422 = vmatpush2.msra.mxu0 0.0
    %1423 = vmatprep.subr.mxu0 0.0
    %1424 = vmatpush2.msra.mxu0 0.0
    %1425 = vmatprep.subr.mxu0 0.0
    %1426 = vmatpush2.msra.mxu0 0.0
    %1427 = vmatprep.subr.mxu0 0.0
    %1428 = vmatpush2.msra.mxu0 0.0
    %1429 = vmatprep.subr.mxu0 0.0
    %1430 = vmatpush2.msra.mxu0 0.0
    %1431 = vmatprep.subr.mxu0 0.0
    %1432 = vmatpush2.msra.mxu0 0.0
    %1433 = vmatprep.subr.mxu0 0.0
    %1434 = vmatpush2.msra.mxu0 0.0
    %1435 = vmatprep.mubr.f32.mxu0 0.0
    %1436 = vmatmul.mubr.f32.gmra.mxu0 %v1369
    %v1437 = vpop.f32.mrf.mxu0
    %v1438 = vadd.f32 %v380, %v1437
    %v1439 = vpop.f32.mrf.mxu0
    %v1440 = vadd.f32 %v384, %v1439
    %1441 = vdwg.mxu0
    %1442 = vmatprep.subr.mxu0 0.0
    %1443 = vmatpush1.msra.mxu0 %v139
    %1444 = vmatprep.subr.mxu0 0.0
    %1445 = vmatpush1.msra.mxu0 %v136
    %1446 = vmatprep.subr.mxu0 0.0
    %1447 = vmatpush1.msra.mxu0 %v133
    %1448 = vmatprep.subr.mxu0 0.0
    %1449 = vmatpush1.msra.mxu0 %v130
    %1450 = vmatprep.subr.mxu0 0.0
    %1451 = vmatpush1.msra.mxu0 %v127
    %1452 = vmatprep.subr.mxu0 0.0
    %1453 = vmatpush1.msra.mxu0 %v124
    %1454 = vmatprep.subr.mxu0 0.0
    %1455 = vmatpush1.msra.mxu0 %v121
    %1456 = vmatprep.subr.mxu0 0.0
    %1457 = vmatpush1.msra.mxu0 %v118
    %1458 = vmatprep.subr.mxu0 0.0
    %1459 = vmatpush1.msra.mxu0 %v115
    %1460 = vmatprep.subr.mxu0 0.0
    %1461 = vmatpush1.msra.mxu0 %v112
    %1462 = vmatprep.subr.mxu0 0.0
    %1463 = vmatpush1.msra.mxu0 %v109
    %1464 = vmatprep.subr.mxu0 0.0
    %1465 = vmatpush1.msra.mxu0 %v106
    %1466 = vmatprep.subr.mxu0 0.0
    %1467 = vmatpush1.msra.mxu0 %v103
    %1468 = vmatprep.subr.mxu0 0.0
    %1469 = vmatpush1.msra.mxu0 %v100
    %1470 = vmatprep.subr.mxu0 0.0
    %1471 = vmatpush1.msra.mxu0 %v97
    %1472 = vmatprep.subr.mxu0 0.0
    %1473 = vmatpush1.msra.mxu0 %v94
    %1474 = vmatprep.subr.mxu0 0.0
    %1475 = vmatpush2.msra.mxu0 0.0
    %1476 = vmatprep.subr.mxu0 0.0
    %1477 = vmatpush2.msra.mxu0 0.0
    %1478 = vmatprep.subr.mxu0 0.0
    %1479 = vmatpush2.msra.mxu0 0.0
    %1480 = vmatprep.subr.mxu0 0.0
    %1481 = vmatpush2.msra.mxu0 0.0
    %1482 = vmatprep.subr.mxu0 0.0
    %1483 = vmatpush2.msra.mxu0 0.0
    %1484 = vmatprep.subr.mxu0 0.0
    %1485 = vmatpush2.msra.mxu0 0.0
    %1486 = vmatprep.subr.mxu0 0.0
    %1487 = vmatpush2.msra.mxu0 0.0
    %1488 = vmatprep.subr.mxu0 0.0
    %1489 = vmatpush2.msra.mxu0 0.0
    %1490 = vmatprep.subr.mxu0 0.0
    %1491 = vmatpush2.msra.mxu0 0.0
    %1492 = vmatprep.subr.mxu0 0.0
    %1493 = vmatpush2.msra.mxu0 0.0
    %1494 = vmatprep.subr.mxu0 0.0
    %1495 = vmatpush2.msra.mxu0 0.0
    %1496 = vmatprep.subr.mxu0 0.0
    %1497 = vmatpush2.msra.mxu0 0.0
    %1498 = vmatprep.subr.mxu0 0.0
    %1499 = vmatpush2.msra.mxu0 0.0
    %1500 = vmatprep.subr.mxu0 0.0
    %1501 = vmatpush2.msra.mxu0 0.0
    %1502 = vmatprep.subr.mxu0 0.0
    %1503 = vmatpush2.msra.mxu0 0.0
    %1504 = vmatprep.subr.mxu0 0.0
    %1505 = vmatpush2.msra.mxu0 0.0
    %1506 = vmatprep.mubr.f32.mxu0 0.0
    %1507 = vmatmul.mubr.f32.gmra.mxu0 %v1369
    %v1508 = vpop.f32.mrf.mxu0
    %v1509 = vadd.f32 %v388, %v1508
    %v1510 = vpop.f32.mrf.mxu0
    %1511 = vdwg.mxu0
    %v1512 = vadd.f32 %v260, %v1438
    %v1513 = vxor.u32 %v1512, 2147483648
    %v1514 = vmul.f32 %v1513, 1.442695
    %v1515 = vpow.pop %v1514
    %v1516 = vadd.f32 %v1515, 1.0
    %v1517 = vrcp.pop %v1516
    %v1518 = vmul.f32 1.0, %v1517
    %v1519 = vadd.f32 %v262, %v1440
    %v1520 = vxor.u32 %v1519, 2147483648
    %v1521 = vmul.f32 %v1520, 1.442695
    %v1522 = vpow.pop %v1521
    %v1523 = vadd.f32 %v1522, 1.0
    %v1524 = vrcp.pop %v1523
    %v1525 = vmul.f32 1.0, %v1524
    %v1526 = vmul.f32 %v1518, %v1509
    %v1527 = vadd.f32 %v367, %v1526
    %v1528 = vtanh.pop %v1527
    %v1529 = vsub.f32 1.0, %v1525
    %v1530 = vmul.f32 %v1529, %v1528
    %v1531 = vmul.f32 %v1525, %v1369
    %v1532 = vadd.f32 %v1530, %v1531
    %1533 = vst [vmem:[#allocation2 + $0x30] sm:$0xff] %v1532
    %1534 = vmatprep.subr.mxu0 %v138
    %1535 = vmatpush1.msra.mxu0 %v137
    %1536 = vmatprep.subr.mxu0 %v135
    %1537 = vmatpush1.msra.mxu0 %v134
    %1538 = vmatprep.subr.mxu0 %v132
    %1539 = vmatpush1.msra.mxu0 %v131
    %1540 = vmatprep.subr.mxu0 %v129
    %1541 = vmatpush1.msra.mxu0 %v128
    %1542 = vmatprep.subr.mxu0 %v126
    %1543 = vmatpush1.msra.mxu0 %v125
    %1544 = vmatprep.subr.mxu0 %v123
    %1545 = vmatpush1.msra.mxu0 %v122
    %1546 = vmatprep.subr.mxu0 %v120
    %1547 = vmatpush1.msra.mxu0 %v119
    %1548 = vmatprep.subr.mxu0 %v117
    %1549 = vmatpush1.msra.mxu0 %v116
    %1550 = vmatprep.subr.mxu0 %v114
    %1551 = vmatpush1.msra.mxu0 %v113
    %1552 = vmatprep.subr.mxu0 %v111
    %1553 = vmatpush1.msra.mxu0 %v110
    %1554 = vmatprep.subr.mxu0 %v108
    %1555 = vmatpush1.msra.mxu0 %v107
    %1556 = vmatprep.subr.mxu0 %v105
    %1557 = vmatpush1.msra.mxu0 %v104
    %1558 = vmatprep.subr.mxu0 %v102
    %1559 = vmatpush1.msra.mxu0 %v101
    %1560 = vmatprep.subr.mxu0 %v99
    %1561 = vmatpush1.msra.mxu0 %v98
    %1562 = vmatprep.subr.mxu0 %v96
    %1563 = vmatpush1.msra.mxu0 %v95
    %1564 = vmatprep.subr.mxu0 %v93
    %1565 = vmatpush1.msra.mxu0 %v92
    %1566 = vmatprep.subr.mxu0 0.0
    %1567 = vmatpush2.msra.mxu0 0.0
    %1568 = vmatprep.subr.mxu0 0.0
    %1569 = vmatpush2.msra.mxu0 0.0
    %1570 = vmatprep.subr.mxu0 0.0
    %1571 = vmatpush2.msra.mxu0 0.0
    %1572 = vmatprep.subr.mxu0 0.0
    %1573 = vmatpush2.msra.mxu0 0.0
    %1574 = vmatprep.subr.mxu0 0.0
    %1575 = vmatpush2.msra.mxu0 0.0
    %1576 = vmatprep.subr.mxu0 0.0
    %1577 = vmatpush2.msra.mxu0 0.0
    %1578 = vmatprep.subr.mxu0 0.0
    %1579 = vmatpush2.msra.mxu0 0.0
    %1580 = vmatprep.subr.mxu0 0.0
    %1581 = vmatpush2.msra.mxu0 0.0
    %1582 = vmatprep.subr.mxu0 0.0
    %1583 = vmatpush2.msra.mxu0 0.0
    %1584 = vmatprep.subr.mxu0 0.0
    %1585 = vmatpush2.msra.mxu0 0.0
    %1586 = vmatprep.subr.mxu0 0.0
    %1587 = vmatpush2.msra.mxu0 0.0
    %1588 = vmatprep.subr.mxu0 0.0
    %1589 = vmatpush2.msra.mxu0 0.0
    %1590 = vmatprep.subr.mxu0 0.0
    %1591 = vmatpush2.msra.mxu0 0.0
    %1592 = vmatprep.subr.mxu0 0.0
    %1593 = vmatpush2.msra.mxu0 0.0
    %1594 = vmatprep.subr.mxu0 0.0
    %1595 = vmatpush2.msra.mxu0 0.0
    %1596 = vmatprep.subr.mxu0 0.0
    %1597 = vmatpush2.msra.mxu0 0.0
    %1598 = vmatprep.mubr.f32.mxu0 0.0
    %1599 = vmatmul.mubr.f32.gmra.mxu0 %v1532
    %v1600 = vpop.f32.mrf.mxu0
    %v1601 = vadd.f32 %v380, %v1600
    %v1602 = vpop.f32.mrf.mxu0
    %v1603 = vadd.f32 %v384, %v1602
    %1604 = vdwg.mxu0
    %1605 = vmatprep.subr.mxu0 0.0
    %1606 = vmatpush1.msra.mxu0 %v139
    %1607 = vmatprep.subr.mxu0 0.0
    %1608 = vmatpush1.msra.mxu0 %v136
    %1609 = vmatprep.subr.mxu0 0.0
    %1610 = vmatpush1.msra.mxu0 %v133
    %1611 = vmatprep.subr.mxu0 0.0
    %1612 = vmatpush1.msra.mxu0 %v130
    %1613 = vmatprep.subr.mxu0 0.0
    %1614 = vmatpush1.msra.mxu0 %v127
    %1615 = vmatprep.subr.mxu0 0.0
    %1616 = vmatpush1.msra.mxu0 %v124
    %1617 = vmatprep.subr.mxu0 0.0
    %1618 = vmatpush1.msra.mxu0 %v121
    %1619 = vmatprep.subr.mxu0 0.0
    %1620 = vmatpush1.msra.mxu0 %v118
    %1621 = vmatprep.subr.mxu0 0.0
    %1622 = vmatpush1.msra.mxu0 %v115
    %1623 = vmatprep.subr.mxu0 0.0
    %1624 = vmatpush1.msra.mxu0 %v112
    %1625 = vmatprep.subr.mxu0 0.0
    %1626 = vmatpush1.msra.mxu0 %v109
    %1627 = vmatprep.subr.mxu0 0.0
    %1628 = vmatpush1.msra.mxu0 %v106
    %1629 = vmatprep.subr.mxu0 0.0
    %1630 = vmatpush1.msra.mxu0 %v103
    %1631 = vmatprep.subr.mxu0 0.0
    %1632 = vmatpush1.msra.mxu0 %v100
    %1633 = vmatprep.subr.mxu0 0.0
    %1634 = vmatpush1.msra.mxu0 %v97
    %1635 = vmatprep.subr.mxu0 0.0
    %1636 = vmatpush1.msra.mxu0 %v94
    %1637 = vmatprep.subr.mxu0 0.0
    %1638 = vmatpush2.msra.mxu0 0.0
    %1639 = vmatprep.subr.mxu0 0.0
    %1640 = vmatpush2.msra.mxu0 0.0
    %1641 = vmatprep.subr.mxu0 0.0
    %1642 = vmatpush2.msra.mxu0 0.0
    %1643 = vmatprep.subr.mxu0 0.0
    %1644 = vmatpush2.msra.mxu0 0.0
    %1645 = vmatprep.subr.mxu0 0.0
    %1646 = vmatpush2.msra.mxu0 0.0
    %1647 = vmatprep.subr.mxu0 0.0
    %1648 = vmatpush2.msra.mxu0 0.0
    %1649 = vmatprep.subr.mxu0 0.0
    %1650 = vmatpush2.msra.mxu0 0.0
    %1651 = vmatprep.subr.mxu0 0.0
    %1652 = vmatpush2.msra.mxu0 0.0
    %1653 = vmatprep.subr.mxu0 0.0
    %1654 = vmatpush2.msra.mxu0 0.0
    %1655 = vmatprep.subr.mxu0 0.0
    %1656 = vmatpush2.msra.mxu0 0.0
    %1657 = vmatprep.subr.mxu0 0.0
    %1658 = vmatpush2.msra.mxu0 0.0
    %1659 = vmatprep.subr.mxu0 0.0
    %1660 = vmatpush2.msra.mxu0 0.0
    %1661 = vmatprep.subr.mxu0 0.0
    %1662 = vmatpush2.msra.mxu0 0.0
    %1663 = vmatprep.subr.mxu0 0.0
    %1664 = vmatpush2.msra.mxu0 0.0
    %1665 = vmatprep.subr.mxu0 0.0
    %1666 = vmatpush2.msra.mxu0 0.0
    %1667 = vmatprep.subr.mxu0 0.0
    %1668 = vmatpush2.msra.mxu0 0.0
    %1669 = vmatprep.mubr.f32.mxu0 0.0
    %1670 = vmatmul.mubr.f32.gmra.mxu0 %v1532
    %v1671 = vpop.f32.mrf.mxu0
    %v1672 = vadd.f32 %v388, %v1671
    %v1673 = vpop.f32.mrf.mxu0
    %1674 = vdwg.mxu0
    %v1675 = vadd.f32 %v266, %v1601
    %v1676 = vxor.u32 %v1675, 2147483648
    %v1677 = vmul.f32 %v1676, 1.442695
    %v1678 = vpow.pop %v1677
    %v1679 = vadd.f32 %v1678, 1.0
    %v1680 = vrcp.pop %v1679
    %v1681 = vmul.f32 1.0, %v1680
    %v1682 = vadd.f32 %v268, %v1603
    %v1683 = vxor.u32 %v1682, 2147483648
    %v1684 = vmul.f32 %v1683, 1.442695
    %v1685 = vpow.pop %v1684
    %v1686 = vadd.f32 %v1685, 1.0
    %v1687 = vrcp.pop %v1686
    %v1688 = vmul.f32 1.0, %v1687
    %v1689 = vmul.f32 %v1681, %v1672
    %v1690 = vadd.f32 %v372, %v1689
    %v1691 = vtanh.pop %v1690
    %v1692 = vsub.f32 1.0, %v1688
    %v1693 = vmul.f32 %v1692, %v1691
    %v1694 = vmul.f32 %v1688, %v1532
    %v1695 = vadd.f32 %v1693, %v1694
    %1696 = vst [vmem:[#allocation2 + $0x38] sm:$0xff] %v1695
    %v1697 = vld [vmem:[#allocation2] sm:$0xff]
    %v1698 = vld [vmem:[#allocation2 + $0x8] sm:$0xff]
    %v1699 = vld [vmem:[#allocation2 + $0x10] sm:$0xff]
    %v1700 = vld [vmem:[#allocation2 + $0x18] sm:$0xff]
    %v1701 = vld [vmem:[#allocation2 + $0x20] sm:$0xff]
    %v1702 = vld [vmem:[#allocation2 + $0x28] sm:$0xff]
    %v1703 = vld [vmem:[#allocation2 + $0x30] sm:$0xff]
    %v1704 = vld [vmem:[#allocation2 + $0x38] sm:$0xff]
    %s1705 = scalar_lea.vmem %s2, 384
    %v1706 = vld [vmem:[%s1705] sm:$0xff]
    %v1707 = vld [vmem:[%s1705 + $0x8] sm:$0xff]
    %v1708 = vld [vmem:[%s1705 + $0x10] sm:$0xff]
    %v1709 = vld [vmem:[%s1705 + $0x18] sm:$0xff]
    %v1710 = vld [vmem:[%s1705 + $0x20] sm:$0xff]
    %v1711 = vld [vmem:[%s1705 + $0x28] sm:$0xff]
    %v1712 = vld [vmem:[%s1705 + $0x30] sm:$0xff]
    %v1713 = vld [vmem:[%s1705 + $0x38] sm:$0xff]
    %v1714 = vld [vmem:[%s1705 + $0x40] sm:$0xff]
    %v1715 = vld [vmem:[%s1705 + $0x48] sm:$0xff]
    %v1716 = vld [vmem:[%s1705 + $0x50] sm:$0xff]
    %v1717 = vld [vmem:[%s1705 + $0x58] sm:$0xff]
    %v1718 = vld [vmem:[%s1705 + $0x60] sm:$0xff]
    %v1719 = vld [vmem:[%s1705 + $0x68] sm:$0xff]
    %v1720 = vld [vmem:[%s1705 + $0x70] sm:$0xff]
    %v1721 = vld [vmem:[%s1705 + $0x78] sm:$0xff]
    %v1722 = vld [vmem:[%s1705 + $0x80] sm:$0xff]
    %v1723 = vld [vmem:[%s1705 + $0x88] sm:$0xff]
    %v1724 = vld [vmem:[%s1705 + $0x90] sm:$0xff]
    %v1725 = vld [vmem:[%s1705 + $0x98] sm:$0xff]
    %v1726 = vld [vmem:[%s1705 + $0xa0] sm:$0xff]
    %v1727 = vld [vmem:[%s1705 + $0xa8] sm:$0xff]
    %v1728 = vld [vmem:[%s1705 + $0xb0] sm:$0xff]
    %v1729 = vld [vmem:[%s1705 + $0xb8] sm:$0xff]
    %v1730 = vld [vmem:[%s1705 + $0xc0] sm:$0xff]
    %v1731 = vld [vmem:[%s1705 + $0xc8] sm:$0xff]
    %v1732 = vld [vmem:[%s1705 + $0xd0] sm:$0xff]
    %v1733 = vld [vmem:[%s1705 + $0xd8] sm:$0xff]
    %v1734 = vld [vmem:[%s1705 + $0xe0] sm:$0xff]
    %v1735 = vld [vmem:[%s1705 + $0xe8] sm:$0xff]
    %v1736 = vld [vmem:[%s1705 + $0xf0] sm:$0xff]
    %v1737 = vld [vmem:[%s1705 + $0xf8] sm:$0xff]
    %v1738 = vld [vmem:[%s1705 + $0x100] sm:$0xff]
    %v1739 = vld [vmem:[%s1705 + $0x108] sm:$0xff]
    %v1740 = vld [vmem:[%s1705 + $0x110] sm:$0xff]
    %v1741 = vld [vmem:[%s1705 + $0x118] sm:$0xff]
    %v1742 = vld [vmem:[%s1705 + $0x120] sm:$0xff]
    %v1743 = vld [vmem:[%s1705 + $0x128] sm:$0xff]
    %v1744 = vld [vmem:[%s1705 + $0x130] sm:$0xff]
    %v1745 = vld [vmem:[%s1705 + $0x138] sm:$0xff]
    %v1746 = vld [vmem:[%s1705 + $0x140] sm:$0xff]
    %v1747 = vld [vmem:[%s1705 + $0x148] sm:$0xff]
    %v1748 = vld [vmem:[%s1705 + $0x150] sm:$0xff]
    %v1749 = vld [vmem:[%s1705 + $0x158] sm:$0xff]
    %v1750 = vld [vmem:[%s1705 + $0x160] sm:$0xff]
    %v1751 = vld [vmem:[%s1705 + $0x168] sm:$0xff]
    %v1752 = vld [vmem:[%s1705 + $0x170] sm:$0xff]
    %v1753 = vld [vmem:[%s1705 + $0x178] sm:$0xff]
    %s1754 = scalar_lea.vmem %s3, 384
    %v1755 = vld [vmem:[%s1754] sm:$0xff]
    %v1756 = vld [vmem:[%s1754 + $0x8] sm:$0xff]
    %v1757 = vld [vmem:[%s1754 + $0x10] sm:$0xff]
    %v1758 = vld [vmem:[%s1754 + $0x18] sm:$0xff]
    %v1759 = vld [vmem:[%s1754 + $0x20] sm:$0xff]
    %v1760 = vld [vmem:[%s1754 + $0x28] sm:$0xff]
    %v1761 = vld [vmem:[%s1754 + $0x30] sm:$0xff]
    %v1762 = vld [vmem:[%s1754 + $0x38] sm:$0xff]
    %v1763 = vld [vmem:[%s1754 + $0x40] sm:$0xff]
    %v1764 = vld [vmem:[%s1754 + $0x48] sm:$0xff]
    %v1765 = vld [vmem:[%s1754 + $0x50] sm:$0xff]
    %v1766 = vld [vmem:[%s1754 + $0x58] sm:$0xff]
    %v1767 = vld [vmem:[%s1754 + $0x60] sm:$0xff]
    %v1768 = vld [vmem:[%s1754 + $0x68] sm:$0xff]
    %v1769 = vld [vmem:[%s1754 + $0x70] sm:$0xff]
    %v1770 = vld [vmem:[%s1754 + $0x78] sm:$0xff]
    %v1771 = vld [vmem:[%s1754 + $0x80] sm:$0xff]
    %v1772 = vld [vmem:[%s1754 + $0x88] sm:$0xff]
    %v1773 = vld [vmem:[%s1754 + $0x90] sm:$0xff]
    %v1774 = vld [vmem:[%s1754 + $0x98] sm:$0xff]
    %v1775 = vld [vmem:[%s1754 + $0xa0] sm:$0xff]
    %v1776 = vld [vmem:[%s1754 + $0xa8] sm:$0xff]
    %v1777 = vld [vmem:[%s1754 + $0xb0] sm:$0xff]
    %v1778 = vld [vmem:[%s1754 + $0xb8] sm:$0xff]
    %v1779 = vld [vmem:[%s1754 + $0xc0] sm:$0xff]
    %v1780 = vld [vmem:[%s1754 + $0xc8] sm:$0xff]
    %v1781 = vld [vmem:[%s1754 + $0xd0] sm:$0xff]
    %v1782 = vld [vmem:[%s1754 + $0xd8] sm:$0xff]
    %v1783 = vld [vmem:[%s1754 + $0xe0] sm:$0xff]
    %v1784 = vld [vmem:[%s1754 + $0xe8] sm:$0xff]
    %v1785 = vld [vmem:[%s1754 + $0xf0] sm:$0xff]
    %v1786 = vld [vmem:[%s1754 + $0xf8] sm:$0xff]
    %v1787 = vld [vmem:[%s1754 + $0x100] sm:$0xff]
    %v1788 = vld [vmem:[%s1754 + $0x108] sm:$0xff]
    %v1789 = vld [vmem:[%s1754 + $0x110] sm:$0xff]
    %v1790 = vld [vmem:[%s1754 + $0x118] sm:$0xff]
    %v1791 = vld [vmem:[%s1754 + $0x120] sm:$0xff]
    %v1792 = vld [vmem:[%s1754 + $0x128] sm:$0xff]
    %v1793 = vld [vmem:[%s1754 + $0x130] sm:$0xff]
    %v1794 = vld [vmem:[%s1754 + $0x138] sm:$0xff]
    %v1795 = vld [vmem:[%s1754 + $0x140] sm:$0xff]
    %v1796 = vld [vmem:[%s1754 + $0x148] sm:$0xff]
    %v1797 = vld [vmem:[%s1754 + $0x150] sm:$0xff]
    %v1798 = vld [vmem:[%s1754 + $0x158] sm:$0xff]
    %v1799 = vld [vmem:[%s1754 + $0x160] sm:$0xff]
    %v1800 = vld [vmem:[%s1754 + $0x168] sm:$0xff]
    %v1801 = vld [vmem:[%s1754 + $0x170] sm:$0xff]
    %v1802 = vld [vmem:[%s1754 + $0x178] sm:$0xff]
    %s1803 = scalar_lea.vmem %s4, 3
    %v1804 = vld [vmem:[%s1803] sm:$0x7]
    %v1806 = vlaneseq
    %v1807 = vshrl.u32 %v1806, 7
    %v1808 = vsub.s32 0, %v1807
    %v1809 = vrot.slane %v1804, %v1808
    %v1810 = vlaneseq
    %v1811 = vshrl.u32 %v1810, 7
    %v1812 = vsub.s32 1, %v1811
    %v1813 = vrot.slane %v1804, %v1812
    %v1814 = vlaneseq
    %v1815 = vshrl.u32 %v1814, 7
    %v1816 = vsub.s32 2, %v1815
    %v1817 = vrot.slane %v1804, %v1816
    %1821 = vmatprep.subr.mxu0 %v1752
    %1822 = vmatpush1.msra.mxu0 %v1751
    %1823 = vmatprep.subr.mxu0 %v1749
    %1824 = vmatpush1.msra.mxu0 %v1748
    %1825 = vmatprep.subr.mxu0 %v1746
    %1826 = vmatpush1.msra.mxu0 %v1745
    %1827 = vmatprep.subr.mxu0 %v1743
    %1828 = vmatpush1.msra.mxu0 %v1742
    %1829 = vmatprep.subr.mxu0 %v1740
    %1830 = vmatpush1.msra.mxu0 %v1739
    %1831 = vmatprep.subr.mxu0 %v1737
    %1832 = vmatpush1.msra.mxu0 %v1736
    %1833 = vmatprep.subr.mxu0 %v1734
    %1834 = vmatpush1.msra.mxu0 %v1733
    %1835 = vmatprep.subr.mxu0 %v1731
    %1836 = vmatpush1.msra.mxu0 %v1730
    %1837 = vmatprep.subr.mxu0 %v1728
    %1838 = vmatpush1.msra.mxu0 %v1727
    %1839 = vmatprep.subr.mxu0 %v1725
    %1840 = vmatpush1.msra.mxu0 %v1724
    %1841 = vmatprep.subr.mxu0 %v1722
    %1842 = vmatpush1.msra.mxu0 %v1721
    %1843 = vmatprep.subr.mxu0 %v1719
    %1844 = vmatpush1.msra.mxu0 %v1718
    %1845 = vmatprep.subr.mxu0 %v1716
    %1846 = vmatpush1.msra.mxu0 %v1715
    %1847 = vmatprep.subr.mxu0 %v1713
    %1848 = vmatpush1.msra.mxu0 %v1712
    %1849 = vmatprep.subr.mxu0 %v1710
    %1850 = vmatpush1.msra.mxu0 %v1709
    %1851 = vmatprep.subr.mxu0 %v1707
    %1852 = vmatpush1.msra.mxu0 %v1706
    %1853 = vmatprep.subr.mxu0 0.0
    %1854 = vmatpush2.msra.mxu0 0.0
    %1855 = vmatprep.subr.mxu0 0.0
    %1856 = vmatpush2.msra.mxu0 0.0
    %1857 = vmatprep.subr.mxu0 0.0
    %1858 = vmatpush2.msra.mxu0 0.0
    %1859 = vmatprep.subr.mxu0 0.0
    %1860 = vmatpush2.msra.mxu0 0.0
    %1861 = vmatprep.subr.mxu0 0.0
    %1862 = vmatpush2.msra.mxu0 0.0
    %1863 = vmatprep.subr.mxu0 0.0
    %1864 = vmatpush2.msra.mxu0 0.0
    %1865 = vmatprep.subr.mxu0 0.0
    %1866 = vmatpush2.msra.mxu0 0.0
    %1867 = vmatprep.subr.mxu0 0.0
    %1868 = vmatpush2.msra.mxu0 0.0
    %1869 = vmatprep.subr.mxu0 0.0
    %1870 = vmatpush2.msra.mxu0 0.0
    %1871 = vmatprep.subr.mxu0 0.0
    %1872 = vmatpush2.msra.mxu0 0.0
    %1873 = vmatprep.subr.mxu0 0.0
    %1874 = vmatpush2.msra.mxu0 0.0
    %1875 = vmatprep.subr.mxu0 0.0
    %1876 = vmatpush2.msra.mxu0 0.0
    %1877 = vmatprep.subr.mxu0 0.0
    %1878 = vmatpush2.msra.mxu0 0.0
    %1879 = vmatprep.subr.mxu0 0.0
    %1880 = vmatpush2.msra.mxu0 0.0
    %1881 = vmatprep.subr.mxu0 0.0
    %1882 = vmatpush2.msra.mxu0 0.0
    %1883 = vmatprep.subr.mxu0 0.0
    %1884 = vmatpush2.msra.mxu0 0.0
    %1885 = vmatprep.mubr.f32.mxu0 0.0
    %1886 = vmatmul.mubr.f32.gmra.mxu0 %v1697
    %v1887 = vpop.f32.mrf.mxu0
    %v1888 = vadd.f32 %v1809, %v1887
    %v1889 = vpop.f32.mrf.mxu0
    %v1890 = vadd.f32 %v1813, %v1889
    %1891 = vmatprep.mubr.f32.mxu0 0.0
    %1892 = vmatmul.mubr.f32.gmra.mxu0 %v1698
    %v1893 = vpop.f32.mrf.mxu0
    %v1894 = vadd.f32 %v1809, %v1893
    %v1895 = vpop.f32.mrf.mxu0
    %v1896 = vadd.f32 %v1813, %v1895
    %1897 = vmatprep.mubr.f32.mxu0 0.0
    %1898 = vmatmul.mubr.f32.gmra.mxu0 %v1699
    %v1899 = vpop.f32.mrf.mxu0
    %v1900 = vadd.f32 %v1809, %v1899
    %v1901 = vpop.f32.mrf.mxu0
    %v1902 = vadd.f32 %v1813, %v1901
    %1903 = vmatprep.mubr.f32.mxu0 0.0
    %1904 = vmatmul.mubr.f32.gmra.mxu0 %v1700
    %v1905 = vpop.f32.mrf.mxu0
    %v1906 = vadd.f32 %v1809, %v1905
    %v1907 = vpop.f32.mrf.mxu0
    %v1908 = vadd.f32 %v1813, %v1907
    %1909 = vmatprep.mubr.f32.mxu0 0.0
    %1910 = vmatmul.mubr.f32.gmra.mxu0 %v1701
    %v1911 = vpop.f32.mrf.mxu0
    %v1912 = vadd.f32 %v1809, %v1911
    %v1913 = vpop.f32.mrf.mxu0
    %v1914 = vadd.f32 %v1813, %v1913
    %1915 = vmatprep.mubr.f32.mxu0 0.0
    %1916 = vmatmul.mubr.f32.gmra.mxu0 %v1702
    %v1917 = vpop.f32.mrf.mxu0
    %v1918 = vadd.f32 %v1809, %v1917
    %v1919 = vpop.f32.mrf.mxu0
    %v1920 = vadd.f32 %v1813, %v1919
    %1921 = vmatprep.mubr.f32.mxu0 0.0
    %1922 = vmatmul.mubr.f32.gmra.mxu0 %v1703
    %v1923 = vpop.f32.mrf.mxu0
    %v1924 = vadd.f32 %v1809, %v1923
    %v1925 = vpop.f32.mrf.mxu0
    %v1926 = vadd.f32 %v1813, %v1925
    %1927 = vmatprep.mubr.f32.mxu0 0.0
    %1928 = vmatmul.mubr.f32.gmra.mxu0 %v1704
    %v1929 = vpop.f32.mrf.mxu0
    %v1930 = vadd.f32 %v1809, %v1929
    %v1931 = vpop.f32.mrf.mxu0
    %v1932 = vadd.f32 %v1813, %v1931
    %1933 = vdwg.mxu0
    %1934 = vmatprep.subr.mxu0 0.0
    %1935 = vmatpush1.msra.mxu0 %v1753
    %1936 = vmatprep.subr.mxu0 0.0
    %1937 = vmatpush1.msra.mxu0 %v1750
    %1938 = vmatprep.subr.mxu0 0.0
    %1939 = vmatpush1.msra.mxu0 %v1747
    %1940 = vmatprep.subr.mxu0 0.0
    %1941 = vmatpush1.msra.mxu0 %v1744
    %1942 = vmatprep.subr.mxu0 0.0
    %1943 = vmatpush1.msra.mxu0 %v1741
    %1944 = vmatprep.subr.mxu0 0.0
    %1945 = vmatpush1.msra.mxu0 %v1738
    %1946 = vmatprep.subr.mxu0 0.0
    %1947 = vmatpush1.msra.mxu0 %v1735
    %1948 = vmatprep.subr.mxu0 0.0
    %1949 = vmatpush1.msra.mxu0 %v1732
    %1950 = vmatprep.subr.mxu0 0.0
    %1951 = vmatpush1.msra.mxu0 %v1729
    %1952 = vmatprep.subr.mxu0 0.0
    %1953 = vmatpush1.msra.mxu0 %v1726
    %1954 = vmatprep.subr.mxu0 0.0
    %1955 = vmatpush1.msra.mxu0 %v1723
    %1956 = vmatprep.subr.mxu0 0.0
    %1957 = vmatpush1.msra.mxu0 %v1720
    %1958 = vmatprep.subr.mxu0 0.0
    %1959 = vmatpush1.msra.mxu0 %v1717
    %1960 = vmatprep.subr.mxu0 0.0
    %1961 = vmatpush1.msra.mxu0 %v1714
    %1962 = vmatprep.subr.mxu0 0.0
    %1963 = vmatpush1.msra.mxu0 %v1711
    %1964 = vmatprep.subr.mxu0 0.0
    %1965 = vmatpush1.msra.mxu0 %v1708
    %1966 = vmatprep.subr.mxu0 0.0
    %1967 = vmatpush2.msra.mxu0 0.0
    %1968 = vmatprep.subr.mxu0 0.0
    %1969 = vmatpush2.msra.mxu0 0.0
    %1970 = vmatprep.subr.mxu0 0.0
    %1971 = vmatpush2.msra.mxu0 0.0
    %1972 = vmatprep.subr.mxu0 0.0
    %1973 = vmatpush2.msra.mxu0 0.0
    %1974 = vmatprep.subr.mxu0 0.0
    %1975 = vmatpush2.msra.mxu0 0.0
    %1976 = vmatprep.subr.mxu0 0.0
    %1977 = vmatpush2.msra.mxu0 0.0
    %1978 = vmatprep.subr.mxu0 0.0
    %1979 = vmatpush2.msra.mxu0 0.0
    %1980 = vmatprep.subr.mxu0 0.0
    %1981 = vmatpush2.msra.mxu0 0.0
    %1982 = vmatprep.subr.mxu0 0.0
    %1983 = vmatpush2.msra.mxu0 0.0
    %1984 = vmatprep.subr.mxu0 0.0
    %1985 = vmatpush2.msra.mxu0 0.0
    %1986 = vmatprep.subr.mxu0 0.0
    %1987 = vmatpush2.msra.mxu0 0.0
    %1988 = vmatprep.subr.mxu0 0.0
    %1989 = vmatpush2.msra.mxu0 0.0
    %1990 = vmatprep.subr.mxu0 0.0
    %1991 = vmatpush2.msra.mxu0 0.0
    %1992 = vmatprep.subr.mxu0 0.0
    %1993 = vmatpush2.msra.mxu0 0.0
    %1994 = vmatprep.subr.mxu0 0.0
    %1995 = vmatpush2.msra.mxu0 0.0
    %1996 = vmatprep.subr.mxu0 0.0
    %1997 = vmatpush2.msra.mxu0 0.0
    %1998 = vmatprep.mubr.f32.mxu0 0.0
    %1999 = vmatmul.mubr.f32.gmra.mxu0 %v1697
    %v2000 = vpop.f32.mrf.mxu0
    %v2001 = vadd.f32 %v1817, %v2000
    %v2002 = vpop.f32.mrf.mxu0
    %2003 = vmatprep.mubr.f32.mxu0 0.0
    %2004 = vmatmul.mubr.f32.gmra.mxu0 %v1698
    %v2005 = vpop.f32.mrf.mxu0
    %v2006 = vadd.f32 %v1817, %v2005
    %v2007 = vpop.f32.mrf.mxu0
    %2008 = vmatprep.mubr.f32.mxu0 0.0
    %2009 = vmatmul.mubr.f32.gmra.mxu0 %v1699
    %v2010 = vpop.f32.mrf.mxu0
    %v2011 = vadd.f32 %v1817, %v2010
    %v2012 = vpop.f32.mrf.mxu0
    %2013 = vmatprep.mubr.f32.mxu0 0.0
    %2014 = vmatmul.mubr.f32.gmra.mxu0 %v1700
    %v2015 = vpop.f32.mrf.mxu0
    %v2016 = vadd.f32 %v1817, %v2015
    %v2017 = vpop.f32.mrf.mxu0
    %2018 = vmatprep.mubr.f32.mxu0 0.0
    %2019 = vmatmul.mubr.f32.gmra.mxu0 %v1701
    %v2020 = vpop.f32.mrf.mxu0
    %v2021 = vadd.f32 %v1817, %v2020
    %v2022 = vpop.f32.mrf.mxu0
    %2023 = vmatprep.mubr.f32.mxu0 0.0
    %2024 = vmatmul.mubr.f32.gmra.mxu0 %v1702
    %v2025 = vpop.f32.mrf.mxu0
    %v2026 = vadd.f32 %v1817, %v2025
    %v2027 = vpop.f32.mrf.mxu0
    %2028 = vmatprep.mubr.f32.mxu0 0.0
    %2029 = vmatmul.mubr.f32.gmra.mxu0 %v1703
    %v2030 = vpop.f32.mrf.mxu0
    %v2031 = vadd.f32 %v1817, %v2030
    %v2032 = vpop.f32.mrf.mxu0
    %2033 = vmatprep.mubr.f32.mxu0 0.0
    %2034 = vmatmul.mubr.f32.gmra.mxu0 %v1704
    %v2035 = vpop.f32.mrf.mxu0
    %v2036 = vadd.f32 %v1817, %v2035
    %v2037 = vpop.f32.mrf.mxu0
    %2038 = vdwg.mxu0
    %s2039 = scalar_lea.vmem %s5, 3
    %v2040 = vld [vmem:[%s2039] sm:$0x7]
    %v2042 = vlaneseq
    %v2043 = vshrl.u32 %v2042, 7
    %v2044 = vsub.s32 0, %v2043
    %v2045 = vrot.slane %v2040, %v2044
    %v2046 = vlaneseq
    %v2047 = vshrl.u32 %v2046, 7
    %v2048 = vsub.s32 1, %v2047
    %v2049 = vrot.slane %v2040, %v2048
    %v2050 = vlaneseq
    %v2051 = vshrl.u32 %v2050, 7
    %v2052 = vsub.s32 2, %v2051
    %v2053 = vrot.slane %v2040, %v2052
    %s2057 = scalar_lea.vmem %s1, 8
    %v2058 = vld [vmem:[%s2057] sm:$0xff]
    %2059 = vmatprep.subr.mxu0 %v1801
    %2060 = vmatpush1.msra.mxu0 %v1800
    %2061 = vmatprep.subr.mxu0 %v1798
    %2062 = vmatpush1.msra.mxu0 %v1797
    %2063 = vmatprep.subr.mxu0 %v1795
    %2064 = vmatpush1.msra.mxu0 %v1794
    %2065 = vmatprep.subr.mxu0 %v1792
    %2066 = vmatpush1.msra.mxu0 %v1791
    %2067 = vmatprep.subr.mxu0 %v1789
    %2068 = vmatpush1.msra.mxu0 %v1788
    %2069 = vmatprep.subr.mxu0 %v1786
    %2070 = vmatpush1.msra.mxu0 %v1785
    %2071 = vmatprep.subr.mxu0 %v1783
    %2072 = vmatpush1.msra.mxu0 %v1782
    %2073 = vmatprep.subr.mxu0 %v1780
    %2074 = vmatpush1.msra.mxu0 %v1779
    %2075 = vmatprep.subr.mxu0 %v1777
    %2076 = vmatpush1.msra.mxu0 %v1776
    %2077 = vmatprep.subr.mxu0 %v1774
    %2078 = vmatpush1.msra.mxu0 %v1773
    %2079 = vmatprep.subr.mxu0 %v1771
    %2080 = vmatpush1.msra.mxu0 %v1770
    %2081 = vmatprep.subr.mxu0 %v1768
    %2082 = vmatpush1.msra.mxu0 %v1767
    %2083 = vmatprep.subr.mxu0 %v1765
    %2084 = vmatpush1.msra.mxu0 %v1764
    %2085 = vmatprep.subr.mxu0 %v1762
    %2086 = vmatpush1.msra.mxu0 %v1761
    %2087 = vmatprep.subr.mxu0 %v1759
    %2088 = vmatpush1.msra.mxu0 %v1758
    %2089 = vmatprep.subr.mxu0 %v1756
    %2090 = vmatpush1.msra.mxu0 %v1755
    %2091 = vmatprep.subr.mxu0 0.0
    %2092 = vmatpush2.msra.mxu0 0.0
    %2093 = vmatprep.subr.mxu0 0.0
    %2094 = vmatpush2.msra.mxu0 0.0
    %2095 = vmatprep.subr.mxu0 0.0
    %2096 = vmatpush2.msra.mxu0 0.0
    %2097 = vmatprep.subr.mxu0 0.0
    %2098 = vmatpush2.msra.mxu0 0.0
    %2099 = vmatprep.subr.mxu0 0.0
    %2100 = vmatpush2.msra.mxu0 0.0
    %2101 = vmatprep.subr.mxu0 0.0
    %2102 = vmatpush2.msra.mxu0 0.0
    %2103 = vmatprep.subr.mxu0 0.0
    %2104 = vmatpush2.msra.mxu0 0.0
    %2105 = vmatprep.subr.mxu0 0.0
    %2106 = vmatpush2.msra.mxu0 0.0
    %2107 = vmatprep.subr.mxu0 0.0
    %2108 = vmatpush2.msra.mxu0 0.0
    %2109 = vmatprep.subr.mxu0 0.0
    %2110 = vmatpush2.msra.mxu0 0.0
    %2111 = vmatprep.subr.mxu0 0.0
    %2112 = vmatpush2.msra.mxu0 0.0
    %2113 = vmatprep.subr.mxu0 0.0
    %2114 = vmatpush2.msra.mxu0 0.0
    %2115 = vmatprep.subr.mxu0 0.0
    %2116 = vmatpush2.msra.mxu0 0.0
    %2117 = vmatprep.subr.mxu0 0.0
    %2118 = vmatpush2.msra.mxu0 0.0
    %2119 = vmatprep.subr.mxu0 0.0
    %2120 = vmatpush2.msra.mxu0 0.0
    %2121 = vmatprep.subr.mxu0 0.0
    %2122 = vmatpush2.msra.mxu0 0.0
    %2123 = vmatprep.mubr.f32.mxu0 0.0
    %2124 = vmatmul.mubr.f32.gmra.mxu0 %v2058
    %v2125 = vpop.f32.mrf.mxu0
    %v2126 = vadd.f32 %v2045, %v2125
    %v2127 = vpop.f32.mrf.mxu0
    %v2128 = vadd.f32 %v2049, %v2127
    %2129 = vdwg.mxu0
    %2130 = vmatprep.subr.mxu0 0.0
    %2131 = vmatpush1.msra.mxu0 %v1802
    %2132 = vmatprep.subr.mxu0 0.0
    %2133 = vmatpush1.msra.mxu0 %v1799
    %2134 = vmatprep.subr.mxu0 0.0
    %2135 = vmatpush1.msra.mxu0 %v1796
    %2136 = vmatprep.subr.mxu0 0.0
    %2137 = vmatpush1.msra.mxu0 %v1793
    %2138 = vmatprep.subr.mxu0 0.0
    %2139 = vmatpush1.msra.mxu0 %v1790
    %2140 = vmatprep.subr.mxu0 0.0
    %2141 = vmatpush1.msra.mxu0 %v1787
    %2142 = vmatprep.subr.mxu0 0.0
    %2143 = vmatpush1.msra.mxu0 %v1784
    %2144 = vmatprep.subr.mxu0 0.0
    %2145 = vmatpush1.msra.mxu0 %v1781
    %2146 = vmatprep.subr.mxu0 0.0
    %2147 = vmatpush1.msra.mxu0 %v1778
    %2148 = vmatprep.subr.mxu0 0.0
    %2149 = vmatpush1.msra.mxu0 %v1775
    %2150 = vmatprep.subr.mxu0 0.0
    %2151 = vmatpush1.msra.mxu0 %v1772
    %2152 = vmatprep.subr.mxu0 0.0
    %2153 = vmatpush1.msra.mxu0 %v1769
    %2154 = vmatprep.subr.mxu0 0.0
    %2155 = vmatpush1.msra.mxu0 %v1766
    %2156 = vmatprep.subr.mxu0 0.0
    %2157 = vmatpush1.msra.mxu0 %v1763
    %2158 = vmatprep.subr.mxu0 0.0
    %2159 = vmatpush1.msra.mxu0 %v1760
    %2160 = vmatprep.subr.mxu0 0.0
    %2161 = vmatpush1.msra.mxu0 %v1757
    %2162 = vmatprep.subr.mxu0 0.0
    %2163 = vmatpush2.msra.mxu0 0.0
    %2164 = vmatprep.subr.mxu0 0.0
    %2165 = vmatpush2.msra.mxu0 0.0
    %2166 = vmatprep.subr.mxu0 0.0
    %2167 = vmatpush2.msra.mxu0 0.0
    %2168 = vmatprep.subr.mxu0 0.0
    %2169 = vmatpush2.msra.mxu0 0.0
    %2170 = vmatprep.subr.mxu0 0.0
    %2171 = vmatpush2.msra.mxu0 0.0
    %2172 = vmatprep.subr.mxu0 0.0
    %2173 = vmatpush2.msra.mxu0 0.0
    %2174 = vmatprep.subr.mxu0 0.0
    %2175 = vmatpush2.msra.mxu0 0.0
    %2176 = vmatprep.subr.mxu0 0.0
    %2177 = vmatpush2.msra.mxu0 0.0
    %2178 = vmatprep.subr.mxu0 0.0
    %2179 = vmatpush2.msra.mxu0 0.0
    %2180 = vmatprep.subr.mxu0 0.0
    %2181 = vmatpush2.msra.mxu0 0.0
    %2182 = vmatprep.subr.mxu0 0.0
    %2183 = vmatpush2.msra.mxu0 0.0
    %2184 = vmatprep.subr.mxu0 0.0
    %2185 = vmatpush2.msra.mxu0 0.0
    %2186 = vmatprep.subr.mxu0 0.0
    %2187 = vmatpush2.msra.mxu0 0.0
    %2188 = vmatprep.subr.mxu0 0.0
    %2189 = vmatpush2.msra.mxu0 0.0
    %2190 = vmatprep.subr.mxu0 0.0
    %2191 = vmatpush2.msra.mxu0 0.0
    %2192 = vmatprep.subr.mxu0 0.0
    %2193 = vmatpush2.msra.mxu0 0.0
    %2194 = vmatprep.mubr.f32.mxu0 0.0
    %2195 = vmatmul.mubr.f32.gmra.mxu0 %v2058
    %v2196 = vpop.f32.mrf.mxu0
    %v2197 = vadd.f32 %v2053, %v2196
    %v2198 = vpop.f32.mrf.mxu0
    %2199 = vdwg.mxu0
    %v2200 = vadd.f32 %v1888, %v2126
    %v2201 = vxor.u32 %v2200, 2147483648
    %v2202 = vmul.f32 %v2201, 1.442695
    %v2203 = vpow.pop %v2202
    %v2204 = vadd.f32 %v2203, 1.0
    %v2205 = vrcp.pop %v2204
    %v2206 = vmul.f32 1.0, %v2205
    %v2207 = vadd.f32 %v1890, %v2128
    %v2208 = vxor.u32 %v2207, 2147483648
    %v2209 = vmul.f32 %v2208, 1.442695
    %v2210 = vpow.pop %v2209
    %v2211 = vadd.f32 %v2210, 1.0
    %v2212 = vrcp.pop %v2211
    %v2213 = vmul.f32 1.0, %v2212
    %v2214 = vmul.f32 %v2206, %v2197
    %v2215 = vadd.f32 %v2001, %v2214
    %v2216 = vtanh.pop %v2215
    %v2217 = vsub.f32 1.0, %v2213
    %v2218 = vmul.f32 %v2217, %v2216
    %v2219 = vmul.f32 %v2213, %v2058
    %v2220 = vadd.f32 %v2218, %v2219
    %2221 = vmatprep.subr.mxu0 %v1801
    %2222 = vmatpush1.msra.mxu0 %v1800
    %2223 = vmatprep.subr.mxu0 %v1798
    %2224 = vmatpush1.msra.mxu0 %v1797
    %2225 = vmatprep.subr.mxu0 %v1795
    %2226 = vmatpush1.msra.mxu0 %v1794
    %2227 = vmatprep.subr.mxu0 %v1792
    %2228 = vmatpush1.msra.mxu0 %v1791
    %2229 = vmatprep.subr.mxu0 %v1789
    %2230 = vmatpush1.msra.mxu0 %v1788
    %2231 = vmatprep.subr.mxu0 %v1786
    %2232 = vmatpush1.msra.mxu0 %v1785
    %2233 = vmatprep.subr.mxu0 %v1783
    %2234 = vmatpush1.msra.mxu0 %v1782
    %2235 = vmatprep.subr.mxu0 %v1780
    %2236 = vmatpush1.msra.mxu0 %v1779
    %2237 = vmatprep.subr.mxu0 %v1777
    %2238 = vmatpush1.msra.mxu0 %v1776
    %2239 = vmatprep.subr.mxu0 %v1774
    %2240 = vmatpush1.msra.mxu0 %v1773
    %2241 = vmatprep.subr.mxu0 %v1771
    %2242 = vmatpush1.msra.mxu0 %v1770
    %2243 = vmatprep.subr.mxu0 %v1768
    %2244 = vmatpush1.msra.mxu0 %v1767
    %2245 = vmatprep.subr.mxu0 %v1765
    %2246 = vmatpush1.msra.mxu0 %v1764
    %2247 = vmatprep.subr.mxu0 %v1762
    %2248 = vmatpush1.msra.mxu0 %v1761
    %2249 = vmatprep.subr.mxu0 %v1759
    %2250 = vmatpush1.msra.mxu0 %v1758
    %2251 = vmatprep.subr.mxu0 %v1756
    %2252 = vmatpush1.msra.mxu0 %v1755
    %2253 = vmatprep.subr.mxu0 0.0
    %2254 = vmatpush2.msra.mxu0 0.0
    %2255 = vmatprep.subr.mxu0 0.0
    %2256 = vmatpush2.msra.mxu0 0.0
    %2257 = vmatprep.subr.mxu0 0.0
    %2258 = vmatpush2.msra.mxu0 0.0
    %2259 = vmatprep.subr.mxu0 0.0
    %2260 = vmatpush2.msra.mxu0 0.0
    %2261 = vmatprep.subr.mxu0 0.0
    %2262 = vmatpush2.msra.mxu0 0.0
    %2263 = vmatprep.subr.mxu0 0.0
    %2264 = vmatpush2.msra.mxu0 0.0
    %2265 = vmatprep.subr.mxu0 0.0
    %2266 = vmatpush2.msra.mxu0 0.0
    %2267 = vmatprep.subr.mxu0 0.0
    %2268 = vmatpush2.msra.mxu0 0.0
    %2269 = vmatprep.subr.mxu0 0.0
    %2270 = vmatpush2.msra.mxu0 0.0
    %2271 = vmatprep.subr.mxu0 0.0
    %2272 = vmatpush2.msra.mxu0 0.0
    %2273 = vmatprep.subr.mxu0 0.0
    %2274 = vmatpush2.msra.mxu0 0.0
    %2275 = vmatprep.subr.mxu0 0.0
    %2276 = vmatpush2.msra.mxu0 0.0
    %2277 = vmatprep.subr.mxu0 0.0
    %2278 = vmatpush2.msra.mxu0 0.0
    %2279 = vmatprep.subr.mxu0 0.0
    %2280 = vmatpush2.msra.mxu0 0.0
    %2281 = vmatprep.subr.mxu0 0.0
    %2282 = vmatpush2.msra.mxu0 0.0
    %2283 = vmatprep.subr.mxu0 0.0
    %2284 = vmatpush2.msra.mxu0 0.0
    %2285 = vmatprep.mubr.f32.mxu0 0.0
    %2286 = vmatmul.mubr.f32.gmra.mxu0 %v2220
    %v2287 = vpop.f32.mrf.mxu0
    %v2288 = vadd.f32 %v2045, %v2287
    %v2289 = vpop.f32.mrf.mxu0
    %v2290 = vadd.f32 %v2049, %v2289
    %2291 = vdwg.mxu0
    %2292 = vmatprep.subr.mxu0 0.0
    %2293 = vmatpush1.msra.mxu0 %v1802
    %2294 = vmatprep.subr.mxu0 0.0
    %2295 = vmatpush1.msra.mxu0 %v1799
    %2296 = vmatprep.subr.mxu0 0.0
    %2297 = vmatpush1.msra.mxu0 %v1796
    %2298 = vmatprep.subr.mxu0 0.0
    %2299 = vmatpush1.msra.mxu0 %v1793
    %2300 = vmatprep.subr.mxu0 0.0
    %2301 = vmatpush1.msra.mxu0 %v1790
    %2302 = vmatprep.subr.mxu0 0.0
    %2303 = vmatpush1.msra.mxu0 %v1787
    %2304 = vmatprep.subr.mxu0 0.0
    %2305 = vmatpush1.msra.mxu0 %v1784
    %2306 = vmatprep.subr.mxu0 0.0
    %2307 = vmatpush1.msra.mxu0 %v1781
    %2308 = vmatprep.subr.mxu0 0.0
    %2309 = vmatpush1.msra.mxu0 %v1778
    %2310 = vmatprep.subr.mxu0 0.0
    %2311 = vmatpush1.msra.mxu0 %v1775
    %2312 = vmatprep.subr.mxu0 0.0
    %2313 = vmatpush1.msra.mxu0 %v1772
    %2314 = vmatprep.subr.mxu0 0.0
    %2315 = vmatpush1.msra.mxu0 %v1769
    %2316 = vmatprep.subr.mxu0 0.0
    %2317 = vmatpush1.msra.mxu0 %v1766
    %2318 = vmatprep.subr.mxu0 0.0
    %2319 = vmatpush1.msra.mxu0 %v1763
    %2320 = vmatprep.subr.mxu0 0.0
    %2321 = vmatpush1.msra.mxu0 %v1760
    %2322 = vmatprep.subr.mxu0 0.0
    %2323 = vmatpush1.msra.mxu0 %v1757
    %2324 = vmatprep.subr.mxu0 0.0
    %2325 = vmatpush2.msra.mxu0 0.0
    %2326 = vmatprep.subr.mxu0 0.0
    %2327 = vmatpush2.msra.mxu0 0.0
    %2328 = vmatprep.subr.mxu0 0.0
    %2329 = vmatpush2.msra.mxu0 0.0
    %2330 = vmatprep.subr.mxu0 0.0
    %2331 = vmatpush2.msra.mxu0 0.0
    %2332 = vmatprep.subr.mxu0 0.0
    %2333 = vmatpush2.msra.mxu0 0.0
    %2334 = vmatprep.subr.mxu0 0.0
    %2335 = vmatpush2.msra.mxu0 0.0
    %2336 = vmatprep.subr.mxu0 0.0
    %2337 = vmatpush2.msra.mxu0 0.0
    %2338 = vmatprep.subr.mxu0 0.0
    %2339 = vmatpush2.msra.mxu0 0.0
    %2340 = vmatprep.subr.mxu0 0.0
    %2341 = vmatpush2.msra.mxu0 0.0
    %2342 = vmatprep.subr.mxu0 0.0
    %2343 = vmatpush2.msra.mxu0 0.0
    %2344 = vmatprep.subr.mxu0 0.0
    %2345 = vmatpush2.msra.mxu0 0.0
    %2346 = vmatprep.subr.mxu0 0.0
    %2347 = vmatpush2.msra.mxu0 0.0
    %2348 = vmatprep.subr.mxu0 0.0
    %2349 = vmatpush2.msra.mxu0 0.0
    %2350 = vmatprep.subr.mxu0 0.0
    %2351 = vmatpush2.msra.mxu0 0.0
    %2352 = vmatprep.subr.mxu0 0.0
    %2353 = vmatpush2.msra.mxu0 0.0
    %2354 = vmatprep.subr.mxu0 0.0
    %2355 = vmatpush2.msra.mxu0 0.0
    %2356 = vmatprep.mubr.f32.mxu0 0.0
    %2357 = vmatmul.mubr.f32.gmra.mxu0 %v2220
    %v2358 = vpop.f32.mrf.mxu0
    %v2359 = vadd.f32 %v2053, %v2358
    %v2360 = vpop.f32.mrf.mxu0
    %2361 = vdwg.mxu0
    %v2362 = vadd.f32 %v1894, %v2288
    %v2363 = vxor.u32 %v2362, 2147483648
    %v2364 = vmul.f32 %v2363, 1.442695
    %v2365 = vpow.pop %v2364
    %v2366 = vadd.f32 %v2365, 1.0
    %v2367 = vrcp.pop %v2366
    %v2368 = vmul.f32 1.0, %v2367
    %v2369 = vadd.f32 %v1896, %v2290
    %v2370 = vxor.u32 %v2369, 2147483648
    %v2371 = vmul.f32 %v2370, 1.442695
    %v2372 = vpow.pop %v2371
    %v2373 = vadd.f32 %v2372, 1.0
    %v2374 = vrcp.pop %v2373
    %v2375 = vmul.f32 1.0, %v2374
    %v2376 = vmul.f32 %v2368, %v2359
    %v2377 = vadd.f32 %v2006, %v2376
    %v2378 = vtanh.pop %v2377
    %v2379 = vsub.f32 1.0, %v2375
    %v2380 = vmul.f32 %v2379, %v2378
    %v2381 = vmul.f32 %v2375, %v2220
    %v2382 = vadd.f32 %v2380, %v2381
    %2383 = vmatprep.subr.mxu0 %v1801
    %2384 = vmatpush1.msra.mxu0 %v1800
    %2385 = vmatprep.subr.mxu0 %v1798
    %2386 = vmatpush1.msra.mxu0 %v1797
    %2387 = vmatprep.subr.mxu0 %v1795
    %2388 = vmatpush1.msra.mxu0 %v1794
    %2389 = vmatprep.subr.mxu0 %v1792
    %2390 = vmatpush1.msra.mxu0 %v1791
    %2391 = vmatprep.subr.mxu0 %v1789
    %2392 = vmatpush1.msra.mxu0 %v1788
    %2393 = vmatprep.subr.mxu0 %v1786
    %2394 = vmatpush1.msra.mxu0 %v1785
    %2395 = vmatprep.subr.mxu0 %v1783
    %2396 = vmatpush1.msra.mxu0 %v1782
    %2397 = vmatprep.subr.mxu0 %v1780
    %2398 = vmatpush1.msra.mxu0 %v1779
    %2399 = vmatprep.subr.mxu0 %v1777
    %2400 = vmatpush1.msra.mxu0 %v1776
    %2401 = vmatprep.subr.mxu0 %v1774
    %2402 = vmatpush1.msra.mxu0 %v1773
    %2403 = vmatprep.subr.mxu0 %v1771
    %2404 = vmatpush1.msra.mxu0 %v1770
    %2405 = vmatprep.subr.mxu0 %v1768
    %2406 = vmatpush1.msra.mxu0 %v1767
    %2407 = vmatprep.subr.mxu0 %v1765
    %2408 = vmatpush1.msra.mxu0 %v1764
    %2409 = vmatprep.subr.mxu0 %v1762
    %2410 = vmatpush1.msra.mxu0 %v1761
    %2411 = vmatprep.subr.mxu0 %v1759
    %2412 = vmatpush1.msra.mxu0 %v1758
    %2413 = vmatprep.subr.mxu0 %v1756
    %2414 = vmatpush1.msra.mxu0 %v1755
    %2415 = vmatprep.subr.mxu0 0.0
    %2416 = vmatpush2.msra.mxu0 0.0
    %2417 = vmatprep.subr.mxu0 0.0
    %2418 = vmatpush2.msra.mxu0 0.0
    %2419 = vmatprep.subr.mxu0 0.0
    %2420 = vmatpush2.msra.mxu0 0.0
    %2421 = vmatprep.subr.mxu0 0.0
    %2422 = vmatpush2.msra.mxu0 0.0
    %2423 = vmatprep.subr.mxu0 0.0
    %2424 = vmatpush2.msra.mxu0 0.0
    %2425 = vmatprep.subr.mxu0 0.0
    %2426 = vmatpush2.msra.mxu0 0.0
    %2427 = vmatprep.subr.mxu0 0.0
    %2428 = vmatpush2.msra.mxu0 0.0
    %2429 = vmatprep.subr.mxu0 0.0
    %2430 = vmatpush2.msra.mxu0 0.0
    %2431 = vmatprep.subr.mxu0 0.0
    %2432 = vmatpush2.msra.mxu0 0.0
    %2433 = vmatprep.subr.mxu0 0.0
    %2434 = vmatpush2.msra.mxu0 0.0
    %2435 = vmatprep.subr.mxu0 0.0
    %2436 = vmatpush2.msra.mxu0 0.0
    %2437 = vmatprep.subr.mxu0 0.0
    %2438 = vmatpush2.msra.mxu0 0.0
    %2439 = vmatprep.subr.mxu0 0.0
    %2440 = vmatpush2.msra.mxu0 0.0
    %2441 = vmatprep.subr.mxu0 0.0
    %2442 = vmatpush2.msra.mxu0 0.0
    %2443 = vmatprep.subr.mxu0 0.0
    %2444 = vmatpush2.msra.mxu0 0.0
    %2445 = vmatprep.subr.mxu0 0.0
    %2446 = vmatpush2.msra.mxu0 0.0
    %2447 = vmatprep.mubr.f32.mxu0 0.0
    %2448 = vmatmul.mubr.f32.gmra.mxu0 %v2382
    %v2449 = vpop.f32.mrf.mxu0
    %v2450 = vadd.f32 %v2045, %v2449
    %v2451 = vpop.f32.mrf.mxu0
    %v2452 = vadd.f32 %v2049, %v2451
    %2453 = vdwg.mxu0
    %2454 = vmatprep.subr.mxu0 0.0
    %2455 = vmatpush1.msra.mxu0 %v1802
    %2456 = vmatprep.subr.mxu0 0.0
    %2457 = vmatpush1.msra.mxu0 %v1799
    %2458 = vmatprep.subr.mxu0 0.0
    %2459 = vmatpush1.msra.mxu0 %v1796
    %2460 = vmatprep.subr.mxu0 0.0
    %2461 = vmatpush1.msra.mxu0 %v1793
    %2462 = vmatprep.subr.mxu0 0.0
    %2463 = vmatpush1.msra.mxu0 %v1790
    %2464 = vmatprep.subr.mxu0 0.0
    %2465 = vmatpush1.msra.mxu0 %v1787
    %2466 = vmatprep.subr.mxu0 0.0
    %2467 = vmatpush1.msra.mxu0 %v1784
    %2468 = vmatprep.subr.mxu0 0.0
    %2469 = vmatpush1.msra.mxu0 %v1781
    %2470 = vmatprep.subr.mxu0 0.0
    %2471 = vmatpush1.msra.mxu0 %v1778
    %2472 = vmatprep.subr.mxu0 0.0
    %2473 = vmatpush1.msra.mxu0 %v1775
    %2474 = vmatprep.subr.mxu0 0.0
    %2475 = vmatpush1.msra.mxu0 %v1772
    %2476 = vmatprep.subr.mxu0 0.0
    %2477 = vmatpush1.msra.mxu0 %v1769
    %2478 = vmatprep.subr.mxu0 0.0
    %2479 = vmatpush1.msra.mxu0 %v1766
    %2480 = vmatprep.subr.mxu0 0.0
    %2481 = vmatpush1.msra.mxu0 %v1763
    %2482 = vmatprep.subr.mxu0 0.0
    %2483 = vmatpush1.msra.mxu0 %v1760
    %2484 = vmatprep.subr.mxu0 0.0
    %2485 = vmatpush1.msra.mxu0 %v1757
    %2486 = vmatprep.subr.mxu0 0.0
    %2487 = vmatpush2.msra.mxu0 0.0
    %2488 = vmatprep.subr.mxu0 0.0
    %2489 = vmatpush2.msra.mxu0 0.0
    %2490 = vmatprep.subr.mxu0 0.0
    %2491 = vmatpush2.msra.mxu0 0.0
    %2492 = vmatprep.subr.mxu0 0.0
    %2493 = vmatpush2.msra.mxu0 0.0
    %2494 = vmatprep.subr.mxu0 0.0
    %2495 = vmatpush2.msra.mxu0 0.0
    %2496 = vmatprep.subr.mxu0 0.0
    %2497 = vmatpush2.msra.mxu0 0.0
    %2498 = vmatprep.subr.mxu0 0.0
    %2499 = vmatpush2.msra.mxu0 0.0
    %2500 = vmatprep.subr.mxu0 0.0
    %2501 = vmatpush2.msra.mxu0 0.0
    %2502 = vmatprep.subr.mxu0 0.0
    %2503 = vmatpush2.msra.mxu0 0.0
    %2504 = vmatprep.subr.mxu0 0.0
    %2505 = vmatpush2.msra.mxu0 0.0
    %2506 = vmatprep.subr.mxu0 0.0
    %2507 = vmatpush2.msra.mxu0 0.0
    %2508 = vmatprep.subr.mxu0 0.0
    %2509 = vmatpush2.msra.mxu0 0.0
    %2510 = vmatprep.subr.mxu0 0.0
    %2511 = vmatpush2.msra.mxu0 0.0
    %2512 = vmatprep.subr.mxu0 0.0
    %2513 = vmatpush2.msra.mxu0 0.0
    %2514 = vmatprep.subr.mxu0 0.0
    %2515 = vmatpush2.msra.mxu0 0.0
    %2516 = vmatprep.subr.mxu0 0.0
    %2517 = vmatpush2.msra.mxu0 0.0
    %2518 = vmatprep.mubr.f32.mxu0 0.0
    %2519 = vmatmul.mubr.f32.gmra.mxu0 %v2382
    %v2520 = vpop.f32.mrf.mxu0
    %v2521 = vadd.f32 %v2053, %v2520
    %v2522 = vpop.f32.mrf.mxu0
    %2523 = vdwg.mxu0
    %v2524 = vadd.f32 %v1900, %v2450
    %v2525 = vxor.u32 %v2524, 2147483648
    %v2526 = vmul.f32 %v2525, 1.442695
    %v2527 = vpow.pop %v2526
    %v2528 = vadd.f32 %v2527, 1.0
    %v2529 = vrcp.pop %v2528
    %v2530 = vmul.f32 1.0, %v2529
    %v2531 = vadd.f32 %v1902, %v2452
    %v2532 = vxor.u32 %v2531, 2147483648
    %v2533 = vmul.f32 %v2532, 1.442695
    %v2534 = vpow.pop %v2533
    %v2535 = vadd.f32 %v2534, 1.0
    %v2536 = vrcp.pop %v2535
    %v2537 = vmul.f32 1.0, %v2536
    %v2538 = vmul.f32 %v2530, %v2521
    %v2539 = vadd.f32 %v2011, %v2538
    %v2540 = vtanh.pop %v2539
    %v2541 = vsub.f32 1.0, %v2537
    %v2542 = vmul.f32 %v2541, %v2540
    %v2543 = vmul.f32 %v2537, %v2382
    %v2544 = vadd.f32 %v2542, %v2543
    %2545 = vmatprep.subr.mxu0 %v1801
    %2546 = vmatpush1.msra.mxu0 %v1800
    %2547 = vmatprep.subr.mxu0 %v1798
    %2548 = vmatpush1.msra.mxu0 %v1797
    %2549 = vmatprep.subr.mxu0 %v1795
    %2550 = vmatpush1.msra.mxu0 %v1794
    %2551 = vmatprep.subr.mxu0 %v1792
    %2552 = vmatpush1.msra.mxu0 %v1791
    %2553 = vmatprep.subr.mxu0 %v1789
    %2554 = vmatpush1.msra.mxu0 %v1788
    %2555 = vmatprep.subr.mxu0 %v1786
    %2556 = vmatpush1.msra.mxu0 %v1785
    %2557 = vmatprep.subr.mxu0 %v1783
    %2558 = vmatpush1.msra.mxu0 %v1782
    %2559 = vmatprep.subr.mxu0 %v1780
    %2560 = vmatpush1.msra.mxu0 %v1779
    %2561 = vmatprep.subr.mxu0 %v1777
    %2562 = vmatpush1.msra.mxu0 %v1776
    %2563 = vmatprep.subr.mxu0 %v1774
    %2564 = vmatpush1.msra.mxu0 %v1773
    %2565 = vmatprep.subr.mxu0 %v1771
    %2566 = vmatpush1.msra.mxu0 %v1770
    %2567 = vmatprep.subr.mxu0 %v1768
    %2568 = vmatpush1.msra.mxu0 %v1767
    %2569 = vmatprep.subr.mxu0 %v1765
    %2570 = vmatpush1.msra.mxu0 %v1764
    %2571 = vmatprep.subr.mxu0 %v1762
    %2572 = vmatpush1.msra.mxu0 %v1761
    %2573 = vmatprep.subr.mxu0 %v1759
    %2574 = vmatpush1.msra.mxu0 %v1758
    %2575 = vmatprep.subr.mxu0 %v1756
    %2576 = vmatpush1.msra.mxu0 %v1755
    %2577 = vmatprep.subr.mxu0 0.0
    %2578 = vmatpush2.msra.mxu0 0.0
    %2579 = vmatprep.subr.mxu0 0.0
    %2580 = vmatpush2.msra.mxu0 0.0
    %2581 = vmatprep.subr.mxu0 0.0
    %2582 = vmatpush2.msra.mxu0 0.0
    %2583 = vmatprep.subr.mxu0 0.0
    %2584 = vmatpush2.msra.mxu0 0.0
    %2585 = vmatprep.subr.mxu0 0.0
    %2586 = vmatpush2.msra.mxu0 0.0
    %2587 = vmatprep.subr.mxu0 0.0
    %2588 = vmatpush2.msra.mxu0 0.0
    %2589 = vmatprep.subr.mxu0 0.0
    %2590 = vmatpush2.msra.mxu0 0.0
    %2591 = vmatprep.subr.mxu0 0.0
    %2592 = vmatpush2.msra.mxu0 0.0
    %2593 = vmatprep.subr.mxu0 0.0
    %2594 = vmatpush2.msra.mxu0 0.0
    %2595 = vmatprep.subr.mxu0 0.0
    %2596 = vmatpush2.msra.mxu0 0.0
    %2597 = vmatprep.subr.mxu0 0.0
    %2598 = vmatpush2.msra.mxu0 0.0
    %2599 = vmatprep.subr.mxu0 0.0
    %2600 = vmatpush2.msra.mxu0 0.0
    %2601 = vmatprep.subr.mxu0 0.0
    %2602 = vmatpush2.msra.mxu0 0.0
    %2603 = vmatprep.subr.mxu0 0.0
    %2604 = vmatpush2.msra.mxu0 0.0
    %2605 = vmatprep.subr.mxu0 0.0
    %2606 = vmatpush2.msra.mxu0 0.0
    %2607 = vmatprep.subr.mxu0 0.0
    %2608 = vmatpush2.msra.mxu0 0.0
    %2609 = vmatprep.mubr.f32.mxu0 0.0
    %2610 = vmatmul.mubr.f32.gmra.mxu0 %v2544
    %v2611 = vpop.f32.mrf.mxu0
    %v2612 = vadd.f32 %v2045, %v2611
    %v2613 = vpop.f32.mrf.mxu0
    %v2614 = vadd.f32 %v2049, %v2613
    %2615 = vdwg.mxu0
    %2616 = vmatprep.subr.mxu0 0.0
    %2617 = vmatpush1.msra.mxu0 %v1802
    %2618 = vmatprep.subr.mxu0 0.0
    %2619 = vmatpush1.msra.mxu0 %v1799
    %2620 = vmatprep.subr.mxu0 0.0
    %2621 = vmatpush1.msra.mxu0 %v1796
    %2622 = vmatprep.subr.mxu0 0.0
    %2623 = vmatpush1.msra.mxu0 %v1793
    %2624 = vmatprep.subr.mxu0 0.0
    %2625 = vmatpush1.msra.mxu0 %v1790
    %2626 = vmatprep.subr.mxu0 0.0
    %2627 = vmatpush1.msra.mxu0 %v1787
    %2628 = vmatprep.subr.mxu0 0.0
    %2629 = vmatpush1.msra.mxu0 %v1784
    %2630 = vmatprep.subr.mxu0 0.0
    %2631 = vmatpush1.msra.mxu0 %v1781
    %2632 = vmatprep.subr.mxu0 0.0
    %2633 = vmatpush1.msra.mxu0 %v1778
    %2634 = vmatprep.subr.mxu0 0.0
    %2635 = vmatpush1.msra.mxu0 %v1775
    %2636 = vmatprep.subr.mxu0 0.0
    %2637 = vmatpush1.msra.mxu0 %v1772
    %2638 = vmatprep.subr.mxu0 0.0
    %2639 = vmatpush1.msra.mxu0 %v1769
    %2640 = vmatprep.subr.mxu0 0.0
    %2641 = vmatpush1.msra.mxu0 %v1766
    %2642 = vmatprep.subr.mxu0 0.0
    %2643 = vmatpush1.msra.mxu0 %v1763
    %2644 = vmatprep.subr.mxu0 0.0
    %2645 = vmatpush1.msra.mxu0 %v1760
    %2646 = vmatprep.subr.mxu0 0.0
    %2647 = vmatpush1.msra.mxu0 %v1757
    %2648 = vmatprep.subr.mxu0 0.0
    %2649 = vmatpush2.msra.mxu0 0.0
    %2650 = vmatprep.subr.mxu0 0.0
    %2651 = vmatpush2.msra.mxu0 0.0
    %2652 = vmatprep.subr.mxu0 0.0
    %2653 = vmatpush2.msra.mxu0 0.0
    %2654 = vmatprep.subr.mxu0 0.0
    %2655 = vmatpush2.msra.mxu0 0.0
    %2656 = vmatprep.subr.mxu0 0.0
    %2657 = vmatpush2.msra.mxu0 0.0
    %2658 = vmatprep.subr.mxu0 0.0
    %2659 = vmatpush2.msra.mxu0 0.0
    %2660 = vmatprep.subr.mxu0 0.0
    %2661 = vmatpush2.msra.mxu0 0.0
    %2662 = vmatprep.subr.mxu0 0.0
    %2663 = vmatpush2.msra.mxu0 0.0
    %2664 = vmatprep.subr.mxu0 0.0
    %2665 = vmatpush2.msra.mxu0 0.0
    %2666 = vmatprep.subr.mxu0 0.0
    %2667 = vmatpush2.msra.mxu0 0.0
    %2668 = vmatprep.subr.mxu0 0.0
    %2669 = vmatpush2.msra.mxu0 0.0
    %2670 = vmatprep.subr.mxu0 0.0
    %2671 = vmatpush2.msra.mxu0 0.0
    %2672 = vmatprep.subr.mxu0 0.0
    %2673 = vmatpush2.msra.mxu0 0.0
    %2674 = vmatprep.subr.mxu0 0.0
    %2675 = vmatpush2.msra.mxu0 0.0
    %2676 = vmatprep.subr.mxu0 0.0
    %2677 = vmatpush2.msra.mxu0 0.0
    %2678 = vmatprep.subr.mxu0 0.0
    %2679 = vmatpush2.msra.mxu0 0.0
    %2680 = vmatprep.mubr.f32.mxu0 0.0
    %2681 = vmatmul.mubr.f32.gmra.mxu0 %v2544
    %v2682 = vpop.f32.mrf.mxu0
    %v2683 = vadd.f32 %v2053, %v2682
    %v2684 = vpop.f32.mrf.mxu0
    %2685 = vdwg.mxu0
    %v2686 = vadd.f32 %v1906, %v2612
    %v2687 = vxor.u32 %v2686, 2147483648
    %v2688 = vmul.f32 %v2687, 1.442695
    %v2689 = vpow.pop %v2688
    %v2690 = vadd.f32 %v2689, 1.0
    %v2691 = vrcp.pop %v2690
    %v2692 = vmul.f32 1.0, %v2691
    %v2693 = vadd.f32 %v1908, %v2614
    %v2694 = vxor.u32 %v2693, 2147483648
    %v2695 = vmul.f32 %v2694, 1.442695
    %v2696 = vpow.pop %v2695
    %v2697 = vadd.f32 %v2696, 1.0
    %v2698 = vrcp.pop %v2697
    %v2699 = vmul.f32 1.0, %v2698
    %v2700 = vmul.f32 %v2692, %v2683
    %v2701 = vadd.f32 %v2016, %v2700
    %v2702 = vtanh.pop %v2701
    %v2703 = vsub.f32 1.0, %v2699
    %v2704 = vmul.f32 %v2703, %v2702
    %v2705 = vmul.f32 %v2699, %v2544
    %v2706 = vadd.f32 %v2704, %v2705
    %2707 = vmatprep.subr.mxu0 %v1801
    %2708 = vmatpush1.msra.mxu0 %v1800
    %2709 = vmatprep.subr.mxu0 %v1798
    %2710 = vmatpush1.msra.mxu0 %v1797
    %2711 = vmatprep.subr.mxu0 %v1795
    %2712 = vmatpush1.msra.mxu0 %v1794
    %2713 = vmatprep.subr.mxu0 %v1792
    %2714 = vmatpush1.msra.mxu0 %v1791
    %2715 = vmatprep.subr.mxu0 %v1789
    %2716 = vmatpush1.msra.mxu0 %v1788
    %2717 = vmatprep.subr.mxu0 %v1786
    %2718 = vmatpush1.msra.mxu0 %v1785
    %2719 = vmatprep.subr.mxu0 %v1783
    %2720 = vmatpush1.msra.mxu0 %v1782
    %2721 = vmatprep.subr.mxu0 %v1780
    %2722 = vmatpush1.msra.mxu0 %v1779
    %2723 = vmatprep.subr.mxu0 %v1777
    %2724 = vmatpush1.msra.mxu0 %v1776
    %2725 = vmatprep.subr.mxu0 %v1774
    %2726 = vmatpush1.msra.mxu0 %v1773
    %2727 = vmatprep.subr.mxu0 %v1771
    %2728 = vmatpush1.msra.mxu0 %v1770
    %2729 = vmatprep.subr.mxu0 %v1768
    %2730 = vmatpush1.msra.mxu0 %v1767
    %2731 = vmatprep.subr.mxu0 %v1765
    %2732 = vmatpush1.msra.mxu0 %v1764
    %2733 = vmatprep.subr.mxu0 %v1762
    %2734 = vmatpush1.msra.mxu0 %v1761
    %2735 = vmatprep.subr.mxu0 %v1759
    %2736 = vmatpush1.msra.mxu0 %v1758
    %2737 = vmatprep.subr.mxu0 %v1756
    %2738 = vmatpush1.msra.mxu0 %v1755
    %2739 = vmatprep.subr.mxu0 0.0
    %2740 = vmatpush2.msra.mxu0 0.0
    %2741 = vmatprep.subr.mxu0 0.0
    %2742 = vmatpush2.msra.mxu0 0.0
    %2743 = vmatprep.subr.mxu0 0.0
    %2744 = vmatpush2.msra.mxu0 0.0
    %2745 = vmatprep.subr.mxu0 0.0
    %2746 = vmatpush2.msra.mxu0 0.0
    %2747 = vmatprep.subr.mxu0 0.0
    %2748 = vmatpush2.msra.mxu0 0.0
    %2749 = vmatprep.subr.mxu0 0.0
    %2750 = vmatpush2.msra.mxu0 0.0
    %2751 = vmatprep.subr.mxu0 0.0
    %2752 = vmatpush2.msra.mxu0 0.0
    %2753 = vmatprep.subr.mxu0 0.0
    %2754 = vmatpush2.msra.mxu0 0.0
    %2755 = vmatprep.subr.mxu0 0.0
    %2756 = vmatpush2.msra.mxu0 0.0
    %2757 = vmatprep.subr.mxu0 0.0
    %2758 = vmatpush2.msra.mxu0 0.0
    %2759 = vmatprep.subr.mxu0 0.0
    %2760 = vmatpush2.msra.mxu0 0.0
    %2761 = vmatprep.subr.mxu0 0.0
    %2762 = vmatpush2.msra.mxu0 0.0
    %2763 = vmatprep.subr.mxu0 0.0
    %2764 = vmatpush2.msra.mxu0 0.0
    %2765 = vmatprep.subr.mxu0 0.0
    %2766 = vmatpush2.msra.mxu0 0.0
    %2767 = vmatprep.subr.mxu0 0.0
    %2768 = vmatpush2.msra.mxu0 0.0
    %2769 = vmatprep.subr.mxu0 0.0
    %2770 = vmatpush2.msra.mxu0 0.0
    %2771 = vmatprep.mubr.f32.mxu0 0.0
    %2772 = vmatmul.mubr.f32.gmra.mxu0 %v2706
    %v2773 = vpop.f32.mrf.mxu0
    %v2774 = vadd.f32 %v2045, %v2773
    %v2775 = vpop.f32.mrf.mxu0
    %v2776 = vadd.f32 %v2049, %v2775
    %2777 = vdwg.mxu0
    %2778 = vmatprep.subr.mxu0 0.0
    %2779 = vmatpush1.msra.mxu0 %v1802
    %2780 = vmatprep.subr.mxu0 0.0
    %2781 = vmatpush1.msra.mxu0 %v1799
    %2782 = vmatprep.subr.mxu0 0.0
    %2783 = vmatpush1.msra.mxu0 %v1796
    %2784 = vmatprep.subr.mxu0 0.0
    %2785 = vmatpush1.msra.mxu0 %v1793
    %2786 = vmatprep.subr.mxu0 0.0
    %2787 = vmatpush1.msra.mxu0 %v1790
    %2788 = vmatprep.subr.mxu0 0.0
    %2789 = vmatpush1.msra.mxu0 %v1787
    %2790 = vmatprep.subr.mxu0 0.0
    %2791 = vmatpush1.msra.mxu0 %v1784
    %2792 = vmatprep.subr.mxu0 0.0
    %2793 = vmatpush1.msra.mxu0 %v1781
    %2794 = vmatprep.subr.mxu0 0.0
    %2795 = vmatpush1.msra.mxu0 %v1778
    %2796 = vmatprep.subr.mxu0 0.0
    %2797 = vmatpush1.msra.mxu0 %v1775
    %2798 = vmatprep.subr.mxu0 0.0
    %2799 = vmatpush1.msra.mxu0 %v1772
    %2800 = vmatprep.subr.mxu0 0.0
    %2801 = vmatpush1.msra.mxu0 %v1769
    %2802 = vmatprep.subr.mxu0 0.0
    %2803 = vmatpush1.msra.mxu0 %v1766
    %2804 = vmatprep.subr.mxu0 0.0
    %2805 = vmatpush1.msra.mxu0 %v1763
    %2806 = vmatprep.subr.mxu0 0.0
    %2807 = vmatpush1.msra.mxu0 %v1760
    %2808 = vmatprep.subr.mxu0 0.0
    %2809 = vmatpush1.msra.mxu0 %v1757
    %2810 = vmatprep.subr.mxu0 0.0
    %2811 = vmatpush2.msra.mxu0 0.0
    %2812 = vmatprep.subr.mxu0 0.0
    %2813 = vmatpush2.msra.mxu0 0.0
    %2814 = vmatprep.subr.mxu0 0.0
    %2815 = vmatpush2.msra.mxu0 0.0
    %2816 = vmatprep.subr.mxu0 0.0
    %2817 = vmatpush2.msra.mxu0 0.0
    %2818 = vmatprep.subr.mxu0 0.0
    %2819 = vmatpush2.msra.mxu0 0.0
    %2820 = vmatprep.subr.mxu0 0.0
    %2821 = vmatpush2.msra.mxu0 0.0
    %2822 = vmatprep.subr.mxu0 0.0
    %2823 = vmatpush2.msra.mxu0 0.0
    %2824 = vmatprep.subr.mxu0 0.0
    %2825 = vmatpush2.msra.mxu0 0.0
    %2826 = vmatprep.subr.mxu0 0.0
    %2827 = vmatpush2.msra.mxu0 0.0
    %2828 = vmatprep.subr.mxu0 0.0
    %2829 = vmatpush2.msra.mxu0 0.0
    %2830 = vmatprep.subr.mxu0 0.0
    %2831 = vmatpush2.msra.mxu0 0.0
    %2832 = vmatprep.subr.mxu0 0.0
    %2833 = vmatpush2.msra.mxu0 0.0
    %2834 = vmatprep.subr.mxu0 0.0
    %2835 = vmatpush2.msra.mxu0 0.0
    %2836 = vmatprep.subr.mxu0 0.0
    %2837 = vmatpush2.msra.mxu0 0.0
    %2838 = vmatprep.subr.mxu0 0.0
    %2839 = vmatpush2.msra.mxu0 0.0
    %2840 = vmatprep.subr.mxu0 0.0
    %2841 = vmatpush2.msra.mxu0 0.0
    %2842 = vmatprep.mubr.f32.mxu0 0.0
    %2843 = vmatmul.mubr.f32.gmra.mxu0 %v2706
    %v2844 = vpop.f32.mrf.mxu0
    %v2845 = vadd.f32 %v2053, %v2844
    %v2846 = vpop.f32.mrf.mxu0
    %2847 = vdwg.mxu0
    %v2848 = vadd.f32 %v1912, %v2774
    %v2849 = vxor.u32 %v2848, 2147483648
    %v2850 = vmul.f32 %v2849, 1.442695
    %v2851 = vpow.pop %v2850
    %v2852 = vadd.f32 %v2851, 1.0
    %v2853 = vrcp.pop %v2852
    %v2854 = vmul.f32 1.0, %v2853
    %v2855 = vadd.f32 %v1914, %v2776
    %v2856 = vxor.u32 %v2855, 2147483648
    %v2857 = vmul.f32 %v2856, 1.442695
    %v2858 = vpow.pop %v2857
    %v2859 = vadd.f32 %v2858, 1.0
    %v2860 = vrcp.pop %v2859
    %v2861 = vmul.f32 1.0, %v2860
    %v2862 = vmul.f32 %v2854, %v2845
    %v2863 = vadd.f32 %v2021, %v2862
    %v2864 = vtanh.pop %v2863
    %v2865 = vsub.f32 1.0, %v2861
    %v2866 = vmul.f32 %v2865, %v2864
    %v2867 = vmul.f32 %v2861, %v2706
    %v2868 = vadd.f32 %v2866, %v2867
    %2869 = vmatprep.subr.mxu0 %v1801
    %2870 = vmatpush1.msra.mxu0 %v1800
    %2871 = vmatprep.subr.mxu0 %v1798
    %2872 = vmatpush1.msra.mxu0 %v1797
    %2873 = vmatprep.subr.mxu0 %v1795
    %2874 = vmatpush1.msra.mxu0 %v1794
    %2875 = vmatprep.subr.mxu0 %v1792
    %2876 = vmatpush1.msra.mxu0 %v1791
    %2877 = vmatprep.subr.mxu0 %v1789
    %2878 = vmatpush1.msra.mxu0 %v1788
    %2879 = vmatprep.subr.mxu0 %v1786
    %2880 = vmatpush1.msra.mxu0 %v1785
    %2881 = vmatprep.subr.mxu0 %v1783
    %2882 = vmatpush1.msra.mxu0 %v1782
    %2883 = vmatprep.subr.mxu0 %v1780
    %2884 = vmatpush1.msra.mxu0 %v1779
    %2885 = vmatprep.subr.mxu0 %v1777
    %2886 = vmatpush1.msra.mxu0 %v1776
    %2887 = vmatprep.subr.mxu0 %v1774
    %2888 = vmatpush1.msra.mxu0 %v1773
    %2889 = vmatprep.subr.mxu0 %v1771
    %2890 = vmatpush1.msra.mxu0 %v1770
    %2891 = vmatprep.subr.mxu0 %v1768
    %2892 = vmatpush1.msra.mxu0 %v1767
    %2893 = vmatprep.subr.mxu0 %v1765
    %2894 = vmatpush1.msra.mxu0 %v1764
    %2895 = vmatprep.subr.mxu0 %v1762
    %2896 = vmatpush1.msra.mxu0 %v1761
    %2897 = vmatprep.subr.mxu0 %v1759
    %2898 = vmatpush1.msra.mxu0 %v1758
    %2899 = vmatprep.subr.mxu0 %v1756
    %2900 = vmatpush1.msra.mxu0 %v1755
    %2901 = vmatprep.subr.mxu0 0.0
    %2902 = vmatpush2.msra.mxu0 0.0
    %2903 = vmatprep.subr.mxu0 0.0
    %2904 = vmatpush2.msra.mxu0 0.0
    %2905 = vmatprep.subr.mxu0 0.0
    %2906 = vmatpush2.msra.mxu0 0.0
    %2907 = vmatprep.subr.mxu0 0.0
    %2908 = vmatpush2.msra.mxu0 0.0
    %2909 = vmatprep.subr.mxu0 0.0
    %2910 = vmatpush2.msra.mxu0 0.0
    %2911 = vmatprep.subr.mxu0 0.0
    %2912 = vmatpush2.msra.mxu0 0.0
    %2913 = vmatprep.subr.mxu0 0.0
    %2914 = vmatpush2.msra.mxu0 0.0
    %2915 = vmatprep.subr.mxu0 0.0
    %2916 = vmatpush2.msra.mxu0 0.0
    %2917 = vmatprep.subr.mxu0 0.0
    %2918 = vmatpush2.msra.mxu0 0.0
    %2919 = vmatprep.subr.mxu0 0.0
    %2920 = vmatpush2.msra.mxu0 0.0
    %2921 = vmatprep.subr.mxu0 0.0
    %2922 = vmatpush2.msra.mxu0 0.0
    %2923 = vmatprep.subr.mxu0 0.0
    %2924 = vmatpush2.msra.mxu0 0.0
    %2925 = vmatprep.subr.mxu0 0.0
    %2926 = vmatpush2.msra.mxu0 0.0
    %2927 = vmatprep.subr.mxu0 0.0
    %2928 = vmatpush2.msra.mxu0 0.0
    %2929 = vmatprep.subr.mxu0 0.0
    %2930 = vmatpush2.msra.mxu0 0.0
    %2931 = vmatprep.subr.mxu0 0.0
    %2932 = vmatpush2.msra.mxu0 0.0
    %2933 = vmatprep.mubr.f32.mxu0 0.0
    %2934 = vmatmul.mubr.f32.gmra.mxu0 %v2868
    %v2935 = vpop.f32.mrf.mxu0
    %v2936 = vadd.f32 %v2045, %v2935
    %v2937 = vpop.f32.mrf.mxu0
    %v2938 = vadd.f32 %v2049, %v2937
    %2939 = vdwg.mxu0
    %2940 = vmatprep.subr.mxu0 0.0
    %2941 = vmatpush1.msra.mxu0 %v1802
    %2942 = vmatprep.subr.mxu0 0.0
    %2943 = vmatpush1.msra.mxu0 %v1799
    %2944 = vmatprep.subr.mxu0 0.0
    %2945 = vmatpush1.msra.mxu0 %v1796
    %2946 = vmatprep.subr.mxu0 0.0
    %2947 = vmatpush1.msra.mxu0 %v1793
    %2948 = vmatprep.subr.mxu0 0.0
    %2949 = vmatpush1.msra.mxu0 %v1790
    %2950 = vmatprep.subr.mxu0 0.0
    %2951 = vmatpush1.msra.mxu0 %v1787
    %2952 = vmatprep.subr.mxu0 0.0
    %2953 = vmatpush1.msra.mxu0 %v1784
    %2954 = vmatprep.subr.mxu0 0.0
    %2955 = vmatpush1.msra.mxu0 %v1781
    %2956 = vmatprep.subr.mxu0 0.0
    %2957 = vmatpush1.msra.mxu0 %v1778
    %2958 = vmatprep.subr.mxu0 0.0
    %2959 = vmatpush1.msra.mxu0 %v1775
    %2960 = vmatprep.subr.mxu0 0.0
    %2961 = vmatpush1.msra.mxu0 %v1772
    %2962 = vmatprep.subr.mxu0 0.0
    %2963 = vmatpush1.msra.mxu0 %v1769
    %2964 = vmatprep.subr.mxu0 0.0
    %2965 = vmatpush1.msra.mxu0 %v1766
    %2966 = vmatprep.subr.mxu0 0.0
    %2967 = vmatpush1.msra.mxu0 %v1763
    %2968 = vmatprep.subr.mxu0 0.0
    %2969 = vmatpush1.msra.mxu0 %v1760
    %2970 = vmatprep.subr.mxu0 0.0
    %2971 = vmatpush1.msra.mxu0 %v1757
    %2972 = vmatprep.subr.mxu0 0.0
    %2973 = vmatpush2.msra.mxu0 0.0
    %2974 = vmatprep.subr.mxu0 0.0
    %2975 = vmatpush2.msra.mxu0 0.0
    %2976 = vmatprep.subr.mxu0 0.0
    %2977 = vmatpush2.msra.mxu0 0.0
    %2978 = vmatprep.subr.mxu0 0.0
    %2979 = vmatpush2.msra.mxu0 0.0
    %2980 = vmatprep.subr.mxu0 0.0
    %2981 = vmatpush2.msra.mxu0 0.0
    %2982 = vmatprep.subr.mxu0 0.0
    %2983 = vmatpush2.msra.mxu0 0.0
    %2984 = vmatprep.subr.mxu0 0.0
    %2985 = vmatpush2.msra.mxu0 0.0
    %2986 = vmatprep.subr.mxu0 0.0
    %2987 = vmatpush2.msra.mxu0 0.0
    %2988 = vmatprep.subr.mxu0 0.0
    %2989 = vmatpush2.msra.mxu0 0.0
    %2990 = vmatprep.subr.mxu0 0.0
    %2991 = vmatpush2.msra.mxu0 0.0
    %2992 = vmatprep.subr.mxu0 0.0
    %2993 = vmatpush2.msra.mxu0 0.0
    %2994 = vmatprep.subr.mxu0 0.0
    %2995 = vmatpush2.msra.mxu0 0.0
    %2996 = vmatprep.subr.mxu0 0.0
    %2997 = vmatpush2.msra.mxu0 0.0
    %2998 = vmatprep.subr.mxu0 0.0
    %2999 = vmatpush2.msra.mxu0 0.0
    %3000 = vmatprep.subr.mxu0 0.0
    %3001 = vmatpush2.msra.mxu0 0.0
    %3002 = vmatprep.subr.mxu0 0.0
    %3003 = vmatpush2.msra.mxu0 0.0
    %3004 = vmatprep.mubr.f32.mxu0 0.0
    %3005 = vmatmul.mubr.f32.gmra.mxu0 %v2868
    %v3006 = vpop.f32.mrf.mxu0
    %v3007 = vadd.f32 %v2053, %v3006
    %v3008 = vpop.f32.mrf.mxu0
    %3009 = vdwg.mxu0
    %v3010 = vadd.f32 %v1918, %v2936
    %v3011 = vxor.u32 %v3010, 2147483648
    %v3012 = vmul.f32 %v3011, 1.442695
    %v3013 = vpow.pop %v3012
    %v3014 = vadd.f32 %v3013, 1.0
    %v3015 = vrcp.pop %v3014
    %v3016 = vmul.f32 1.0, %v3015
    %v3017 = vadd.f32 %v1920, %v2938
    %v3018 = vxor.u32 %v3017, 2147483648
    %v3019 = vmul.f32 %v3018, 1.442695
    %v3020 = vpow.pop %v3019
    %v3021 = vadd.f32 %v3020, 1.0
    %v3022 = vrcp.pop %v3021
    %v3023 = vmul.f32 1.0, %v3022
    %v3024 = vmul.f32 %v3016, %v3007
    %v3025 = vadd.f32 %v2026, %v3024
    %v3026 = vtanh.pop %v3025
    %v3027 = vsub.f32 1.0, %v3023
    %v3028 = vmul.f32 %v3027, %v3026
    %v3029 = vmul.f32 %v3023, %v2868
    %v3030 = vadd.f32 %v3028, %v3029
    %3031 = vmatprep.subr.mxu0 %v1801
    %3032 = vmatpush1.msra.mxu0 %v1800
    %3033 = vmatprep.subr.mxu0 %v1798
    %3034 = vmatpush1.msra.mxu0 %v1797
    %3035 = vmatprep.subr.mxu0 %v1795
    %3036 = vmatpush1.msra.mxu0 %v1794
    %3037 = vmatprep.subr.mxu0 %v1792
    %3038 = vmatpush1.msra.mxu0 %v1791
    %3039 = vmatprep.subr.mxu0 %v1789
    %3040 = vmatpush1.msra.mxu0 %v1788
    %3041 = vmatprep.subr.mxu0 %v1786
    %3042 = vmatpush1.msra.mxu0 %v1785
    %3043 = vmatprep.subr.mxu0 %v1783
    %3044 = vmatpush1.msra.mxu0 %v1782
    %3045 = vmatprep.subr.mxu0 %v1780
    %3046 = vmatpush1.msra.mxu0 %v1779
    %3047 = vmatprep.subr.mxu0 %v1777
    %3048 = vmatpush1.msra.mxu0 %v1776
    %3049 = vmatprep.subr.mxu0 %v1774
    %3050 = vmatpush1.msra.mxu0 %v1773
    %3051 = vmatprep.subr.mxu0 %v1771
    %3052 = vmatpush1.msra.mxu0 %v1770
    %3053 = vmatprep.subr.mxu0 %v1768
    %3054 = vmatpush1.msra.mxu0 %v1767
    %3055 = vmatprep.subr.mxu0 %v1765
    %3056 = vmatpush1.msra.mxu0 %v1764
    %3057 = vmatprep.subr.mxu0 %v1762
    %3058 = vmatpush1.msra.mxu0 %v1761
    %3059 = vmatprep.subr.mxu0 %v1759
    %3060 = vmatpush1.msra.mxu0 %v1758
    %3061 = vmatprep.subr.mxu0 %v1756
    %3062 = vmatpush1.msra.mxu0 %v1755
    %3063 = vmatprep.subr.mxu0 0.0
    %3064 = vmatpush2.msra.mxu0 0.0
    %3065 = vmatprep.subr.mxu0 0.0
    %3066 = vmatpush2.msra.mxu0 0.0
    %3067 = vmatprep.subr.mxu0 0.0
    %3068 = vmatpush2.msra.mxu0 0.0
    %3069 = vmatprep.subr.mxu0 0.0
    %3070 = vmatpush2.msra.mxu0 0.0
    %3071 = vmatprep.subr.mxu0 0.0
    %3072 = vmatpush2.msra.mxu0 0.0
    %3073 = vmatprep.subr.mxu0 0.0
    %3074 = vmatpush2.msra.mxu0 0.0
    %3075 = vmatprep.subr.mxu0 0.0
    %3076 = vmatpush2.msra.mxu0 0.0
    %3077 = vmatprep.subr.mxu0 0.0
    %3078 = vmatpush2.msra.mxu0 0.0
    %3079 = vmatprep.subr.mxu0 0.0
    %3080 = vmatpush2.msra.mxu0 0.0
    %3081 = vmatprep.subr.mxu0 0.0
    %3082 = vmatpush2.msra.mxu0 0.0
    %3083 = vmatprep.subr.mxu0 0.0
    %3084 = vmatpush2.msra.mxu0 0.0
    %3085 = vmatprep.subr.mxu0 0.0
    %3086 = vmatpush2.msra.mxu0 0.0
    %3087 = vmatprep.subr.mxu0 0.0
    %3088 = vmatpush2.msra.mxu0 0.0
    %3089 = vmatprep.subr.mxu0 0.0
    %3090 = vmatpush2.msra.mxu0 0.0
    %3091 = vmatprep.subr.mxu0 0.0
    %3092 = vmatpush2.msra.mxu0 0.0
    %3093 = vmatprep.subr.mxu0 0.0
    %3094 = vmatpush2.msra.mxu0 0.0
    %3095 = vmatprep.mubr.f32.mxu0 0.0
    %3096 = vmatmul.mubr.f32.gmra.mxu0 %v3030
    %v3097 = vpop.f32.mrf.mxu0
    %v3098 = vadd.f32 %v2045, %v3097
    %v3099 = vpop.f32.mrf.mxu0
    %v3100 = vadd.f32 %v2049, %v3099
    %3101 = vdwg.mxu0
    %3102 = vmatprep.subr.mxu0 0.0
    %3103 = vmatpush1.msra.mxu0 %v1802
    %3104 = vmatprep.subr.mxu0 0.0
    %3105 = vmatpush1.msra.mxu0 %v1799
    %3106 = vmatprep.subr.mxu0 0.0
    %3107 = vmatpush1.msra.mxu0 %v1796
    %3108 = vmatprep.subr.mxu0 0.0
    %3109 = vmatpush1.msra.mxu0 %v1793
    %3110 = vmatprep.subr.mxu0 0.0
    %3111 = vmatpush1.msra.mxu0 %v1790
    %3112 = vmatprep.subr.mxu0 0.0
    %3113 = vmatpush1.msra.mxu0 %v1787
    %3114 = vmatprep.subr.mxu0 0.0
    %3115 = vmatpush1.msra.mxu0 %v1784
    %3116 = vmatprep.subr.mxu0 0.0
    %3117 = vmatpush1.msra.mxu0 %v1781
    %3118 = vmatprep.subr.mxu0 0.0
    %3119 = vmatpush1.msra.mxu0 %v1778
    %3120 = vmatprep.subr.mxu0 0.0
    %3121 = vmatpush1.msra.mxu0 %v1775
    %3122 = vmatprep.subr.mxu0 0.0
    %3123 = vmatpush1.msra.mxu0 %v1772
    %3124 = vmatprep.subr.mxu0 0.0
    %3125 = vmatpush1.msra.mxu0 %v1769
    %3126 = vmatprep.subr.mxu0 0.0
    %3127 = vmatpush1.msra.mxu0 %v1766
    %3128 = vmatprep.subr.mxu0 0.0
    %3129 = vmatpush1.msra.mxu0 %v1763
    %3130 = vmatprep.subr.mxu0 0.0
    %3131 = vmatpush1.msra.mxu0 %v1760
    %3132 = vmatprep.subr.mxu0 0.0
    %3133 = vmatpush1.msra.mxu0 %v1757
    %3134 = vmatprep.subr.mxu0 0.0
    %3135 = vmatpush2.msra.mxu0 0.0
    %3136 = vmatprep.subr.mxu0 0.0
    %3137 = vmatpush2.msra.mxu0 0.0
    %3138 = vmatprep.subr.mxu0 0.0
    %3139 = vmatpush2.msra.mxu0 0.0
    %3140 = vmatprep.subr.mxu0 0.0
    %3141 = vmatpush2.msra.mxu0 0.0
    %3142 = vmatprep.subr.mxu0 0.0
    %3143 = vmatpush2.msra.mxu0 0.0
    %3144 = vmatprep.subr.mxu0 0.0
    %3145 = vmatpush2.msra.mxu0 0.0
    %3146 = vmatprep.subr.mxu0 0.0
    %3147 = vmatpush2.msra.mxu0 0.0
    %3148 = vmatprep.subr.mxu0 0.0
    %3149 = vmatpush2.msra.mxu0 0.0
    %3150 = vmatprep.subr.mxu0 0.0
    %3151 = vmatpush2.msra.mxu0 0.0
    %3152 = vmatprep.subr.mxu0 0.0
    %3153 = vmatpush2.msra.mxu0 0.0
    %3154 = vmatprep.subr.mxu0 0.0
    %3155 = vmatpush2.msra.mxu0 0.0
    %3156 = vmatprep.subr.mxu0 0.0
    %3157 = vmatpush2.msra.mxu0 0.0
    %3158 = vmatprep.subr.mxu0 0.0
    %3159 = vmatpush2.msra.mxu0 0.0
    %3160 = vmatprep.subr.mxu0 0.0
    %3161 = vmatpush2.msra.mxu0 0.0
    %3162 = vmatprep.subr.mxu0 0.0
    %3163 = vmatpush2.msra.mxu0 0.0
    %3164 = vmatprep.subr.mxu0 0.0
    %3165 = vmatpush2.msra.mxu0 0.0
    %3166 = vmatprep.mubr.f32.mxu0 0.0
    %3167 = vmatmul.mubr.f32.gmra.mxu0 %v3030
    %v3168 = vpop.f32.mrf.mxu0
    %v3169 = vadd.f32 %v2053, %v3168
    %v3170 = vpop.f32.mrf.mxu0
    %3171 = vdwg.mxu0
    %v3172 = vadd.f32 %v1924, %v3098
    %v3173 = vxor.u32 %v3172, 2147483648
    %v3174 = vmul.f32 %v3173, 1.442695
    %v3175 = vpow.pop %v3174
    %v3176 = vadd.f32 %v3175, 1.0
    %v3177 = vrcp.pop %v3176
    %v3178 = vmul.f32 1.0, %v3177
    %v3179 = vadd.f32 %v1926, %v3100
    %v3180 = vxor.u32 %v3179, 2147483648
    %v3181 = vmul.f32 %v3180, 1.442695
    %v3182 = vpow.pop %v3181
    %v3183 = vadd.f32 %v3182, 1.0
    %v3184 = vrcp.pop %v3183
    %v3185 = vmul.f32 1.0, %v3184
    %v3186 = vmul.f32 %v3178, %v3169
    %v3187 = vadd.f32 %v2031, %v3186
    %v3188 = vtanh.pop %v3187
    %v3189 = vsub.f32 1.0, %v3185
    %v3190 = vmul.f32 %v3189, %v3188
    %v3191 = vmul.f32 %v3185, %v3030
    %v3192 = vadd.f32 %v3190, %v3191
    %3193 = vmatprep.subr.mxu0 %v1801
    %3194 = vmatpush1.msra.mxu0 %v1800
    %3195 = vmatprep.subr.mxu0 %v1798
    %3196 = vmatpush1.msra.mxu0 %v1797
    %3197 = vmatprep.subr.mxu0 %v1795
    %3198 = vmatpush1.msra.mxu0 %v1794
    %3199 = vmatprep.subr.mxu0 %v1792
    %3200 = vmatpush1.msra.mxu0 %v1791
    %3201 = vmatprep.subr.mxu0 %v1789
    %3202 = vmatpush1.msra.mxu0 %v1788
    %3203 = vmatprep.subr.mxu0 %v1786
    %3204 = vmatpush1.msra.mxu0 %v1785
    %3205 = vmatprep.subr.mxu0 %v1783
    %3206 = vmatpush1.msra.mxu0 %v1782
    %3207 = vmatprep.subr.mxu0 %v1780
    %3208 = vmatpush1.msra.mxu0 %v1779
    %3209 = vmatprep.subr.mxu0 %v1777
    %3210 = vmatpush1.msra.mxu0 %v1776
    %3211 = vmatprep.subr.mxu0 %v1774
    %3212 = vmatpush1.msra.mxu0 %v1773
    %3213 = vmatprep.subr.mxu0 %v1771
    %3214 = vmatpush1.msra.mxu0 %v1770
    %3215 = vmatprep.subr.mxu0 %v1768
    %3216 = vmatpush1.msra.mxu0 %v1767
    %3217 = vmatprep.subr.mxu0 %v1765
    %3218 = vmatpush1.msra.mxu0 %v1764
    %3219 = vmatprep.subr.mxu0 %v1762
    %3220 = vmatpush1.msra.mxu0 %v1761
    %3221 = vmatprep.subr.mxu0 %v1759
    %3222 = vmatpush1.msra.mxu0 %v1758
    %3223 = vmatprep.subr.mxu0 %v1756
    %3224 = vmatpush1.msra.mxu0 %v1755
    %3225 = vmatprep.subr.mxu0 0.0
    %3226 = vmatpush2.msra.mxu0 0.0
    %3227 = vmatprep.subr.mxu0 0.0
    %3228 = vmatpush2.msra.mxu0 0.0
    %3229 = vmatprep.subr.mxu0 0.0
    %3230 = vmatpush2.msra.mxu0 0.0
    %3231 = vmatprep.subr.mxu0 0.0
    %3232 = vmatpush2.msra.mxu0 0.0
    %3233 = vmatprep.subr.mxu0 0.0
    %3234 = vmatpush2.msra.mxu0 0.0
    %3235 = vmatprep.subr.mxu0 0.0
    %3236 = vmatpush2.msra.mxu0 0.0
    %3237 = vmatprep.subr.mxu0 0.0
    %3238 = vmatpush2.msra.mxu0 0.0
    %3239 = vmatprep.subr.mxu0 0.0
    %3240 = vmatpush2.msra.mxu0 0.0
    %3241 = vmatprep.subr.mxu0 0.0
    %3242 = vmatpush2.msra.mxu0 0.0
    %3243 = vmatprep.subr.mxu0 0.0
    %3244 = vmatpush2.msra.mxu0 0.0
    %3245 = vmatprep.subr.mxu0 0.0
    %3246 = vmatpush2.msra.mxu0 0.0
    %3247 = vmatprep.subr.mxu0 0.0
    %3248 = vmatpush2.msra.mxu0 0.0
    %3249 = vmatprep.subr.mxu0 0.0
    %3250 = vmatpush2.msra.mxu0 0.0
    %3251 = vmatprep.subr.mxu0 0.0
    %3252 = vmatpush2.msra.mxu0 0.0
    %3253 = vmatprep.subr.mxu0 0.0
    %3254 = vmatpush2.msra.mxu0 0.0
    %3255 = vmatprep.subr.mxu0 0.0
    %3256 = vmatpush2.msra.mxu0 0.0
    %3257 = vmatprep.mubr.f32.mxu0 0.0
    %3258 = vmatmul.mubr.f32.gmra.mxu0 %v3192
    %v3259 = vpop.f32.mrf.mxu0
    %v3260 = vadd.f32 %v2045, %v3259
    %v3261 = vpop.f32.mrf.mxu0
    %v3262 = vadd.f32 %v2049, %v3261
    %3263 = vdwg.mxu0
    %3264 = vmatprep.subr.mxu0 0.0
    %3265 = vmatpush1.msra.mxu0 %v1802
    %3266 = vmatprep.subr.mxu0 0.0
    %3267 = vmatpush1.msra.mxu0 %v1799
    %3268 = vmatprep.subr.mxu0 0.0
    %3269 = vmatpush1.msra.mxu0 %v1796
    %3270 = vmatprep.subr.mxu0 0.0
    %3271 = vmatpush1.msra.mxu0 %v1793
    %3272 = vmatprep.subr.mxu0 0.0
    %3273 = vmatpush1.msra.mxu0 %v1790
    %3274 = vmatprep.subr.mxu0 0.0
    %3275 = vmatpush1.msra.mxu0 %v1787
    %3276 = vmatprep.subr.mxu0 0.0
    %3277 = vmatpush1.msra.mxu0 %v1784
    %3278 = vmatprep.subr.mxu0 0.0
    %3279 = vmatpush1.msra.mxu0 %v1781
    %3280 = vmatprep.subr.mxu0 0.0
    %3281 = vmatpush1.msra.mxu0 %v1778
    %3282 = vmatprep.subr.mxu0 0.0
    %3283 = vmatpush1.msra.mxu0 %v1775
    %3284 = vmatprep.subr.mxu0 0.0
    %3285 = vmatpush1.msra.mxu0 %v1772
    %3286 = vmatprep.subr.mxu0 0.0
    %3287 = vmatpush1.msra.mxu0 %v1769
    %3288 = vmatprep.subr.mxu0 0.0
    %3289 = vmatpush1.msra.mxu0 %v1766
    %3290 = vmatprep.subr.mxu0 0.0
    %3291 = vmatpush1.msra.mxu0 %v1763
    %3292 = vmatprep.subr.mxu0 0.0
    %3293 = vmatpush1.msra.mxu0 %v1760
    %3294 = vmatprep.subr.mxu0 0.0
    %3295 = vmatpush1.msra.mxu0 %v1757
    %3296 = vmatprep.subr.mxu0 0.0
    %3297 = vmatpush2.msra.mxu0 0.0
    %3298 = vmatprep.subr.mxu0 0.0
    %3299 = vmatpush2.msra.mxu0 0.0
    %3300 = vmatprep.subr.mxu0 0.0
    %3301 = vmatpush2.msra.mxu0 0.0
    %3302 = vmatprep.subr.mxu0 0.0
    %3303 = vmatpush2.msra.mxu0 0.0
    %3304 = vmatprep.subr.mxu0 0.0
    %3305 = vmatpush2.msra.mxu0 0.0
    %3306 = vmatprep.subr.mxu0 0.0
    %3307 = vmatpush2.msra.mxu0 0.0
    %3308 = vmatprep.subr.mxu0 0.0
    %3309 = vmatpush2.msra.mxu0 0.0
    %3310 = vmatprep.subr.mxu0 0.0
    %3311 = vmatpush2.msra.mxu0 0.0
    %3312 = vmatprep.subr.mxu0 0.0
    %3313 = vmatpush2.msra.mxu0 0.0
    %3314 = vmatprep.subr.mxu0 0.0
    %3315 = vmatpush2.msra.mxu0 0.0
    %3316 = vmatprep.subr.mxu0 0.0
    %3317 = vmatpush2.msra.mxu0 0.0
    %3318 = vmatprep.subr.mxu0 0.0
    %3319 = vmatpush2.msra.mxu0 0.0
    %3320 = vmatprep.subr.mxu0 0.0
    %3321 = vmatpush2.msra.mxu0 0.0
    %3322 = vmatprep.subr.mxu0 0.0
    %3323 = vmatpush2.msra.mxu0 0.0
    %3324 = vmatprep.subr.mxu0 0.0
    %3325 = vmatpush2.msra.mxu0 0.0
    %3326 = vmatprep.subr.mxu0 0.0
    %3327 = vmatpush2.msra.mxu0 0.0
    %3328 = vmatprep.mubr.f32.mxu0 0.0
    %3329 = vmatmul.mubr.f32.gmra.mxu0 %v3192
    %v3330 = vpop.f32.mrf.mxu0
    %v3331 = vadd.f32 %v2053, %v3330
    %v3332 = vpop.f32.mrf.mxu0
    %3333 = vdwg.mxu0
    %v3334 = vadd.f32 %v1930, %v3260
    %v3335 = vxor.u32 %v3334, 2147483648
    %v3336 = vmul.f32 %v3335, 1.442695
    %v3337 = vpow.pop %v3336
    %v3338 = vadd.f32 %v3337, 1.0
    %v3339 = vrcp.pop %v3338
    %v3340 = vmul.f32 1.0, %v3339
    %v3341 = vadd.f32 %v1932, %v3262
    %v3342 = vxor.u32 %v3341, 2147483648
    %v3343 = vmul.f32 %v3342, 1.442695
    %v3344 = vpow.pop %v3343
    %v3345 = vadd.f32 %v3344, 1.0
    %v3346 = vrcp.pop %v3345
    %v3347 = vmul.f32 1.0, %v3346
    %v3348 = vmul.f32 %v3340, %v3331
    %v3349 = vadd.f32 %v2036, %v3348
    %v3350 = vtanh.pop %v3349
    %v3351 = vsub.f32 1.0, %v3347
    %v3352 = vmul.f32 %v3351, %v3350
    %v3353 = vmul.f32 %v3347, %v3192
    %v3354 = vadd.f32 %v3352, %v3353
    %v3355 = vadd.f32 %v1695, %v3354
    %v3356 = vld [vmem:[%s6] sm:$0xff]
    %v3357 = vld [vmem:[%s6 + $0x8] sm:$0xff]
    %v3358 = vld [vmem:[%s6 + $0x10] sm:$0xff]
    %v3359 = vld [vmem:[%s6 + $0x18] sm:$0xff]
    %v3360 = vld [vmem:[%s6 + $0x20] sm:$0xff]
    %v3361 = vld [vmem:[%s6 + $0x28] sm:$0xff]
    %v3362 = vld [vmem:[%s6 + $0x30] sm:$0xff]
    %v3363 = vld [vmem:[%s6 + $0x38] sm:$0xff]
    %v3364 = vld [vmem:[%s6 + $0x40] sm:$0xff]
    %v3365 = vld [vmem:[%s6 + $0x48] sm:$0xff]
    %v3366 = vld [vmem:[%s6 + $0x50] sm:$0xff]
    %v3367 = vld [vmem:[%s6 + $0x58] sm:$0xff]
    %v3368 = vld [vmem:[%s6 + $0x60] sm:$0xff]
    %v3369 = vld [vmem:[%s6 + $0x68] sm:$0xff]
    %v3370 = vld [vmem:[%s6 + $0x70] sm:$0xff]
    %v3371 = vld [vmem:[%s6 + $0x78] sm:$0xff]
    %v3372 = vld [vmem:[%s6 + $0x80] sm:$0xff]
    %v3373 = vld [vmem:[%s6 + $0x88] sm:$0xff]
    %v3374 = vld [vmem:[%s6 + $0x90] sm:$0xff]
    %v3375 = vld [vmem:[%s6 + $0x98] sm:$0xff]
    %v3376 = vld [vmem:[%s6 + $0xa0] sm:$0xff]
    %v3377 = vld [vmem:[%s6 + $0xa8] sm:$0xff]
    %v3378 = vld [vmem:[%s6 + $0xb0] sm:$0xff]
    %v3379 = vld [vmem:[%s6 + $0xb8] sm:$0xff]
    %v3380 = vld [vmem:[%s6 + $0xc0] sm:$0xff]
    %v3381 = vld [vmem:[%s6 + $0xc8] sm:$0xff]
    %v3382 = vld [vmem:[%s6 + $0xd0] sm:$0xff]
    %v3383 = vld [vmem:[%s6 + $0xd8] sm:$0xff]
    %v3384 = vld [vmem:[%s6 + $0xe0] sm:$0xff]
    %v3385 = vld [vmem:[%s6 + $0xe8] sm:$0xff]
    %v3386 = vld [vmem:[%s6 + $0xf0] sm:$0xff]
    %v3387 = vld [vmem:[%s6 + $0xf8] sm:$0xff]
    %v3388 = vld [vmem:[%s6 + $0x100] sm:$0xff]
    %v3389 = vld [vmem:[%s6 + $0x108] sm:$0xff]
    %v3390 = vld [vmem:[%s6 + $0x110] sm:$0xff]
    %v3391 = vld [vmem:[%s6 + $0x118] sm:$0xff]
    %v3392 = vld [vmem:[%s6 + $0x120] sm:$0xff]
    %v3393 = vld [vmem:[%s6 + $0x128] sm:$0xff]
    %v3394 = vld [vmem:[%s6 + $0x130] sm:$0xff]
    %v3395 = vld [vmem:[%s6 + $0x138] sm:$0xff]
    %v3396 = vld [vmem:[%s6 + $0x140] sm:$0xff]
    %v3397 = vld [vmem:[%s6 + $0x148] sm:$0xff]
    %v3398 = vld [vmem:[%s6 + $0x150] sm:$0xff]
    %v3399 = vld [vmem:[%s6 + $0x158] sm:$0xff]
    %v3400 = vld [vmem:[%s6 + $0x160] sm:$0xff]
    %v3401 = vld [vmem:[%s6 + $0x168] sm:$0xff]
    %v3402 = vld [vmem:[%s6 + $0x170] sm:$0xff]
    %v3403 = vld [vmem:[%s6 + $0x178] sm:$0xff]
    %v3404 = vld [vmem:[%s6 + $0x180] sm:$0xff]
    %v3405 = vld [vmem:[%s6 + $0x188] sm:$0xff]
    %v3406 = vld [vmem:[%s6 + $0x190] sm:$0xff]
    %v3407 = vld [vmem:[%s6 + $0x198] sm:$0xff]
    %v3408 = vld [vmem:[%s6 + $0x1a0] sm:$0xff]
    %v3409 = vld [vmem:[%s6 + $0x1a8] sm:$0xff]
    %v3410 = vld [vmem:[%s6 + $0x1b0] sm:$0xff]
    %v3411 = vld [vmem:[%s6 + $0x1b8] sm:$0xff]
    %v3412 = vld [vmem:[%s6 + $0x1c0] sm:$0xff]
    %v3413 = vld [vmem:[%s6 + $0x1c8] sm:$0xff]
    %v3414 = vld [vmem:[%s6 + $0x1d0] sm:$0xff]
    %v3415 = vld [vmem:[%s6 + $0x1d8] sm:$0xff]
    %v3416 = vld [vmem:[%s6 + $0x1e0] sm:$0xff]
    %v3417 = vld [vmem:[%s6 + $0x1e8] sm:$0xff]
    %v3418 = vld [vmem:[%s6 + $0x1f0] sm:$0xff]
    %v3419 = vld [vmem:[%s6 + $0x1f8] sm:$0xff]
    %v3420 = vld [vmem:[%s6 + $0x200] sm:$0xff]
    %v3421 = vld [vmem:[%s6 + $0x208] sm:$0xff]
    %v3422 = vld [vmem:[%s6 + $0x210] sm:$0xff]
    %v3423 = vld [vmem:[%s6 + $0x218] sm:$0xff]
    %v3424 = vld [vmem:[%s6 + $0x220] sm:$0xff]
    %v3425 = vld [vmem:[%s6 + $0x228] sm:$0xff]
    %v3426 = vld [vmem:[%s6 + $0x230] sm:$0xff]
    %v3427 = vld [vmem:[%s6 + $0x238] sm:$0xff]
    %v3428 = vld [vmem:[%s6 + $0x240] sm:$0xff]
    %v3429 = vld [vmem:[%s6 + $0x248] sm:$0xff]
    %v3430 = vld [vmem:[%s6 + $0x250] sm:$0xff]
    %v3431 = vld [vmem:[%s6 + $0x258] sm:$0xff]
    %v3432 = vld [vmem:[%s6 + $0x260] sm:$0xff]
    %v3433 = vld [vmem:[%s6 + $0x268] sm:$0xff]
    %v3434 = vld [vmem:[%s6 + $0x270] sm:$0xff]
    %v3435 = vld [vmem:[%s6 + $0x278] sm:$0xff]
    %v3436 = vld [vmem:[%s6 + $0x280] sm:$0xff]
    %v3437 = vld [vmem:[%s6 + $0x288] sm:$0xff]
    %v3438 = vld [vmem:[%s6 + $0x290] sm:$0xff]
    %v3439 = vld [vmem:[%s6 + $0x298] sm:$0xff]
    %v3440 = vld [vmem:[%s6 + $0x2a0] sm:$0xff]
    %v3441 = vld [vmem:[%s6 + $0x2a8] sm:$0xff]
    %v3442 = vld [vmem:[%s6 + $0x2b0] sm:$0xff]
    %v3443 = vld [vmem:[%s6 + $0x2b8] sm:$0xff]
    %v3444 = vld [vmem:[%s6 + $0x2c0] sm:$0xff]
    %v3445 = vld [vmem:[%s6 + $0x2c8] sm:$0xff]
    %v3446 = vld [vmem:[%s6 + $0x2d0] sm:$0xff]
    %v3447 = vld [vmem:[%s6 + $0x2d8] sm:$0xff]
    %v3448 = vld [vmem:[%s6 + $0x2e0] sm:$0xff]
    %v3449 = vld [vmem:[%s6 + $0x2e8] sm:$0xff]
    %v3450 = vld [vmem:[%s6 + $0x2f0] sm:$0xff]
    %v3451 = vld [vmem:[%s6 + $0x2f8] sm:$0xff]
    %v3452 = vld [vmem:[%s6 + $0x300] sm:$0xff]
    %v3453 = vld [vmem:[%s6 + $0x308] sm:$0xff]
    %v3454 = vld [vmem:[%s6 + $0x310] sm:$0xff]
    %v3455 = vld [vmem:[%s6 + $0x318] sm:$0xff]
    %v3456 = vld [vmem:[%s6 + $0x320] sm:$0xff]
    %v3457 = vld [vmem:[%s6 + $0x328] sm:$0xff]
    %v3458 = vld [vmem:[%s6 + $0x330] sm:$0xff]
    %v3459 = vld [vmem:[%s6 + $0x338] sm:$0xff]
    %v3460 = vld [vmem:[%s6 + $0x340] sm:$0xff]
    %v3461 = vld [vmem:[%s6 + $0x348] sm:$0xff]
    %v3462 = vld [vmem:[%s6 + $0x350] sm:$0xff]
    %v3463 = vld [vmem:[%s6 + $0x358] sm:$0xff]
    %v3464 = vld [vmem:[%s6 + $0x360] sm:$0xff]
    %v3465 = vld [vmem:[%s6 + $0x368] sm:$0xff]
    %v3466 = vld [vmem:[%s6 + $0x370] sm:$0xff]
    %v3467 = vld [vmem:[%s6 + $0x378] sm:$0xff]
    %v3468 = vld [vmem:[%s6 + $0x380] sm:$0xff]
    %v3469 = vld [vmem:[%s6 + $0x388] sm:$0xff]
    %v3470 = vld [vmem:[%s6 + $0x390] sm:$0xff]
    %v3471 = vld [vmem:[%s6 + $0x398] sm:$0xff]
    %v3472 = vld [vmem:[%s6 + $0x3a0] sm:$0xff]
    %v3473 = vld [vmem:[%s6 + $0x3a8] sm:$0xff]
    %v3474 = vld [vmem:[%s6 + $0x3b0] sm:$0xff]
    %v3475 = vld [vmem:[%s6 + $0x3b8] sm:$0xff]
    %v3476 = vld [vmem:[%s6 + $0x3c0] sm:$0xff]
    %v3477 = vld [vmem:[%s6 + $0x3c8] sm:$0xff]
    %v3478 = vld [vmem:[%s6 + $0x3d0] sm:$0xff]
    %v3479 = vld [vmem:[%s6 + $0x3d8] sm:$0xff]
    %v3480 = vld [vmem:[%s6 + $0x3e0] sm:$0xff]
    %v3481 = vld [vmem:[%s6 + $0x3e8] sm:$0xff]
    %v3482 = vld [vmem:[%s6 + $0x3f0] sm:$0xff]
    %v3483 = vld [vmem:[%s6 + $0x3f8] sm:$0xff]
    %v3485 = vrot.slane %v3355, 2
    %3487 = vmatprep.subr.mxu0 %v3481
    %3488 = vmatpush1.msra.mxu0 %v3480
    %3489 = vmatprep.subr.mxu0 %v3477
    %3490 = vmatpush1.msra.mxu0 %v3476
    %3491 = vmatprep.subr.mxu0 %v3473
    %3492 = vmatpush1.msra.mxu0 %v3472
    %3493 = vmatprep.subr.mxu0 %v3469
    %3494 = vmatpush1.msra.mxu0 %v3468
    %3495 = vmatprep.subr.mxu0 %v3465
    %3496 = vmatpush1.msra.mxu0 %v3464
    %3497 = vmatprep.subr.mxu0 %v3461
    %3498 = vmatpush1.msra.mxu0 %v3460
    %3499 = vmatprep.subr.mxu0 %v3457
    %3500 = vmatpush1.msra.mxu0 %v3456
    %3501 = vmatprep.subr.mxu0 %v3453
    %3502 = vmatpush1.msra.mxu0 %v3452
    %3503 = vmatprep.subr.mxu0 %v3449
    %3504 = vmatpush1.msra.mxu0 %v3448
    %3505 = vmatprep.subr.mxu0 %v3445
    %3506 = vmatpush1.msra.mxu0 %v3444
    %3507 = vmatprep.subr.mxu0 %v3441
    %3508 = vmatpush1.msra.mxu0 %v3440
    %3509 = vmatprep.subr.mxu0 %v3437
    %3510 = vmatpush1.msra.mxu0 %v3436
    %3511 = vmatprep.subr.mxu0 %v3433
    %3512 = vmatpush1.msra.mxu0 %v3432
    %3513 = vmatprep.subr.mxu0 %v3429
    %3514 = vmatpush1.msra.mxu0 %v3428
    %3515 = vmatprep.subr.mxu0 %v3425
    %3516 = vmatpush1.msra.mxu0 %v3424
    %3517 = vmatprep.subr.mxu0 %v3421
    %3518 = vmatpush1.msra.mxu0 %v3420
    %3519 = vmatprep.subr.mxu0 0.0
    %3520 = vmatpush2.msra.mxu0 0.0
    %3521 = vmatprep.subr.mxu0 0.0
    %3522 = vmatpush2.msra.mxu0 0.0
    %3523 = vmatprep.subr.mxu0 0.0
    %3524 = vmatpush2.msra.mxu0 0.0
    %3525 = vmatprep.subr.mxu0 0.0
    %3526 = vmatpush2.msra.mxu0 0.0
    %3527 = vmatprep.subr.mxu0 0.0
    %3528 = vmatpush2.msra.mxu0 0.0
    %3529 = vmatprep.subr.mxu0 0.0
    %3530 = vmatpush2.msra.mxu0 0.0
    %3531 = vmatprep.subr.mxu0 0.0
    %3532 = vmatpush2.msra.mxu0 0.0
    %3533 = vmatprep.subr.mxu0 0.0
    %3534 = vmatpush2.msra.mxu0 0.0
    %3535 = vmatprep.subr.mxu0 0.0
    %3536 = vmatpush2.msra.mxu0 0.0
    %3537 = vmatprep.subr.mxu0 0.0
    %3538 = vmatpush2.msra.mxu0 0.0
    %3539 = vmatprep.subr.mxu0 0.0
    %3540 = vmatpush2.msra.mxu0 0.0
    %3541 = vmatprep.subr.mxu0 0.0
    %3542 = vmatpush2.msra.mxu0 0.0
    %3543 = vmatprep.subr.mxu0 0.0
    %3544 = vmatpush2.msra.mxu0 0.0
    %3545 = vmatprep.subr.mxu0 0.0
    %3546 = vmatpush2.msra.mxu0 0.0
    %3547 = vmatprep.subr.mxu0 0.0
    %3548 = vmatpush2.msra.mxu0 0.0
    %3549 = vmatprep.subr.mxu0 0.0
    %3550 = vmatpush2.msra.mxu0 0.0
    %3551 = vmatprep.mubr.f32.mxu0 0.0
    %3552 = vmatmul.mubr.f32.gmra.mxu0 %v3485
    %v3553 = vpop.f32.mrf.mxu0
    %v3554 = vadd.f32 0.0, %v3553
    %v3555 = vpop.f32.mrf.mxu0
    %v3556 = vadd.f32 0.0, %v3555
    %3557 = vdwg.mxu0
    %3558 = vmatprep.subr.mxu0 %v3483
    %3559 = vmatpush1.msra.mxu0 %v3482
    %3560 = vmatprep.subr.mxu0 %v3479
    %3561 = vmatpush1.msra.mxu0 %v3478
    %3562 = vmatprep.subr.mxu0 %v3475
    %3563 = vmatpush1.msra.mxu0 %v3474
    %3564 = vmatprep.subr.mxu0 %v3471
    %3565 = vmatpush1.msra.mxu0 %v3470
    %3566 = vmatprep.subr.mxu0 %v3467
    %3567 = vmatpush1.msra.mxu0 %v3466
    %3568 = vmatprep.subr.mxu0 %v3463
    %3569 = vmatpush1.msra.mxu0 %v3462
    %3570 = vmatprep.subr.mxu0 %v3459
    %3571 = vmatpush1.msra.mxu0 %v3458
    %3572 = vmatprep.subr.mxu0 %v3455
    %3573 = vmatpush1.msra.mxu0 %v3454
    %3574 = vmatprep.subr.mxu0 %v3451
    %3575 = vmatpush1.msra.mxu0 %v3450
    %3576 = vmatprep.subr.mxu0 %v3447
    %3577 = vmatpush1.msra.mxu0 %v3446
    %3578 = vmatprep.subr.mxu0 %v3443
    %3579 = vmatpush1.msra.mxu0 %v3442
    %3580 = vmatprep.subr.mxu0 %v3439
    %3581 = vmatpush1.msra.mxu0 %v3438
    %3582 = vmatprep.subr.mxu0 %v3435
    %3583 = vmatpush1.msra.mxu0 %v3434
    %3584 = vmatprep.subr.mxu0 %v3431
    %3585 = vmatpush1.msra.mxu0 %v3430
    %3586 = vmatprep.subr.mxu0 %v3427
    %3587 = vmatpush1.msra.mxu0 %v3426
    %3588 = vmatprep.subr.mxu0 %v3423
    %3589 = vmatpush1.msra.mxu0 %v3422
    %3590 = vmatprep.subr.mxu0 0.0
    %3591 = vmatpush2.msra.mxu0 0.0
    %3592 = vmatprep.subr.mxu0 0.0
    %3593 = vmatpush2.msra.mxu0 0.0
    %3594 = vmatprep.subr.mxu0 0.0
    %3595 = vmatpush2.msra.mxu0 0.0
    %3596 = vmatprep.subr.mxu0 0.0
    %3597 = vmatpush2.msra.mxu0 0.0
    %3598 = vmatprep.subr.mxu0 0.0
    %3599 = vmatpush2.msra.mxu0 0.0
    %3600 = vmatprep.subr.mxu0 0.0
    %3601 = vmatpush2.msra.mxu0 0.0
    %3602 = vmatprep.subr.mxu0 0.0
    %3603 = vmatpush2.msra.mxu0 0.0
    %3604 = vmatprep.subr.mxu0 0.0
    %3605 = vmatpush2.msra.mxu0 0.0
    %3606 = vmatprep.subr.mxu0 0.0
    %3607 = vmatpush2.msra.mxu0 0.0
    %3608 = vmatprep.subr.mxu0 0.0
    %3609 = vmatpush2.msra.mxu0 0.0
    %3610 = vmatprep.subr.mxu0 0.0
    %3611 = vmatpush2.msra.mxu0 0.0
    %3612 = vmatprep.subr.mxu0 0.0
    %3613 = vmatpush2.msra.mxu0 0.0
    %3614 = vmatprep.subr.mxu0 0.0
    %3615 = vmatpush2.msra.mxu0 0.0
    %3616 = vmatprep.subr.mxu0 0.0
    %3617 = vmatpush2.msra.mxu0 0.0
    %3618 = vmatprep.subr.mxu0 0.0
    %3619 = vmatpush2.msra.mxu0 0.0
    %3620 = vmatprep.subr.mxu0 0.0
    %3621 = vmatpush2.msra.mxu0 0.0
    %3622 = vmatprep.mubr.f32.mxu0 0.0
    %3623 = vmatmul.mubr.f32.gmra.mxu0 %v3485
    %v3624 = vpop.f32.mrf.mxu0
    %v3625 = vadd.f32 0.0, %v3624
    %v3626 = vpop.f32.mrf.mxu0
    %v3627 = vadd.f32 0.0, %v3626
    %3628 = vdwg.mxu0
    %3629 = vmatprep.subr.mxu0 %v3417
    %3630 = vmatpush1.msra.mxu0 %v3416
    %3631 = vmatprep.subr.mxu0 %v3413
    %3632 = vmatpush1.msra.mxu0 %v3412
    %3633 = vmatprep.subr.mxu0 %v3409
    %3634 = vmatpush1.msra.mxu0 %v3408
    %3635 = vmatprep.subr.mxu0 %v3405
    %3636 = vmatpush1.msra.mxu0 %v3404
    %3637 = vmatprep.subr.mxu0 %v3401
    %3638 = vmatpush1.msra.mxu0 %v3400
    %3639 = vmatprep.subr.mxu0 %v3397
    %3640 = vmatpush1.msra.mxu0 %v3396
    %3641 = vmatprep.subr.mxu0 %v3393
    %3642 = vmatpush1.msra.mxu0 %v3392
    %3643 = vmatprep.subr.mxu0 %v3389
    %3644 = vmatpush1.msra.mxu0 %v3388
    %3645 = vmatprep.subr.mxu0 %v3385
    %3646 = vmatpush1.msra.mxu0 %v3384
    %3647 = vmatprep.subr.mxu0 %v3381
    %3648 = vmatpush1.msra.mxu0 %v3380
    %3649 = vmatprep.subr.mxu0 %v3377
    %3650 = vmatpush1.msra.mxu0 %v3376
    %3651 = vmatprep.subr.mxu0 %v3373
    %3652 = vmatpush1.msra.mxu0 %v3372
    %3653 = vmatprep.subr.mxu0 %v3369
    %3654 = vmatpush1.msra.mxu0 %v3368
    %3655 = vmatprep.subr.mxu0 %v3365
    %3656 = vmatpush1.msra.mxu0 %v3364
    %3657 = vmatprep.subr.mxu0 %v3361
    %3658 = vmatpush1.msra.mxu0 %v3360
    %3659 = vmatprep.subr.mxu0 %v3357
    %3660 = vmatpush1.msra.mxu0 %v3356
    %3661 = vmatprep.subr.mxu0 0.0
    %3662 = vmatpush2.msra.mxu0 0.0
    %3663 = vmatprep.subr.mxu0 0.0
    %3664 = vmatpush2.msra.mxu0 0.0
    %3665 = vmatprep.subr.mxu0 0.0
    %3666 = vmatpush2.msra.mxu0 0.0
    %3667 = vmatprep.subr.mxu0 0.0
    %3668 = vmatpush2.msra.mxu0 0.0
    %3669 = vmatprep.subr.mxu0 0.0
    %3670 = vmatpush2.msra.mxu0 0.0
    %3671 = vmatprep.subr.mxu0 0.0
    %3672 = vmatpush2.msra.mxu0 0.0
    %3673 = vmatprep.subr.mxu0 0.0
    %3674 = vmatpush2.msra.mxu0 0.0
    %3675 = vmatprep.subr.mxu0 0.0
    %3676 = vmatpush2.msra.mxu0 0.0
    %3677 = vmatprep.subr.mxu0 0.0
    %3678 = vmatpush2.msra.mxu0 0.0
    %3679 = vmatprep.subr.mxu0 0.0
    %3680 = vmatpush2.msra.mxu0 0.0
    %3681 = vmatprep.subr.mxu0 0.0
    %3682 = vmatpush2.msra.mxu0 0.0
    %3683 = vmatprep.subr.mxu0 0.0
    %3684 = vmatpush2.msra.mxu0 0.0
    %3685 = vmatprep.subr.mxu0 0.0
    %3686 = vmatpush2.msra.mxu0 0.0
    %3687 = vmatprep.subr.mxu0 0.0
    %3688 = vmatpush2.msra.mxu0 0.0
    %3689 = vmatprep.subr.mxu0 0.0
    %3690 = vmatpush2.msra.mxu0 0.0
    %3691 = vmatprep.subr.mxu0 0.0
    %3692 = vmatpush2.msra.mxu0 0.0
    %3693 = vmatprep.mubr.f32.mxu0 0.0
    %3694 = vmatmul.mubr.f32.gmra.mxu0 %v3355
    %v3695 = vpop.f32.mrf.mxu0
    %v3696 = vadd.f32 %v3554, %v3695
    %v3697 = vpop.f32.mrf.mxu0
    %v3698 = vadd.f32 %v3556, %v3697
    %3699 = vdwg.mxu0
    %3700 = vmatprep.subr.mxu0 %v3419
    %3701 = vmatpush1.msra.mxu0 %v3418
    %3702 = vmatprep.subr.mxu0 %v3415
    %3703 = vmatpush1.msra.mxu0 %v3414
    %3704 = vmatprep.subr.mxu0 %v3411
    %3705 = vmatpush1.msra.mxu0 %v3410
    %3706 = vmatprep.subr.mxu0 %v3407
    %3707 = vmatpush1.msra.mxu0 %v3406
    %3708 = vmatprep.subr.mxu0 %v3403
    %3709 = vmatpush1.msra.mxu0 %v3402
    %3710 = vmatprep.subr.mxu0 %v3399
    %3711 = vmatpush1.msra.mxu0 %v3398
    %3712 = vmatprep.subr.mxu0 %v3395
    %3713 = vmatpush1.msra.mxu0 %v3394
    %3714 = vmatprep.subr.mxu0 %v3391
    %3715 = vmatpush1.msra.mxu0 %v3390
    %3716 = vmatprep.subr.mxu0 %v3387
    %3717 = vmatpush1.msra.mxu0 %v3386
    %3718 = vmatprep.subr.mxu0 %v3383
    %3719 = vmatpush1.msra.mxu0 %v3382
    %3720 = vmatprep.subr.mxu0 %v3379
    %3721 = vmatpush1.msra.mxu0 %v3378
    %3722 = vmatprep.subr.mxu0 %v3375
    %3723 = vmatpush1.msra.mxu0 %v3374
    %3724 = vmatprep.subr.mxu0 %v3371
    %3725 = vmatpush1.msra.mxu0 %v3370
    %3726 = vmatprep.subr.mxu0 %v3367
    %3727 = vmatpush1.msra.mxu0 %v3366
    %3728 = vmatprep.subr.mxu0 %v3363
    %3729 = vmatpush1.msra.mxu0 %v3362
    %3730 = vmatprep.subr.mxu0 %v3359
    %3731 = vmatpush1.msra.mxu0 %v3358
    %3732 = vmatprep.subr.mxu0 0.0
    %3733 = vmatpush2.msra.mxu0 0.0
    %3734 = vmatprep.subr.mxu0 0.0
    %3735 = vmatpush2.msra.mxu0 0.0
    %3736 = vmatprep.subr.mxu0 0.0
    %3737 = vmatpush2.msra.mxu0 0.0
    %3738 = vmatprep.subr.mxu0 0.0
    %3739 = vmatpush2.msra.mxu0 0.0
    %3740 = vmatprep.subr.mxu0 0.0
    %3741 = vmatpush2.msra.mxu0 0.0
    %3742 = vmatprep.subr.mxu0 0.0
    %3743 = vmatpush2.msra.mxu0 0.0
    %3744 = vmatprep.subr.mxu0 0.0
    %3745 = vmatpush2.msra.mxu0 0.0
    %3746 = vmatprep.subr.mxu0 0.0
    %3747 = vmatpush2.msra.mxu0 0.0
    %3748 = vmatprep.subr.mxu0 0.0
    %3749 = vmatpush2.msra.mxu0 0.0
    %3750 = vmatprep.subr.mxu0 0.0
    %3751 = vmatpush2.msra.mxu0 0.0
    %3752 = vmatprep.subr.mxu0 0.0
    %3753 = vmatpush2.msra.mxu0 0.0
    %3754 = vmatprep.subr.mxu0 0.0
    %3755 = vmatpush2.msra.mxu0 0.0
    %3756 = vmatprep.subr.mxu0 0.0
    %3757 = vmatpush2.msra.mxu0 0.0
    %3758 = vmatprep.subr.mxu0 0.0
    %3759 = vmatpush2.msra.mxu0 0.0
    %3760 = vmatprep.subr.mxu0 0.0
    %3761 = vmatpush2.msra.mxu0 0.0
    %3762 = vmatprep.subr.mxu0 0.0
    %3763 = vmatpush2.msra.mxu0 0.0
    %3764 = vmatprep.mubr.f32.mxu0 0.0
    %3765 = vmatmul.mubr.f32.gmra.mxu0 %v3355
    %v3766 = vpop.f32.mrf.mxu0
    %v3767 = vadd.f32 %v3625, %v3766
    %v3768 = vpop.f32.mrf.mxu0
    %v3769 = vadd.f32 %v3627, %v3768
    %3770 = vdwg.mxu0
    %v3771 = vld [vmem:[%s7] sm:$0xf]
    %v3773 = vlaneseq
    %v3774 = vshrl.u32 %v3773, 7
    %v3775 = vsub.s32 0, %v3774
    %v3776 = vrot.slane %v3771, %v3775
    %v3777 = vlaneseq
    %v3778 = vshrl.u32 %v3777, 7
    %v3779 = vsub.s32 1, %v3778
    %v3780 = vrot.slane %v3771, %v3779
    %v3781 = vlaneseq
    %v3782 = vshrl.u32 %v3781, 7
    %v3783 = vsub.s32 2, %v3782
    %v3784 = vrot.slane %v3771, %v3783
    %v3785 = vlaneseq
    %v3786 = vshrl.u32 %v3785, 7
    %v3787 = vsub.s32 3, %v3786
    %v3788 = vrot.slane %v3771, %v3787
    %v3793 = vadd.f32 %v3696, %v3776
    %v3794 = vadd.f32 %v3698, %v3780
    %v3795 = vadd.f32 %v3767, %v3784
    %v3796 = vadd.f32 %v3769, %v3788
    %v3797 = vmax.f32 %v3793, 0.0
    %v3798 = vmax.f32 %v3794, 0.0
    %v3799 = vmax.f32 %v3795, 0.0
    %v3800 = vmax.f32 %v3796, 0.0
    %v3801 = vld [vmem:[%s8] sm:$0xff]
    %v3802 = vld [vmem:[%s8 + $0x8] sm:$0xff]
    %v3803 = vld [vmem:[%s8 + $0x10] sm:$0xff]
    %v3804 = vld [vmem:[%s8 + $0x18] sm:$0xff]
    %v3805 = vld [vmem:[%s8 + $0x20] sm:$0xff]
    %v3806 = vld [vmem:[%s8 + $0x28] sm:$0xff]
    %v3807 = vld [vmem:[%s8 + $0x30] sm:$0xff]
    %v3808 = vld [vmem:[%s8 + $0x38] sm:$0xff]
    %v3809 = vld [vmem:[%s8 + $0x40] sm:$0xff]
    %v3810 = vld [vmem:[%s8 + $0x48] sm:$0xff]
    %v3811 = vld [vmem:[%s8 + $0x50] sm:$0xff]
    %v3812 = vld [vmem:[%s8 + $0x58] sm:$0xff]
    %v3813 = vld [vmem:[%s8 + $0x60] sm:$0xff]
    %v3814 = vld [vmem:[%s8 + $0x68] sm:$0xff]
    %v3815 = vld [vmem:[%s8 + $0x70] sm:$0xff]
    %v3816 = vld [vmem:[%s8 + $0x78] sm:$0xff]
    %v3817 = vld [vmem:[%s8 + $0x80] sm:$0xff]
    %v3818 = vld [vmem:[%s8 + $0x88] sm:$0xff]
    %v3819 = vld [vmem:[%s8 + $0x90] sm:$0xff]
    %v3820 = vld [vmem:[%s8 + $0x98] sm:$0xff]
    %v3821 = vld [vmem:[%s8 + $0xa0] sm:$0xff]
    %v3822 = vld [vmem:[%s8 + $0xa8] sm:$0xff]
    %v3823 = vld [vmem:[%s8 + $0xb0] sm:$0xff]
    %v3824 = vld [vmem:[%s8 + $0xb8] sm:$0xff]
    %v3825 = vld [vmem:[%s8 + $0xc0] sm:$0xff]
    %v3826 = vld [vmem:[%s8 + $0xc8] sm:$0xff]
    %v3827 = vld [vmem:[%s8 + $0xd0] sm:$0xff]
    %v3828 = vld [vmem:[%s8 + $0xd8] sm:$0xff]
    %v3829 = vld [vmem:[%s8 + $0xe0] sm:$0xff]
    %v3830 = vld [vmem:[%s8 + $0xe8] sm:$0xff]
    %v3831 = vld [vmem:[%s8 + $0xf0] sm:$0xff]
    %v3832 = vld [vmem:[%s8 + $0xf8] sm:$0xff]
    %v3833 = vld [vmem:[%s8 + $0x100] sm:$0xff]
    %v3834 = vld [vmem:[%s8 + $0x108] sm:$0xff]
    %v3835 = vld [vmem:[%s8 + $0x110] sm:$0xff]
    %v3836 = vld [vmem:[%s8 + $0x118] sm:$0xff]
    %v3837 = vld [vmem:[%s8 + $0x120] sm:$0xff]
    %v3838 = vld [vmem:[%s8 + $0x128] sm:$0xff]
    %v3839 = vld [vmem:[%s8 + $0x130] sm:$0xff]
    %v3840 = vld [vmem:[%s8 + $0x138] sm:$0xff]
    %v3841 = vld [vmem:[%s8 + $0x140] sm:$0xff]
    %v3842 = vld [vmem:[%s8 + $0x148] sm:$0xff]
    %v3843 = vld [vmem:[%s8 + $0x150] sm:$0xff]
    %v3844 = vld [vmem:[%s8 + $0x158] sm:$0xff]
    %v3845 = vld [vmem:[%s8 + $0x160] sm:$0xff]
    %v3846 = vld [vmem:[%s8 + $0x168] sm:$0xff]
    %v3847 = vld [vmem:[%s8 + $0x170] sm:$0xff]
    %v3848 = vld [vmem:[%s8 + $0x178] sm:$0xff]
    %v3849 = vld [vmem:[%s8 + $0x180] sm:$0xff]
    %v3850 = vld [vmem:[%s8 + $0x188] sm:$0xff]
    %v3851 = vld [vmem:[%s8 + $0x190] sm:$0xff]
    %v3852 = vld [vmem:[%s8 + $0x198] sm:$0xff]
    %v3853 = vld [vmem:[%s8 + $0x1a0] sm:$0xff]
    %v3854 = vld [vmem:[%s8 + $0x1a8] sm:$0xff]
    %v3855 = vld [vmem:[%s8 + $0x1b0] sm:$0xff]
    %v3856 = vld [vmem:[%s8 + $0x1b8] sm:$0xff]
    %v3857 = vld [vmem:[%s8 + $0x1c0] sm:$0xff]
    %v3858 = vld [vmem:[%s8 + $0x1c8] sm:$0xff]
    %v3859 = vld [vmem:[%s8 + $0x1d0] sm:$0xff]
    %v3860 = vld [vmem:[%s8 + $0x1d8] sm:$0xff]
    %v3861 = vld [vmem:[%s8 + $0x1e0] sm:$0xff]
    %v3862 = vld [vmem:[%s8 + $0x1e8] sm:$0xff]
    %v3863 = vld [vmem:[%s8 + $0x1f0] sm:$0xff]
    %v3864 = vld [vmem:[%s8 + $0x1f8] sm:$0xff]
    %v3865 = vld [vmem:[%s9] sm:$0x1]
    %v3867 = vlaneseq
    %v3868 = vshrl.u32 %v3867, 7
    %v3869 = vsub.s32 0, %v3868
    %v3870 = vrot.slane %v3865, %v3869
    %3872 = vmatprep.subr.mxu0 0.0
    %3873 = vmatpush1.msra.mxu0 %v3816
    %3874 = vmatprep.subr.mxu0 0.0
    %3875 = vmatpush1.msra.mxu0 %v3815
    %3876 = vmatprep.subr.mxu0 0.0
    %3877 = vmatpush1.msra.mxu0 %v3814
    %3878 = vmatprep.subr.mxu0 0.0
    %3879 = vmatpush1.msra.mxu0 %v3813
    %3880 = vmatprep.subr.mxu0 0.0
    %3881 = vmatpush1.msra.mxu0 %v3812
    %3882 = vmatprep.subr.mxu0 0.0
    %3883 = vmatpush1.msra.mxu0 %v3811
    %3884 = vmatprep.subr.mxu0 0.0
    %3885 = vmatpush1.msra.mxu0 %v3810
    %3886 = vmatprep.subr.mxu0 0.0
    %3887 = vmatpush1.msra.mxu0 %v3809
    %3888 = vmatprep.subr.mxu0 0.0
    %3889 = vmatpush1.msra.mxu0 %v3808
    %3890 = vmatprep.subr.mxu0 0.0
    %3891 = vmatpush1.msra.mxu0 %v3807
    %3892 = vmatprep.subr.mxu0 0.0
    %3893 = vmatpush1.msra.mxu0 %v3806
    %3894 = vmatprep.subr.mxu0 0.0
    %3895 = vmatpush1.msra.mxu0 %v3805
    %3896 = vmatprep.subr.mxu0 0.0
    %3897 = vmatpush1.msra.mxu0 %v3804
    %3898 = vmatprep.subr.mxu0 0.0
    %3899 = vmatpush1.msra.mxu0 %v3803
    %3900 = vmatprep.subr.mxu0 0.0
    %3901 = vmatpush1.msra.mxu0 %v3802
    %3902 = vmatprep.subr.mxu0 0.0
    %3903 = vmatpush1.msra.mxu0 %v3801
    %3904 = vmatprep.subr.mxu0 0.0
    %3905 = vmatpush2.msra.mxu0 %v3832
    %3906 = vmatprep.subr.mxu0 0.0
    %3907 = vmatpush2.msra.mxu0 %v3831
    %3908 = vmatprep.subr.mxu0 0.0
    %3909 = vmatpush2.msra.mxu0 %v3830
    %3910 = vmatprep.subr.mxu0 0.0
    %3911 = vmatpush2.msra.mxu0 %v3829
    %3912 = vmatprep.subr.mxu0 0.0
    %3913 = vmatpush2.msra.mxu0 %v3828
    %3914 = vmatprep.subr.mxu0 0.0
    %3915 = vmatpush2.msra.mxu0 %v3827
    %3916 = vmatprep.subr.mxu0 0.0
    %3917 = vmatpush2.msra.mxu0 %v3826
    %3918 = vmatprep.subr.mxu0 0.0
    %3919 = vmatpush2.msra.mxu0 %v3825
    %3920 = vmatprep.subr.mxu0 0.0
    %3921 = vmatpush2.msra.mxu0 %v3824
    %3922 = vmatprep.subr.mxu0 0.0
    %3923 = vmatpush2.msra.mxu0 %v3823
    %3924 = vmatprep.subr.mxu0 0.0
    %3925 = vmatpush2.msra.mxu0 %v3822
    %3926 = vmatprep.subr.mxu0 0.0
    %3927 = vmatpush2.msra.mxu0 %v3821
    %3928 = vmatprep.subr.mxu0 0.0
    %3929 = vmatpush2.msra.mxu0 %v3820
    %3930 = vmatprep.subr.mxu0 0.0
    %3931 = vmatpush2.msra.mxu0 %v3819
    %3932 = vmatprep.subr.mxu0 0.0
    %3933 = vmatpush2.msra.mxu0 %v3818
    %3934 = vmatprep.subr.mxu0 0.0
    %3935 = vmatpush2.msra.mxu0 %v3817
    %3936 = vmatprep.mubr.f32.mxu0 %v3798
    %3937 = vmatmul.mubr.f32.gmra.mxu0 %v3797
    %v3938 = vpop.f32.mrf.mxu0
    %v3939 = vadd.f32 %v3870, %v3938
    %v3940 = vpop.f32.mrf.mxu0
    %3941 = vdwg.mxu0
    %3942 = vmatprep.subr.mxu0 0.0
    %3943 = vmatpush1.msra.mxu0 %v3848
    %3944 = vmatprep.subr.mxu0 0.0
    %3945 = vmatpush1.msra.mxu0 %v3847
    %3946 = vmatprep.subr.mxu0 0.0
    %3947 = vmatpush1.msra.mxu0 %v3846
    %3948 = vmatprep.subr.mxu0 0.0
    %3949 = vmatpush1.msra.mxu0 %v3845
    %3950 = vmatprep.subr.mxu0 0.0
    %3951 = vmatpush1.msra.mxu0 %v3844
    %3952 = vmatprep.subr.mxu0 0.0
    %3953 = vmatpush1.msra.mxu0 %v3843
    %3954 = vmatprep.subr.mxu0 0.0
    %3955 = vmatpush1.msra.mxu0 %v3842
    %3956 = vmatprep.subr.mxu0 0.0
    %3957 = vmatpush1.msra.mxu0 %v3841
    %3958 = vmatprep.subr.mxu0 0.0
    %3959 = vmatpush1.msra.mxu0 %v3840
    %3960 = vmatprep.subr.mxu0 0.0
    %3961 = vmatpush1.msra.mxu0 %v3839
    %3962 = vmatprep.subr.mxu0 0.0
    %3963 = vmatpush1.msra.mxu0 %v3838
    %3964 = vmatprep.subr.mxu0 0.0
    %3965 = vmatpush1.msra.mxu0 %v3837
    %3966 = vmatprep.subr.mxu0 0.0
    %3967 = vmatpush1.msra.mxu0 %v3836
    %3968 = vmatprep.subr.mxu0 0.0
    %3969 = vmatpush1.msra.mxu0 %v3835
    %3970 = vmatprep.subr.mxu0 0.0
    %3971 = vmatpush1.msra.mxu0 %v3834
    %3972 = vmatprep.subr.mxu0 0.0
    %3973 = vmatpush1.msra.mxu0 %v3833
    %3974 = vmatprep.subr.mxu0 0.0
    %3975 = vmatpush2.msra.mxu0 %v3864
    %3976 = vmatprep.subr.mxu0 0.0
    %3977 = vmatpush2.msra.mxu0 %v3863
    %3978 = vmatprep.subr.mxu0 0.0
    %3979 = vmatpush2.msra.mxu0 %v3862
    %3980 = vmatprep.subr.mxu0 0.0
    %3981 = vmatpush2.msra.mxu0 %v3861
    %3982 = vmatprep.subr.mxu0 0.0
    %3983 = vmatpush2.msra.mxu0 %v3860
    %3984 = vmatprep.subr.mxu0 0.0
    %3985 = vmatpush2.msra.mxu0 %v3859
    %3986 = vmatprep.subr.mxu0 0.0
    %3987 = vmatpush2.msra.mxu0 %v3858
    %3988 = vmatprep.subr.mxu0 0.0
    %3989 = vmatpush2.msra.mxu0 %v3857
    %3990 = vmatprep.subr.mxu0 0.0
    %3991 = vmatpush2.msra.mxu0 %v3856
    %3992 = vmatprep.subr.mxu0 0.0
    %3993 = vmatpush2.msra.mxu0 %v3855
    %3994 = vmatprep.subr.mxu0 0.0
    %3995 = vmatpush2.msra.mxu0 %v3854
    %3996 = vmatprep.subr.mxu0 0.0
    %3997 = vmatpush2.msra.mxu0 %v3853
    %3998 = vmatprep.subr.mxu0 0.0
    %3999 = vmatpush2.msra.mxu0 %v3852
    %4000 = vmatprep.subr.mxu0 0.0
    %4001 = vmatpush2.msra.mxu0 %v3851
    %4002 = vmatprep.subr.mxu0 0.0
    %4003 = vmatpush2.msra.mxu0 %v3850
    %4004 = vmatprep.subr.mxu0 0.0
    %4005 = vmatpush2.msra.mxu0 %v3849
    %4006 = vmatprep.mubr.f32.mxu0 %v3800
    %4007 = vmatmul.mubr.f32.gmra.mxu0 %v3799
    %v4008 = vpop.f32.mrf.mxu0
    %v4009 = vadd.f32 %v3939, %v4008
    %v4010 = vpop.f32.mrf.mxu0
    %4011 = vdwg.mxu0
    %4012 = vst [vmem:[#allocation3] sm:$0x3] %v4009
    // Predicated region
    $region42: #{rnn_dp_forward.1} parent=1 // pred_check
      _
    $region43: #{rnn_dp_forward.1} parent=1 // pred_check_branch
      %4014 = sbr.rel (0) target = $region45
    $region44: #{rnn_dp_forward.1} parent=1 // pred_region
      %s4016 = ssub.s32 32, 32
      %4017 = vsyncadd [#allocation4], %s4016
      %s4019 = sshll.u32 [#allocation3], 4
      %s4020 = int_to_ptr.vmem [resolvable:$true] %s4019
      %4022 = dma.vmem_to_hbm [thread:$0]  %s4020, 32, %s10, [#allocation4]
    $region45: #{rnn_dp_forward.1} parent=1 // pred_fallthru
      _
    // Predicated region
    $region46: #{rnn_dp_forward.1} parent=1 // pred_check
      _
    $region47: #{rnn_dp_forward.1} parent=1 // pred_check_branch
      %4024 = sbr.rel (0) target = $region49
    $region48: #{rnn_dp_forward.1} parent=1 // pred_region
      %4025 = dma.done [#allocation4], 32
    $region49: #{rnn_dp_forward.1} parent=1 // pred_fallthru
      _
    %4026 = vsyncpa [#allocation4], 1

</llo_original>
